<compile_context>
chip_gen: v7x
topology: tpu7x:2x2x1
jax: 0.10.0
libtpu: 0.0.40
codegen_flags: <defaults>
</compile_context>

<pallas_src>
import functools

import jax
import jax.numpy as jnp
from jax.experimental import pallas as pl
from jax.experimental.pallas import tpu as pltpu


def _round_up(x, m):
    return (x + m - 1) // m * m


# ----------------------------- Pallas kernel ------------------------------- #

def make_fused_kernel(T, B, Bp, H, num_layers):
    """Fused (embedding gather + LSTM stack + linear) kernel; static T/B/Bp/H/layers.

    Ref order:
      inputs : sent (B, T) int32 [SMEM], emb (Vp, Ep) f32 [VMEM],
               per layer: wih_t (in_dim_p, 4H) bf16, whh_t (H, 4H) bf16, bias (1,4H) f32,
               wlin_t (H, Cp) bf16, blin (1, Cp) f32
      outputs: o (T*Bp, Cp) f32
      scratch: x (T*Bp, Ep) f32, hseq_a (T*Bp, H) f32, hseq_b (T*Bp, H) f32,
               gx (T*Bp, 4H) f32
    """

    def kernel(*refs):
        sent_ref = refs[0]
        emb_ref = refs[1]
        wlin_ref = refs[2 + 3 * num_layers]
        blin_ref = refs[3 + 3 * num_layers]
        o_ref = refs[4 + 3 * num_layers]
        x_scr = refs[5 + 3 * num_layers]
        hseq_scr = (refs[6 + 3 * num_layers], refs[7 + 3 * num_layers])
        gx_scr = refs[8 + 3 * num_layers]

        # ---- Embedding gather, time-major layout, batch padded to Bp rows ----
        x_scr[...] = jnp.zeros_like(x_scr)            # zeros the Bp - B padding rows
        for t in range(T):                            # static unroll (T*B is tiny)
            for b in range(B):
                tok = sent_ref[b, t]                  # SMEM scalar read
                x_scr[pl.ds(t * Bp + b, 1), :] = emb_ref[pl.ds(tok, 1), :]

        def run_layer(x_bf16, wih_ref, whh_ref, bias_ref, out_scr):
            # Hoisted input projection + folded bias for the whole sequence:
            # one (T*Bp, in_dim) @ (in_dim, 4H) MXU matmul off the serial path.
            gx_scr[...] = (
                jnp.dot(x_bf16, wih_ref[...], preferred_element_type=jnp.float32)
                + bias_ref[...])

            whh = whh_ref[...]                        # (H, 4H) bf16, loaded once/layer

            h = jnp.zeros((Bp, H), jnp.float32)       # h0 = c0 = 0, as in nn.LSTM
            c = jnp.zeros((Bp, H), jnp.float32)
            for t in range(T):                        # fully unrolled recurrence
                r0 = t * Bp                           # static, multiple of 8
                gates = gx_scr[pl.ds(r0, Bp), :] + jnp.dot(
                    h.astype(jnp.bfloat16), whh,
                    preferred_element_type=jnp.float32)        # (Bp, 4H) f32
                # Gate columns were repacked to (i, f, o, g): one sigmoid + one tanh.
                sig = jax.nn.sigmoid(gates[:, :3 * H])
                i_g = sig[:, 0 * H:1 * H]
                f_g = sig[:, 1 * H:2 * H]
                o_g = sig[:, 2 * H:3 * H]
                g_g = jnp.tanh(gates[:, 3 * H:4 * H])
                c = f_g * c + i_g * g_g
                h = o_g * jnp.tanh(c)
                out_scr[pl.ds(r0, Bp), :] = h         # full (8,128) tile store

        layer_in = x_scr[...].astype(jnp.bfloat16)    # (T*Bp, Ep) bf16
        for l in range(num_layers):
            wih_ref = refs[2 + 3 * l]
            whh_ref = refs[3 + 3 * l]
            bias_ref = refs[4 + 3 * l]
            out_scr = hseq_scr[l % 2]                 # ping-pong VMEM buffer
            run_layer(layer_in, wih_ref, whh_ref, bias_ref, out_scr)
            layer_in = out_scr[...].astype(jnp.bfloat16)       # (T*Bp, H) bf16

        # Fused output projection; Cp is a multiple of 128 -> lane-dense store.
        o_ref[...] = (
            jnp.dot(layer_in, wlin_ref[...], preferred_element_type=jnp.float32)
            + blin_ref[...])

    return kernel


# ------------------------------ JAX wrappers ------------------------------- #

def fused_lstm_linear(sentence, kp, *, T, B, Bp):
    """sentence: (B, T) int32 token ids. Returns (T*Bp, Cp) f32 time-major logits."""
    layers = kp["lstm"]
    num_layers = len(layers)
    H = layers[0]["whh_t"].shape[0]
    Ep = kp["embedding"].shape[1]
    Cp = kp["linear_w_t"].shape[1]

    kernel = make_fused_kernel(T, B, Bp, H, num_layers)

    inputs = [sentence, kp["embedding"]]
    for lp in layers:
        inputs += [lp["wih_t"], lp["whh_t"], lp["bias"]]
    inputs += [kp["linear_w_t"], kp["linear_b"]]

    smem_spec = pl.BlockSpec(memory_space=pltpu.MemorySpace.SMEM)
    vmem_spec = pl.BlockSpec(memory_space=pltpu.MemorySpace.VMEM)
    in_specs = [smem_spec] + [vmem_spec] * (len(inputs) - 1)

    return pl.pallas_call(
        kernel,
        out_shape=jax.ShapeDtypeStruct((T * Bp, Cp), jnp.float32),
        in_specs=in_specs,
        out_specs=vmem_spec,
        scratch_shapes=[
            pltpu.VMEM((T * Bp, Ep), jnp.float32),      # gathered embeddings (x)
            pltpu.VMEM((T * Bp, H), jnp.float32),       # hseq ping
            pltpu.VMEM((T * Bp, H), jnp.float32),       # hseq pong
            pltpu.VMEM((T * Bp, 4 * H), jnp.float32),   # hoisted input-gate projections
        ],
    )(*inputs)


@functools.partial(jax.jit, static_argnames=("num_classes",))
def lstm_model_forward(sentence, kp, *, num_classes):
    """sentence: (B, T) int32 token ids. Returns logits (B, T, num_classes) f32."""
    B, T = sentence.shape
    Bp = _round_up(max(B, 8), 8)                      # f32 sublane count
    out_flat = fused_lstm_linear(sentence, kp, T=T, B=B, Bp=Bp)   # (T*Bp, Cp) f32
    Cp = out_flat.shape[-1]
    logits = out_flat.reshape(T, Bp, Cp)[:, :B, :num_classes]     # drop padding
    return jnp.transpose(logits, (1, 0, 2))                        # (B, T, C)


# --------------------------- Parameter construction ------------------------ #

def init_params(key, vocab_size, embedding_dim, hidden_size, num_classes, num_layers):
    """PyTorch-layout / PyTorch-default-init parameters."""
    keys = jax.random.split(key, 3 + 4 * num_layers)
    k_emb, k_lw, k_lb = keys[0], keys[1], keys[2]
    layer_keys = keys[3:]

    params = {}
    # embedding_table = torch.randn((vocab+2, E)) / 10
    params["embedding"] = (jax.random.normal(
        k_emb, (vocab_size + 2, embedding_dim), jnp.float32) / 10.0)

    # LSTM layers, PyTorch default init: U(-1/sqrt(H), 1/sqrt(H))
    k_lstm = 1.0 / jnp.sqrt(hidden_size)
    layers = []
    for l in range(num_layers):
        in_dim = embedding_dim if l == 0 else hidden_size
        kw_ih, kw_hh, kb_ih, kb_hh = layer_keys[4 * l:4 * l + 4]
        layers.append({
            "w_ih": jax.random.uniform(kw_ih, (4 * hidden_size, in_dim),
                                       jnp.float32, -k_lstm, k_lstm),
            "w_hh": jax.random.uniform(kw_hh, (4 * hidden_size, hidden_size),
                                       jnp.float32, -k_lstm, k_lstm),
            "b_ih": jax.random.uniform(kb_ih, (4 * hidden_size,),
                                       jnp.float32, -k_lstm, k_lstm),
            "b_hh": jax.random.uniform(kb_hh, (4 * hidden_size,),
                                       jnp.float32, -k_lstm, k_lstm),
        })
    params["lstm"] = layers

    # Linear layer, PyTorch default init: U(-1/sqrt(in_features), 1/sqrt(in_features))
    k_lin = 1.0 / jnp.sqrt(hidden_size)
    params["linear_w"] = jax.random.uniform(k_lw, (num_classes, hidden_size),
                                            jnp.float32, -k_lin, k_lin)
    params["linear_b"] = jax.random.uniform(k_lb, (num_classes,),
                                            jnp.float32, -k_lin, k_lin)
    return params


def _reorder_ifgo_to_ifog(w, H):
    """Repack the packed 4H gate axis from PyTorch (i, f, g, o) to (i, f, o, g)."""
    return jnp.concatenate(
        [w[..., :2 * H], w[..., 3 * H:4 * H], w[..., 2 * H:3 * H]], axis=-1)


def prepare_kernel_params(params):
    """One-time packing: transpose weights, fold biases, repack gates to (i,f,o,g),
    zero-pad embedding / class dims to lane width (128), cast matmul weights to bf16."""
    H = params["lstm"][0]["w_hh"].shape[1]

    V, E = params["embedding"].shape
    Ep = _round_up(E, 128)
    Vp = _round_up(V, 8)
    emb = jnp.pad(params["embedding"], ((0, Vp - V), (0, Ep - E))).astype(jnp.float32)

    layers = []
    for lp in params["lstm"]:
        wih_t = jnp.transpose(lp["w_ih"])                   # (in_dim, 4H)
        in_dim = wih_t.shape[0]
        pad = _round_up(in_dim, 128) - in_dim
        if pad:
            wih_t = jnp.pad(wih_t, ((0, pad), (0, 0)))      # zero rows: matmul no-op
        whh_t = jnp.transpose(lp["w_hh"])                   # (H, 4H)
        bias = lp["b_ih"] + lp["b_hh"]                      # (4H,)
        layers.append({
            "wih_t": _reorder_ifgo_to_ifog(wih_t, H).astype(jnp.bfloat16),
            "whh_t": _reorder_ifgo_to_ifog(whh_t, H).astype(jnp.bfloat16),
            "bias": _reorder_ifgo_to_ifog(bias, H)[None, :].astype(jnp.float32),
        })

    C, _ = params["linear_w"].shape
    Cp = _round_up(C, 128)
    wlin_t = jnp.pad(jnp.transpose(params["linear_w"]), ((0, 0), (0, Cp - C)))
    blin = jnp.pad(params["linear_b"], (0, Cp - C))[None, :]

    return {
        "embedding": emb,
        "lstm": layers,
        "linear_w_t": wlin_t.astype(jnp.bfloat16),
        "linear_b": blin.astype(jnp.float32),
    }


# ---------------------------------- Main ----------------------------------- #

if __name__ == "__main__":
    # Small shapes consistent with the module (glove-100 embeddings, H=128, 20 classes,
    # 2 LSTM layers, batch_first token ids -> per-token logits).
    B, T = 2, 8
    EMBEDDING_DIM = 100
    HIDDEN_SIZE = 128
    NUM_CLASSES = 20
    NUM_LAYERS = 2
    VOCAB = 50   # len(vocabulary); table has VOCAB + 2 rows

    key = jax.random.PRNGKey(0)
    k_params, k_sent = jax.random.split(key)

    params = init_params(k_params, VOCAB, EMBEDDING_DIM, HIDDEN_SIZE,
                         NUM_CLASSES, NUM_LAYERS)
    kparams = prepare_kernel_params(params)

    sentence = jax.random.randint(k_sent, (B, T), 0, VOCAB + 2, dtype=jnp.int32)

    logits = lstm_model_forward(sentence, kparams, num_classes=NUM_CLASSES)
    jax.block_until_ready(logits)

    assert logits.shape == (B, T, NUM_CLASSES), logits.shape
    assert logits.dtype == jnp.float32
    assert bool(jnp.all(jnp.isfinite(logits)))
    print("KERNEL_OK")
</pallas_src>

<mosaic_0001>
module attributes {stable_mosaic.version = 11 : i64} {
  func.func @kernel(%arg0: memref<2x8xi32, #tpu.memory_space<smem>>, %arg1: memref<56x128xf32, #tpu.memory_space<vmem>>, %arg2: memref<128x512xbf16, #tpu.memory_space<vmem>>, %arg3: memref<128x512xbf16, #tpu.memory_space<vmem>>, %arg4: memref<1x512xf32, #tpu.memory_space<vmem>>, %arg5: memref<128x512xbf16, #tpu.memory_space<vmem>>, %arg6: memref<128x512xbf16, #tpu.memory_space<vmem>>, %arg7: memref<1x512xf32, #tpu.memory_space<vmem>>, %arg8: memref<128x128xbf16, #tpu.memory_space<vmem>>, %arg9: memref<1x128xf32, #tpu.memory_space<vmem>>, %arg10: memref<64x128xf32, #tpu.memory_space<vmem>>, %arg11: memref<64x128xf32, #tpu.memory_space<vmem>>, %arg12: memref<64x128xf32, #tpu.memory_space<vmem>>, %arg13: memref<64x128xf32, #tpu.memory_space<vmem>>, %arg14: memref<64x512xf32, #tpu.memory_space<vmem>>) attributes {dimension_semantics = [], scalar_prefetch = 0 : i64, scratch_operands = 4 : i64, tpu.core_type = #tpu.core_type<tc>} {
    %cst = arith.constant 0.000000e+00 : f32
    %0 = vector.broadcast %cst : f32 to vector<64x128xf32>
    %c0 = arith.constant 0 : index
    %c0_0 = arith.constant 0 : index
    %1 = vector.load %arg11[%c0, %c0_0] : memref<64x128xf32, #tpu.memory_space<vmem>>, vector<64x128xf32>
    tpu.vector_store %arg11[%c0, %c0_0], %0 {strides = array<i32>} : memref<64x128xf32, #tpu.memory_space<vmem>>, vector<64x128xf32>,
    %c0_1 = arith.constant 0 : index
    %c0_2 = arith.constant 0 : index
    %2 = memref.load %arg0[%c0_1, %c0_2] : memref<2x8xi32, #tpu.memory_space<smem>>
    %3 = arith.index_cast %2 : i32 to index
    %c0_3 = arith.constant 0 : index
    %4 = vector.load %arg1[%3, %c0_3] : memref<56x128xf32, #tpu.memory_space<vmem>>, vector<1x128xf32>
    %c0_4 = arith.constant 0 : index
    %c0_5 = arith.constant 0 : index
    %5 = vector.load %arg11[%c0_4, %c0_5] : memref<64x128xf32, #tpu.memory_space<vmem>>, vector<1x128xf32>
    tpu.vector_store %arg11[%c0_4, %c0_5], %4 {strides = array<i32>} : memref<64x128xf32, #tpu.memory_space<vmem>>, vector<1x128xf32>,
    %c1 = arith.constant 1 : index
    %c0_6 = arith.constant 0 : index
    %6 = memref.load %arg0[%c1, %c0_6] : memref<2x8xi32, #tpu.memory_space<smem>>
    %7 = arith.index_cast %6 : i32 to index
    %c0_7 = arith.constant 0 : index
    %8 = vector.load %arg1[%7, %c0_7] : memref<56x128xf32, #tpu.memory_space<vmem>>, vector<1x128xf32>
    %c1_8 = arith.constant 1 : index
    %c0_9 = arith.constant 0 : index
    %9 = vector.load %arg11[%c1_8, %c0_9] : memref<64x128xf32, #tpu.memory_space<vmem>>, vector<1x128xf32>
    tpu.vector_store %arg11[%c1_8, %c0_9], %8 {strides = array<i32>} : memref<64x128xf32, #tpu.memory_space<vmem>>, vector<1x128xf32>,
    %c0_10 = arith.constant 0 : index
    %c1_11 = arith.constant 1 : index
    %10 = memref.load %arg0[%c0_10, %c1_11] : memref<2x8xi32, #tpu.memory_space<smem>>
    %11 = arith.index_cast %10 : i32 to index
    %c0_12 = arith.constant 0 : index
    %12 = vector.load %arg1[%11, %c0_12] : memref<56x128xf32, #tpu.memory_space<vmem>>, vector<1x128xf32>
    %c8 = arith.constant 8 : index
    %c0_13 = arith.constant 0 : index
    %13 = vector.load %arg11[%c8, %c0_13] : memref<64x128xf32, #tpu.memory_space<vmem>>, vector<1x128xf32>
    tpu.vector_store %arg11[%c8, %c0_13], %12 {strides = array<i32>} : memref<64x128xf32, #tpu.memory_space<vmem>>, vector<1x128xf32>,
    %c1_14 = arith.constant 1 : index
    %c1_15 = arith.constant 1 : index
    %14 = memref.load %arg0[%c1_14, %c1_15] : memref<2x8xi32, #tpu.memory_space<smem>>
    %15 = arith.index_cast %14 : i32 to index
    %c0_16 = arith.constant 0 : index
    %16 = vector.load %arg1[%15, %c0_16] : memref<56x128xf32, #tpu.memory_space<vmem>>, vector<1x128xf32>
    %c9 = arith.constant 9 : index
    %c0_17 = arith.constant 0 : index
    %17 = vector.load %arg11[%c9, %c0_17] : memref<64x128xf32, #tpu.memory_space<vmem>>, vector<1x128xf32>
    tpu.vector_store %arg11[%c9, %c0_17], %16 {strides = array<i32>} : memref<64x128xf32, #tpu.memory_space<vmem>>, vector<1x128xf32>,
    %c0_18 = arith.constant 0 : index
    %c2 = arith.constant 2 : index
    %18 = memref.load %arg0[%c0_18, %c2] : memref<2x8xi32, #tpu.memory_space<smem>>
    %19 = arith.index_cast %18 : i32 to index
    %c0_19 = arith.constant 0 : index
    %20 = vector.load %arg1[%19, %c0_19] : memref<56x128xf32, #tpu.memory_space<vmem>>, vector<1x128xf32>
    %c16 = arith.constant 16 : index
    %c0_20 = arith.constant 0 : index
    %21 = vector.load %arg11[%c16, %c0_20] : memref<64x128xf32, #tpu.memory_space<vmem>>, vector<1x128xf32>
    tpu.vector_store %arg11[%c16, %c0_20], %20 {strides = array<i32>} : memref<64x128xf32, #tpu.memory_space<vmem>>, vector<1x128xf32>,
    %c1_21 = arith.constant 1 : index
    %c2_22 = arith.constant 2 : index
    %22 = memref.load %arg0[%c1_21, %c2_22] : memref<2x8xi32, #tpu.memory_space<smem>>
    %23 = arith.index_cast %22 : i32 to index
    %c0_23 = arith.constant 0 : index
    %24 = vector.load %arg1[%23, %c0_23] : memref<56x128xf32, #tpu.memory_space<vmem>>, vector<1x128xf32>
    %c17 = arith.constant 17 : index
    %c0_24 = arith.constant 0 : index
    %25 = vector.load %arg11[%c17, %c0_24] : memref<64x128xf32, #tpu.memory_space<vmem>>, vector<1x128xf32>
    tpu.vector_store %arg11[%c17, %c0_24], %24 {strides = array<i32>} : memref<64x128xf32, #tpu.memory_space<vmem>>, vector<1x128xf32>,
    %c0_25 = arith.constant 0 : index
    %c3 = arith.constant 3 : index
    %26 = memref.load %arg0[%c0_25, %c3] : memref<2x8xi32, #tpu.memory_space<smem>>
    %27 = arith.index_cast %26 : i32 to index
    %c0_26 = arith.constant 0 : index
    %28 = vector.load %arg1[%27, %c0_26] : memref<56x128xf32, #tpu.memory_space<vmem>>, vector<1x128xf32>
    %c24 = arith.constant 24 : index
    %c0_27 = arith.constant 0 : index
    %29 = vector.load %arg11[%c24, %c0_27] : memref<64x128xf32, #tpu.memory_space<vmem>>, vector<1x128xf32>
    tpu.vector_store %arg11[%c24, %c0_27], %28 {strides = array<i32>} : memref<64x128xf32, #tpu.memory_space<vmem>>, vector<1x128xf32>,
    %c1_28 = arith.constant 1 : index
    %c3_29 = arith.constant 3 : index
    %30 = memref.load %arg0[%c1_28, %c3_29] : memref<2x8xi32, #tpu.memory_space<smem>>
    %31 = arith.index_cast %30 : i32 to index
    %c0_30 = arith.constant 0 : index
    %32 = vector.load %arg1[%31, %c0_30] : memref<56x128xf32, #tpu.memory_space<vmem>>, vector<1x128xf32>
    %c25 = arith.constant 25 : index
    %c0_31 = arith.constant 0 : index
    %33 = vector.load %arg11[%c25, %c0_31] : memref<64x128xf32, #tpu.memory_space<vmem>>, vector<1x128xf32>
    tpu.vector_store %arg11[%c25, %c0_31], %32 {strides = array<i32>} : memref<64x128xf32, #tpu.memory_space<vmem>>, vector<1x128xf32>,
    %c0_32 = arith.constant 0 : index
    %c4 = arith.constant 4 : index
    %34 = memref.load %arg0[%c0_32, %c4] : memref<2x8xi32, #tpu.memory_space<smem>>
    %35 = arith.index_cast %34 : i32 to index
    %c0_33 = arith.constant 0 : index
    %36 = vector.load %arg1[%35, %c0_33] : memref<56x128xf32, #tpu.memory_space<vmem>>, vector<1x128xf32>
    %c32 = arith.constant 32 : index
    %c0_34 = arith.constant 0 : index
    %37 = vector.load %arg11[%c32, %c0_34] : memref<64x128xf32, #tpu.memory_space<vmem>>, vector<1x128xf32>
    tpu.vector_store %arg11[%c32, %c0_34], %36 {strides = array<i32>} : memref<64x128xf32, #tpu.memory_space<vmem>>, vector<1x128xf32>,
    %c1_35 = arith.constant 1 : index
    %c4_36 = arith.constant 4 : index
    %38 = memref.load %arg0[%c1_35, %c4_36] : memref<2x8xi32, #tpu.memory_space<smem>>
    %39 = arith.index_cast %38 : i32 to index
    %c0_37 = arith.constant 0 : index
    %40 = vector.load %arg1[%39, %c0_37] : memref<56x128xf32, #tpu.memory_space<vmem>>, vector<1x128xf32>
    %c33 = arith.constant 33 : index
    %c0_38 = arith.constant 0 : index
    %41 = vector.load %arg11[%c33, %c0_38] : memref<64x128xf32, #tpu.memory_space<vmem>>, vector<1x128xf32>
    tpu.vector_store %arg11[%c33, %c0_38], %40 {strides = array<i32>} : memref<64x128xf32, #tpu.memory_space<vmem>>, vector<1x128xf32>,
    %c0_39 = arith.constant 0 : index
    %c5 = arith.constant 5 : index
    %42 = memref.load %arg0[%c0_39, %c5] : memref<2x8xi32, #tpu.memory_space<smem>>
    %43 = arith.index_cast %42 : i32 to index
    %c0_40 = arith.constant 0 : index
    %44 = vector.load %arg1[%43, %c0_40] : memref<56x128xf32, #tpu.memory_space<vmem>>, vector<1x128xf32>
    %c40 = arith.constant 40 : index
    %c0_41 = arith.constant 0 : index
    %45 = vector.load %arg11[%c40, %c0_41] : memref<64x128xf32, #tpu.memory_space<vmem>>, vector<1x128xf32>
    tpu.vector_store %arg11[%c40, %c0_41], %44 {strides = array<i32>} : memref<64x128xf32, #tpu.memory_space<vmem>>, vector<1x128xf32>,
    %c1_42 = arith.constant 1 : index
    %c5_43 = arith.constant 5 : index
    %46 = memref.load %arg0[%c1_42, %c5_43] : memref<2x8xi32, #tpu.memory_space<smem>>
    %47 = arith.index_cast %46 : i32 to index
    %c0_44 = arith.constant 0 : index
    %48 = vector.load %arg1[%47, %c0_44] : memref<56x128xf32, #tpu.memory_space<vmem>>, vector<1x128xf32>
    %c41 = arith.constant 41 : index
    %c0_45 = arith.constant 0 : index
    %49 = vector.load %arg11[%c41, %c0_45] : memref<64x128xf32, #tpu.memory_space<vmem>>, vector<1x128xf32>
    tpu.vector_store %arg11[%c41, %c0_45], %48 {strides = array<i32>} : memref<64x128xf32, #tpu.memory_space<vmem>>, vector<1x128xf32>,
    %c0_46 = arith.constant 0 : index
    %c6 = arith.constant 6 : index
    %50 = memref.load %arg0[%c0_46, %c6] : memref<2x8xi32, #tpu.memory_space<smem>>
    %51 = arith.index_cast %50 : i32 to index
    %c0_47 = arith.constant 0 : index
    %52 = vector.load %arg1[%51, %c0_47] : memref<56x128xf32, #tpu.memory_space<vmem>>, vector<1x128xf32>
    %c48 = arith.constant 48 : index
    %c0_48 = arith.constant 0 : index
    %53 = vector.load %arg11[%c48, %c0_48] : memref<64x128xf32, #tpu.memory_space<vmem>>, vector<1x128xf32>
    tpu.vector_store %arg11[%c48, %c0_48], %52 {strides = array<i32>} : memref<64x128xf32, #tpu.memory_space<vmem>>, vector<1x128xf32>,
    %c1_49 = arith.constant 1 : index
    %c6_50 = arith.constant 6 : index
    %54 = memref.load %arg0[%c1_49, %c6_50] : memref<2x8xi32, #tpu.memory_space<smem>>
    %55 = arith.index_cast %54 : i32 to index
    %c0_51 = arith.constant 0 : index
    %56 = vector.load %arg1[%55, %c0_51] : memref<56x128xf32, #tpu.memory_space<vmem>>, vector<1x128xf32>
    %c49 = arith.constant 49 : index
    %c0_52 = arith.constant 0 : index
    %57 = vector.load %arg11[%c49, %c0_52] : memref<64x128xf32, #tpu.memory_space<vmem>>, vector<1x128xf32>
    tpu.vector_store %arg11[%c49, %c0_52], %56 {strides = array<i32>} : memref<64x128xf32, #tpu.memory_space<vmem>>, vector<1x128xf32>,
    %c0_53 = arith.constant 0 : index
    %c7 = arith.constant 7 : index
    %58 = memref.load %arg0[%c0_53, %c7] : memref<2x8xi32, #tpu.memory_space<smem>>
    %59 = arith.index_cast %58 : i32 to index
    %c0_54 = arith.constant 0 : index
    %60 = vector.load %arg1[%59, %c0_54] : memref<56x128xf32, #tpu.memory_space<vmem>>, vector<1x128xf32>
    %c56 = arith.constant 56 : index
    %c0_55 = arith.constant 0 : index
    %61 = vector.load %arg11[%c56, %c0_55] : memref<64x128xf32, #tpu.memory_space<vmem>>, vector<1x128xf32>
    tpu.vector_store %arg11[%c56, %c0_55], %60 {strides = array<i32>} : memref<64x128xf32, #tpu.memory_space<vmem>>, vector<1x128xf32>,
    %c1_56 = arith.constant 1 : index
    %c7_57 = arith.constant 7 : index
    %62 = memref.load %arg0[%c1_56, %c7_57] : memref<2x8xi32, #tpu.memory_space<smem>>
    %63 = arith.index_cast %62 : i32 to index
    %c0_58 = arith.constant 0 : index
    %64 = vector.load %arg1[%63, %c0_58] : memref<56x128xf32, #tpu.memory_space<vmem>>, vector<1x128xf32>
    %c57 = arith.constant 57 : index
    %c0_59 = arith.constant 0 : index
    %65 = vector.load %arg11[%c57, %c0_59] : memref<64x128xf32, #tpu.memory_space<vmem>>, vector<1x128xf32>
    tpu.vector_store %arg11[%c57, %c0_59], %64 {strides = array<i32>} : memref<64x128xf32, #tpu.memory_space<vmem>>, vector<1x128xf32>,
    %c0_60 = arith.constant 0 : index
    %c0_61 = arith.constant 0 : index
    %66 = vector.load %arg11[%c0_60, %c0_61] : memref<64x128xf32, #tpu.memory_space<vmem>>, vector<64x128xf32>
    %67 = arith.truncf %66 : vector<64x128xf32> to vector<64x128xbf16>
    %c0_62 = arith.constant 0 : index
    %c0_63 = arith.constant 0 : index
    %68 = vector.load %arg2[%c0_62, %c0_63] : memref<128x512xbf16, #tpu.memory_space<vmem>>, vector<128x512xbf16>
    %cst_64 = arith.constant dense<0.000000e+00> : vector<64x512xf32>
    %69 = tpu.matmul %67, %68, %cst_64 {dimension_numbers = #tpu.dot_dimension_numbers<[1], [0], [0], [1], [0, 0, 1, 1], [], []>} : vector<64x128xbf16>, vector<128x512xbf16>, vector<64x512xf32> -> vector<64x512xf32>
    %c0_65 = arith.constant 0 : index
    %c0_66 = arith.constant 0 : index
    %70 = vector.load %arg4[%c0_65, %c0_66] : memref<1x512xf32, #tpu.memory_space<vmem>>, vector<1x512xf32>
    %71 = vector.broadcast %70 : vector<1x512xf32> to vector<64x512xf32>
    %72 = arith.addf %69, %71 : vector<64x512xf32>
    %c0_67 = arith.constant 0 : index
    %c0_68 = arith.constant 0 : index
    %73 = vector.load %arg14[%c0_67, %c0_68] : memref<64x512xf32, #tpu.memory_space<vmem>>, vector<64x512xf32>
    tpu.vector_store %arg14[%c0_67, %c0_68], %72 {strides = array<i32>} : memref<64x512xf32, #tpu.memory_space<vmem>>, vector<64x512xf32>,
    %c0_69 = arith.constant 0 : index
    %c0_70 = arith.constant 0 : index
    %74 = vector.load %arg3[%c0_69, %c0_70] : memref<128x512xbf16, #tpu.memory_space<vmem>>, vector<128x512xbf16>
    %cst_71 = arith.constant 0.000000e+00 : f32
    %75 = vector.broadcast %cst_71 : f32 to vector<8x128xf32>
    %cst_72 = arith.constant 0.000000e+00 : f32
    %76 = vector.broadcast %cst_72 : f32 to vector<8x128xf32>
    %c0_73 = arith.constant 0 : index
    %c0_74 = arith.constant 0 : index
    %77 = vector.load %arg14[%c0_73, %c0_74] : memref<64x512xf32, #tpu.memory_space<vmem>>, vector<8x512xf32>
    %78 = arith.truncf %75 : vector<8x128xf32> to vector<8x128xbf16>
    %cst_75 = arith.constant dense<0.000000e+00> : vector<8x512xf32>
    %79 = tpu.matmul %78, %74, %cst_75 {dimension_numbers = #tpu.dot_dimension_numbers<[1], [0], [0], [1], [0, 0, 1, 1], [], []>} : vector<8x128xbf16>, vector<128x512xbf16>, vector<8x512xf32> -> vector<8x512xf32>
    %80 = arith.addf %77, %79 : vector<8x512xf32>
    %81 = vector.extract_strided_slice %80 {offsets = [0, 0], sizes = [8, 384], strides = [1, 1]} : vector<8x512xf32> to vector<8x384xf32>
    %82 = arith.negf %81 : vector<8x384xf32>
    %83 = math.exp %82 : vector<8x384xf32>
    %cst_76 = arith.constant 1.000000e+00 : f32
    %84 = vector.broadcast %cst_76 : f32 to vector<8x384xf32>
    %85 = arith.addf %84, %83 : vector<8x384xf32>
    %86 = arith.divf %84, %85 : vector<8x384xf32>
    %87 = vector.extract_strided_slice %86 {offsets = [0, 0], sizes = [8, 128], strides = [1, 1]} : vector<8x384xf32> to vector<8x128xf32>
    %88 = vector.extract_strided_slice %86 {offsets = [0, 128], sizes = [8, 128], strides = [1, 1]} : vector<8x384xf32> to vector<8x128xf32>
    %89 = vector.extract_strided_slice %86 {offsets = [0, 256], sizes = [8, 128], strides = [1, 1]} : vector<8x384xf32> to vector<8x128xf32>
    %90 = vector.extract_strided_slice %80 {offsets = [0, 384], sizes = [8, 128], strides = [1, 1]} : vector<8x512xf32> to vector<8x128xf32>
    %91 = math.tanh %90 : vector<8x128xf32>
    %92 = arith.mulf %88, %76 : vector<8x128xf32>
    %93 = arith.mulf %87, %91 : vector<8x128xf32>
    %94 = arith.addf %92, %93 : vector<8x128xf32>
    %95 = math.tanh %94 : vector<8x128xf32>
    %96 = arith.mulf %89, %95 : vector<8x128xf32>
    %c0_77 = arith.constant 0 : index
    %c0_78 = arith.constant 0 : index
    %97 = vector.load %arg12[%c0_77, %c0_78] : memref<64x128xf32, #tpu.memory_space<vmem>>, vector<8x128xf32>
    tpu.vector_store %arg12[%c0_77, %c0_78], %96 {strides = array<i32>} : memref<64x128xf32, #tpu.memory_space<vmem>>, vector<8x128xf32>,
    %c8_79 = arith.constant 8 : index
    %c0_80 = arith.constant 0 : index
    %98 = vector.load %arg14[%c8_79, %c0_80] : memref<64x512xf32, #tpu.memory_space<vmem>>, vector<8x512xf32>
    %99 = arith.truncf %96 : vector<8x128xf32> to vector<8x128xbf16>
    %cst_81 = arith.constant dense<0.000000e+00> : vector<8x512xf32>
    %100 = tpu.matmul %99, %74, %cst_81 {dimension_numbers = #tpu.dot_dimension_numbers<[1], [0], [0], [1], [0, 0, 1, 1], [], []>} : vector<8x128xbf16>, vector<128x512xbf16>, vector<8x512xf32> -> vector<8x512xf32>
    %101 = arith.addf %98, %100 : vector<8x512xf32>
    %102 = vector.extract_strided_slice %101 {offsets = [0, 0], sizes = [8, 384], strides = [1, 1]} : vector<8x512xf32> to vector<8x384xf32>
    %103 = arith.negf %102 : vector<8x384xf32>
    %104 = math.exp %103 : vector<8x384xf32>
    %cst_82 = arith.constant 1.000000e+00 : f32
    %105 = vector.broadcast %cst_82 : f32 to vector<8x384xf32>
    %106 = arith.addf %105, %104 : vector<8x384xf32>
    %107 = arith.divf %105, %106 : vector<8x384xf32>
    %108 = vector.extract_strided_slice %107 {offsets = [0, 0], sizes = [8, 128], strides = [1, 1]} : vector<8x384xf32> to vector<8x128xf32>
    %109 = vector.extract_strided_slice %107 {offsets = [0, 128], sizes = [8, 128], strides = [1, 1]} : vector<8x384xf32> to vector<8x128xf32>
    %110 = vector.extract_strided_slice %107 {offsets = [0, 256], sizes = [8, 128], strides = [1, 1]} : vector<8x384xf32> to vector<8x128xf32>
    %111 = vector.extract_strided_slice %101 {offsets = [0, 384], sizes = [8, 128], strides = [1, 1]} : vector<8x512xf32> to vector<8x128xf32>
    %112 = math.tanh %111 : vector<8x128xf32>
    %113 = arith.mulf %109, %94 : vector<8x128xf32>
    %114 = arith.mulf %108, %112 : vector<8x128xf32>
    %115 = arith.addf %113, %114 : vector<8x128xf32>
    %116 = math.tanh %115 : vector<8x128xf32>
    %117 = arith.mulf %110, %116 : vector<8x128xf32>
    %c8_83 = arith.constant 8 : index
    %c0_84 = arith.constant 0 : index
    %118 = vector.load %arg12[%c8_83, %c0_84] : memref<64x128xf32, #tpu.memory_space<vmem>>, vector<8x128xf32>
    tpu.vector_store %arg12[%c8_83, %c0_84], %117 {strides = array<i32>} : memref<64x128xf32, #tpu.memory_space<vmem>>, vector<8x128xf32>,
    %c16_85 = arith.constant 16 : index
    %c0_86 = arith.constant 0 : index
    %119 = vector.load %arg14[%c16_85, %c0_86] : memref<64x512xf32, #tpu.memory_space<vmem>>, vector<8x512xf32>
    %120 = arith.truncf %117 : vector<8x128xf32> to vector<8x128xbf16>
    %cst_87 = arith.constant dense<0.000000e+00> : vector<8x512xf32>
    %121 = tpu.matmul %120, %74, %cst_87 {dimension_numbers = #tpu.dot_dimension_numbers<[1], [0], [0], [1], [0, 0, 1, 1], [], []>} : vector<8x128xbf16>, vector<128x512xbf16>, vector<8x512xf32> -> vector<8x512xf32>
    %122 = arith.addf %119, %121 : vector<8x512xf32>
    %123 = vector.extract_strided_slice %122 {offsets = [0, 0], sizes = [8, 384], strides = [1, 1]} : vector<8x512xf32> to vector<8x384xf32>
    %124 = arith.negf %123 : vector<8x384xf32>
    %125 = math.exp %124 : vector<8x384xf32>
    %cst_88 = arith.constant 1.000000e+00 : f32
    %126 = vector.broadcast %cst_88 : f32 to vector<8x384xf32>
    %127 = arith.addf %126, %125 : vector<8x384xf32>
    %128 = arith.divf %126, %127 : vector<8x384xf32>
    %129 = vector.extract_strided_slice %128 {offsets = [0, 0], sizes = [8, 128], strides = [1, 1]} : vector<8x384xf32> to vector<8x128xf32>
    %130 = vector.extract_strided_slice %128 {offsets = [0, 128], sizes = [8, 128], strides = [1, 1]} : vector<8x384xf32> to vector<8x128xf32>
    %131 = vector.extract_strided_slice %128 {offsets = [0, 256], sizes = [8, 128], strides = [1, 1]} : vector<8x384xf32> to vector<8x128xf32>
    %132 = vector.extract_strided_slice %122 {offsets = [0, 384], sizes = [8, 128], strides = [1, 1]} : vector<8x512xf32> to vector<8x128xf32>
    %133 = math.tanh %132 : vector<8x128xf32>
    %134 = arith.mulf %130, %115 : vector<8x128xf32>
    %135 = arith.mulf %129, %133 : vector<8x128xf32>
    %136 = arith.addf %134, %135 : vector<8x128xf32>
    %137 = math.tanh %136 : vector<8x128xf32>
    %138 = arith.mulf %131, %137 : vector<8x128xf32>
    %c16_89 = arith.constant 16 : index
    %c0_90 = arith.constant 0 : index
    %139 = vector.load %arg12[%c16_89, %c0_90] : memref<64x128xf32, #tpu.memory_space<vmem>>, vector<8x128xf32>
    tpu.vector_store %arg12[%c16_89, %c0_90], %138 {strides = array<i32>} : memref<64x128xf32, #tpu.memory_space<vmem>>, vector<8x128xf32>,
    %c24_91 = arith.constant 24 : index
    %c0_92 = arith.constant 0 : index
    %140 = vector.load %arg14[%c24_91, %c0_92] : memref<64x512xf32, #tpu.memory_space<vmem>>, vector<8x512xf32>
    %141 = arith.truncf %138 : vector<8x128xf32> to vector<8x128xbf16>
    %cst_93 = arith.constant dense<0.000000e+00> : vector<8x512xf32>
    %142 = tpu.matmul %141, %74, %cst_93 {dimension_numbers = #tpu.dot_dimension_numbers<[1], [0], [0], [1], [0, 0, 1, 1], [], []>} : vector<8x128xbf16>, vector<128x512xbf16>, vector<8x512xf32> -> vector<8x512xf32>
    %143 = arith.addf %140, %142 : vector<8x512xf32>
    %144 = vector.extract_strided_slice %143 {offsets = [0, 0], sizes = [8, 384], strides = [1, 1]} : vector<8x512xf32> to vector<8x384xf32>
    %145 = arith.negf %144 : vector<8x384xf32>
    %146 = math.exp %145 : vector<8x384xf32>
    %cst_94 = arith.constant 1.000000e+00 : f32
    %147 = vector.broadcast %cst_94 : f32 to vector<8x384xf32>
    %148 = arith.addf %147, %146 : vector<8x384xf32>
    %149 = arith.divf %147, %148 : vector<8x384xf32>
    %150 = vector.extract_strided_slice %149 {offsets = [0, 0], sizes = [8, 128], strides = [1, 1]} : vector<8x384xf32> to vector<8x128xf32>
    %151 = vector.extract_strided_slice %149 {offsets = [0, 128], sizes = [8, 128], strides = [1, 1]} : vector<8x384xf32> to vector<8x128xf32>
    %152 = vector.extract_strided_slice %149 {offsets = [0, 256], sizes = [8, 128], strides = [1, 1]} : vector<8x384xf32> to vector<8x128xf32>
    %153 = vector.extract_strided_slice %143 {offsets = [0, 384], sizes = [8, 128], strides = [1, 1]} : vector<8x512xf32> to vector<8x128xf32>
    %154 = math.tanh %153 : vector<8x128xf32>
    %155 = arith.mulf %151, %136 : vector<8x128xf32>
    %156 = arith.mulf %150, %154 : vector<8x128xf32>
    %157 = arith.addf %155, %156 : vector<8x128xf32>
    %158 = math.tanh %157 : vector<8x128xf32>
    %159 = arith.mulf %152, %158 : vector<8x128xf32>
    %c24_95 = arith.constant 24 : index
    %c0_96 = arith.constant 0 : index
    %160 = vector.load %arg12[%c24_95, %c0_96] : memref<64x128xf32, #tpu.memory_space<vmem>>, vector<8x128xf32>
    tpu.vector_store %arg12[%c24_95, %c0_96], %159 {strides = array<i32>} : memref<64x128xf32, #tpu.memory_space<vmem>>, vector<8x128xf32>,
    %c32_97 = arith.constant 32 : index
    %c0_98 = arith.constant 0 : index
    %161 = vector.load %arg14[%c32_97, %c0_98] : memref<64x512xf32, #tpu.memory_space<vmem>>, vector<8x512xf32>
    %162 = arith.truncf %159 : vector<8x128xf32> to vector<8x128xbf16>
    %cst_99 = arith.constant dense<0.000000e+00> : vector<8x512xf32>
    %163 = tpu.matmul %162, %74, %cst_99 {dimension_numbers = #tpu.dot_dimension_numbers<[1], [0], [0], [1], [0, 0, 1, 1], [], []>} : vector<8x128xbf16>, vector<128x512xbf16>, vector<8x512xf32> -> vector<8x512xf32>
    %164 = arith.addf %161, %163 : vector<8x512xf32>
    %165 = vector.extract_strided_slice %164 {offsets = [0, 0], sizes = [8, 384], strides = [1, 1]} : vector<8x512xf32> to vector<8x384xf32>
    %166 = arith.negf %165 : vector<8x384xf32>
    %167 = math.exp %166 : vector<8x384xf32>
    %cst_100 = arith.constant 1.000000e+00 : f32
    %168 = vector.broadcast %cst_100 : f32 to vector<8x384xf32>
    %169 = arith.addf %168, %167 : vector<8x384xf32>
    %170 = arith.divf %168, %169 : vector<8x384xf32>
    %171 = vector.extract_strided_slice %170 {offsets = [0, 0], sizes = [8, 128], strides = [1, 1]} : vector<8x384xf32> to vector<8x128xf32>
    %172 = vector.extract_strided_slice %170 {offsets = [0, 128], sizes = [8, 128], strides = [1, 1]} : vector<8x384xf32> to vector<8x128xf32>
    %173 = vector.extract_strided_slice %170 {offsets = [0, 256], sizes = [8, 128], strides = [1, 1]} : vector<8x384xf32> to vector<8x128xf32>
    %174 = vector.extract_strided_slice %164 {offsets = [0, 384], sizes = [8, 128], strides = [1, 1]} : vector<8x512xf32> to vector<8x128xf32>
    %175 = math.tanh %174 : vector<8x128xf32>
    %176 = arith.mulf %172, %157 : vector<8x128xf32>
    %177 = arith.mulf %171, %175 : vector<8x128xf32>
    %178 = arith.addf %176, %177 : vector<8x128xf32>
    %179 = math.tanh %178 : vector<8x128xf32>
    %180 = arith.mulf %173, %179 : vector<8x128xf32>
    %c32_101 = arith.constant 32 : index
    %c0_102 = arith.constant 0 : index
    %181 = vector.load %arg12[%c32_101, %c0_102] : memref<64x128xf32, #tpu.memory_space<vmem>>, vector<8x128xf32>
    tpu.vector_store %arg12[%c32_101, %c0_102], %180 {strides = array<i32>} : memref<64x128xf32, #tpu.memory_space<vmem>>, vector<8x128xf32>,
    %c40_103 = arith.constant 40 : index
    %c0_104 = arith.constant 0 : index
    %182 = vector.load %arg14[%c40_103, %c0_104] : memref<64x512xf32, #tpu.memory_space<vmem>>, vector<8x512xf32>
    %183 = arith.truncf %180 : vector<8x128xf32> to vector<8x128xbf16>
    %cst_105 = arith.constant dense<0.000000e+00> : vector<8x512xf32>
    %184 = tpu.matmul %183, %74, %cst_105 {dimension_numbers = #tpu.dot_dimension_numbers<[1], [0], [0], [1], [0, 0, 1, 1], [], []>} : vector<8x128xbf16>, vector<128x512xbf16>, vector<8x512xf32> -> vector<8x512xf32>
    %185 = arith.addf %182, %184 : vector<8x512xf32>
    %186 = vector.extract_strided_slice %185 {offsets = [0, 0], sizes = [8, 384], strides = [1, 1]} : vector<8x512xf32> to vector<8x384xf32>
    %187 = arith.negf %186 : vector<8x384xf32>
    %188 = math.exp %187 : vector<8x384xf32>
    %cst_106 = arith.constant 1.000000e+00 : f32
    %189 = vector.broadcast %cst_106 : f32 to vector<8x384xf32>
    %190 = arith.addf %189, %188 : vector<8x384xf32>
    %191 = arith.divf %189, %190 : vector<8x384xf32>
    %192 = vector.extract_strided_slice %191 {offsets = [0, 0], sizes = [8, 128], strides = [1, 1]} : vector<8x384xf32> to vector<8x128xf32>
    %193 = vector.extract_strided_slice %191 {offsets = [0, 128], sizes = [8, 128], strides = [1, 1]} : vector<8x384xf32> to vector<8x128xf32>
    %194 = vector.extract_strided_slice %191 {offsets = [0, 256], sizes = [8, 128], strides = [1, 1]} : vector<8x384xf32> to vector<8x128xf32>
    %195 = vector.extract_strided_slice %185 {offsets = [0, 384], sizes = [8, 128], strides = [1, 1]} : vector<8x512xf32> to vector<8x128xf32>
    %196 = math.tanh %195 : vector<8x128xf32>
    %197 = arith.mulf %193, %178 : vector<8x128xf32>
    %198 = arith.mulf %192, %196 : vector<8x128xf32>
    %199 = arith.addf %197, %198 : vector<8x128xf32>
    %200 = math.tanh %199 : vector<8x128xf32>
    %201 = arith.mulf %194, %200 : vector<8x128xf32>
    %c40_107 = arith.constant 40 : index
    %c0_108 = arith.constant 0 : index
    %202 = vector.load %arg12[%c40_107, %c0_108] : memref<64x128xf32, #tpu.memory_space<vmem>>, vector<8x128xf32>
    tpu.vector_store %arg12[%c40_107, %c0_108], %201 {strides = array<i32>} : memref<64x128xf32, #tpu.memory_space<vmem>>, vector<8x128xf32>,
    %c48_109 = arith.constant 48 : index
    %c0_110 = arith.constant 0 : index
    %203 = vector.load %arg14[%c48_109, %c0_110] : memref<64x512xf32, #tpu.memory_space<vmem>>, vector<8x512xf32>
    %204 = arith.truncf %201 : vector<8x128xf32> to vector<8x128xbf16>
    %cst_111 = arith.constant dense<0.000000e+00> : vector<8x512xf32>
    %205 = tpu.matmul %204, %74, %cst_111 {dimension_numbers = #tpu.dot_dimension_numbers<[1], [0], [0], [1], [0, 0, 1, 1], [], []>} : vector<8x128xbf16>, vector<128x512xbf16>, vector<8x512xf32> -> vector<8x512xf32>
    %206 = arith.addf %203, %205 : vector<8x512xf32>
    %207 = vector.extract_strided_slice %206 {offsets = [0, 0], sizes = [8, 384], strides = [1, 1]} : vector<8x512xf32> to vector<8x384xf32>
    %208 = arith.negf %207 : vector<8x384xf32>
    %209 = math.exp %208 : vector<8x384xf32>
    %cst_112 = arith.constant 1.000000e+00 : f32
    %210 = vector.broadcast %cst_112 : f32 to vector<8x384xf32>
    %211 = arith.addf %210, %209 : vector<8x384xf32>
    %212 = arith.divf %210, %211 : vector<8x384xf32>
    %213 = vector.extract_strided_slice %212 {offsets = [0, 0], sizes = [8, 128], strides = [1, 1]} : vector<8x384xf32> to vector<8x128xf32>
    %214 = vector.extract_strided_slice %212 {offsets = [0, 128], sizes = [8, 128], strides = [1, 1]} : vector<8x384xf32> to vector<8x128xf32>
    %215 = vector.extract_strided_slice %212 {offsets = [0, 256], sizes = [8, 128], strides = [1, 1]} : vector<8x384xf32> to vector<8x128xf32>
    %216 = vector.extract_strided_slice %206 {offsets = [0, 384], sizes = [8, 128], strides = [1, 1]} : vector<8x512xf32> to vector<8x128xf32>
    %217 = math.tanh %216 : vector<8x128xf32>
    %218 = arith.mulf %214, %199 : vector<8x128xf32>
    %219 = arith.mulf %213, %217 : vector<8x128xf32>
    %220 = arith.addf %218, %219 : vector<8x128xf32>
    %221 = math.tanh %220 : vector<8x128xf32>
    %222 = arith.mulf %215, %221 : vector<8x128xf32>
    %c48_113 = arith.constant 48 : index
    %c0_114 = arith.constant 0 : index
    %223 = vector.load %arg12[%c48_113, %c0_114] : memref<64x128xf32, #tpu.memory_space<vmem>>, vector<8x128xf32>
    tpu.vector_store %arg12[%c48_113, %c0_114], %222 {strides = array<i32>} : memref<64x128xf32, #tpu.memory_space<vmem>>, vector<8x128xf32>,
    %c56_115 = arith.constant 56 : index
    %c0_116 = arith.constant 0 : index
    %224 = vector.load %arg14[%c56_115, %c0_116] : memref<64x512xf32, #tpu.memory_space<vmem>>, vector<8x512xf32>
    %225 = arith.truncf %222 : vector<8x128xf32> to vector<8x128xbf16>
    %cst_117 = arith.constant dense<0.000000e+00> : vector<8x512xf32>
    %226 = tpu.matmul %225, %74, %cst_117 {dimension_numbers = #tpu.dot_dimension_numbers<[1], [0], [0], [1], [0, 0, 1, 1], [], []>} : vector<8x128xbf16>, vector<128x512xbf16>, vector<8x512xf32> -> vector<8x512xf32>
    %227 = arith.addf %224, %226 : vector<8x512xf32>
    %228 = vector.extract_strided_slice %227 {offsets = [0, 0], sizes = [8, 384], strides = [1, 1]} : vector<8x512xf32> to vector<8x384xf32>
    %229 = arith.negf %228 : vector<8x384xf32>
    %230 = math.exp %229 : vector<8x384xf32>
    %cst_118 = arith.constant 1.000000e+00 : f32
    %231 = vector.broadcast %cst_118 : f32 to vector<8x384xf32>
    %232 = arith.addf %231, %230 : vector<8x384xf32>
    %233 = arith.divf %231, %232 : vector<8x384xf32>
    %234 = vector.extract_strided_slice %233 {offsets = [0, 0], sizes = [8, 128], strides = [1, 1]} : vector<8x384xf32> to vector<8x128xf32>
    %235 = vector.extract_strided_slice %233 {offsets = [0, 128], sizes = [8, 128], strides = [1, 1]} : vector<8x384xf32> to vector<8x128xf32>
    %236 = vector.extract_strided_slice %233 {offsets = [0, 256], sizes = [8, 128], strides = [1, 1]} : vector<8x384xf32> to vector<8x128xf32>
    %237 = vector.extract_strided_slice %227 {offsets = [0, 384], sizes = [8, 128], strides = [1, 1]} : vector<8x512xf32> to vector<8x128xf32>
    %238 = math.tanh %237 : vector<8x128xf32>
    %239 = arith.mulf %235, %220 : vector<8x128xf32>
    %240 = arith.mulf %234, %238 : vector<8x128xf32>
    %241 = arith.addf %239, %240 : vector<8x128xf32>
    %242 = math.tanh %241 : vector<8x128xf32>
    %243 = arith.mulf %236, %242 : vector<8x128xf32>
    %c56_119 = arith.constant 56 : index
    %c0_120 = arith.constant 0 : index
    %244 = vector.load %arg12[%c56_119, %c0_120] : memref<64x128xf32, #tpu.memory_space<vmem>>, vector<8x128xf32>
    tpu.vector_store %arg12[%c56_119, %c0_120], %243 {strides = array<i32>} : memref<64x128xf32, #tpu.memory_space<vmem>>, vector<8x128xf32>,
    %c0_121 = arith.constant 0 : index
    %c0_122 = arith.constant 0 : index
    %245 = vector.load %arg12[%c0_121, %c0_122] : memref<64x128xf32, #tpu.memory_space<vmem>>, vector<64x128xf32>
    %246 = arith.truncf %245 : vector<64x128xf32> to vector<64x128xbf16>
    %c0_123 = arith.constant 0 : index
    %c0_124 = arith.constant 0 : index
    %247 = vector.load %arg5[%c0_123, %c0_124] : memref<128x512xbf16, #tpu.memory_space<vmem>>, vector<128x512xbf16>
    %cst_125 = arith.constant dense<0.000000e+00> : vector<64x512xf32>
    %248 = tpu.matmul %246, %247, %cst_125 {dimension_numbers = #tpu.dot_dimension_numbers<[1], [0], [0], [1], [0, 0, 1, 1], [], []>} : vector<64x128xbf16>, vector<128x512xbf16>, vector<64x512xf32> -> vector<64x512xf32>
    %c0_126 = arith.constant 0 : index
    %c0_127 = arith.constant 0 : index
    %249 = vector.load %arg7[%c0_126, %c0_127] : memref<1x512xf32, #tpu.memory_space<vmem>>, vector<1x512xf32>
    %250 = vector.broadcast %249 : vector<1x512xf32> to vector<64x512xf32>
    %251 = arith.addf %248, %250 : vector<64x512xf32>
    %c0_128 = arith.constant 0 : index
    %c0_129 = arith.constant 0 : index
    %252 = vector.load %arg14[%c0_128, %c0_129] : memref<64x512xf32, #tpu.memory_space<vmem>>, vector<64x512xf32>
    tpu.vector_store %arg14[%c0_128, %c0_129], %251 {strides = array<i32>} : memref<64x512xf32, #tpu.memory_space<vmem>>, vector<64x512xf32>,
    %c0_130 = arith.constant 0 : index
    %c0_131 = arith.constant 0 : index
    %253 = vector.load %arg6[%c0_130, %c0_131] : memref<128x512xbf16, #tpu.memory_space<vmem>>, vector<128x512xbf16>
    %cst_132 = arith.constant 0.000000e+00 : f32
    %254 = vector.broadcast %cst_132 : f32 to vector<8x128xf32>
    %cst_133 = arith.constant 0.000000e+00 : f32
    %255 = vector.broadcast %cst_133 : f32 to vector<8x128xf32>
    %c0_134 = arith.constant 0 : index
    %c0_135 = arith.constant 0 : index
    %256 = vector.load %arg14[%c0_134, %c0_135] : memref<64x512xf32, #tpu.memory_space<vmem>>, vector<8x512xf32>
    %257 = arith.truncf %254 : vector<8x128xf32> to vector<8x128xbf16>
    %cst_136 = arith.constant dense<0.000000e+00> : vector<8x512xf32>
    %258 = tpu.matmul %257, %253, %cst_136 {dimension_numbers = #tpu.dot_dimension_numbers<[1], [0], [0], [1], [0, 0, 1, 1], [], []>} : vector<8x128xbf16>, vector<128x512xbf16>, vector<8x512xf32> -> vector<8x512xf32>
    %259 = arith.addf %256, %258 : vector<8x512xf32>
    %260 = vector.extract_strided_slice %259 {offsets = [0, 0], sizes = [8, 384], strides = [1, 1]} : vector<8x512xf32> to vector<8x384xf32>
    %261 = arith.negf %260 : vector<8x384xf32>
    %262 = math.exp %261 : vector<8x384xf32>
    %cst_137 = arith.constant 1.000000e+00 : f32
    %263 = vector.broadcast %cst_137 : f32 to vector<8x384xf32>
    %264 = arith.addf %263, %262 : vector<8x384xf32>
    %265 = arith.divf %263, %264 : vector<8x384xf32>
    %266 = vector.extract_strided_slice %265 {offsets = [0, 0], sizes = [8, 128], strides = [1, 1]} : vector<8x384xf32> to vector<8x128xf32>
    %267 = vector.extract_strided_slice %265 {offsets = [0, 128], sizes = [8, 128], strides = [1, 1]} : vector<8x384xf32> to vector<8x128xf32>
    %268 = vector.extract_strided_slice %265 {offsets = [0, 256], sizes = [8, 128], strides = [1, 1]} : vector<8x384xf32> to vector<8x128xf32>
    %269 = vector.extract_strided_slice %259 {offsets = [0, 384], sizes = [8, 128], strides = [1, 1]} : vector<8x512xf32> to vector<8x128xf32>
    %270 = math.tanh %269 : vector<8x128xf32>
    %271 = arith.mulf %267, %255 : vector<8x128xf32>
    %272 = arith.mulf %266, %270 : vector<8x128xf32>
    %273 = arith.addf %271, %272 : vector<8x128xf32>
    %274 = math.tanh %273 : vector<8x128xf32>
    %275 = arith.mulf %268, %274 : vector<8x128xf32>
    %c0_138 = arith.constant 0 : index
    %c0_139 = arith.constant 0 : index
    %276 = vector.load %arg13[%c0_138, %c0_139] : memref<64x128xf32, #tpu.memory_space<vmem>>, vector<8x128xf32>
    tpu.vector_store %arg13[%c0_138, %c0_139], %275 {strides = array<i32>} : memref<64x128xf32, #tpu.memory_space<vmem>>, vector<8x128xf32>,
    %c8_140 = arith.constant 8 : index
    %c0_141 = arith.constant 0 : index
    %277 = vector.load %arg14[%c8_140, %c0_141] : memref<64x512xf32, #tpu.memory_space<vmem>>, vector<8x512xf32>
    %278 = arith.truncf %275 : vector<8x128xf32> to vector<8x128xbf16>
    %cst_142 = arith.constant dense<0.000000e+00> : vector<8x512xf32>
    %279 = tpu.matmul %278, %253, %cst_142 {dimension_numbers = #tpu.dot_dimension_numbers<[1], [0], [0], [1], [0, 0, 1, 1], [], []>} : vector<8x128xbf16>, vector<128x512xbf16>, vector<8x512xf32> -> vector<8x512xf32>
    %280 = arith.addf %277, %279 : vector<8x512xf32>
    %281 = vector.extract_strided_slice %280 {offsets = [0, 0], sizes = [8, 384], strides = [1, 1]} : vector<8x512xf32> to vector<8x384xf32>
    %282 = arith.negf %281 : vector<8x384xf32>
    %283 = math.exp %282 : vector<8x384xf32>
    %cst_143 = arith.constant 1.000000e+00 : f32
    %284 = vector.broadcast %cst_143 : f32 to vector<8x384xf32>
    %285 = arith.addf %284, %283 : vector<8x384xf32>
    %286 = arith.divf %284, %285 : vector<8x384xf32>
    %287 = vector.extract_strided_slice %286 {offsets = [0, 0], sizes = [8, 128], strides = [1, 1]} : vector<8x384xf32> to vector<8x128xf32>
    %288 = vector.extract_strided_slice %286 {offsets = [0, 128], sizes = [8, 128], strides = [1, 1]} : vector<8x384xf32> to vector<8x128xf32>
    %289 = vector.extract_strided_slice %286 {offsets = [0, 256], sizes = [8, 128], strides = [1, 1]} : vector<8x384xf32> to vector<8x128xf32>
    %290 = vector.extract_strided_slice %280 {offsets = [0, 384], sizes = [8, 128], strides = [1, 1]} : vector<8x512xf32> to vector<8x128xf32>
    %291 = math.tanh %290 : vector<8x128xf32>
    %292 = arith.mulf %288, %273 : vector<8x128xf32>
    %293 = arith.mulf %287, %291 : vector<8x128xf32>
    %294 = arith.addf %292, %293 : vector<8x128xf32>
    %295 = math.tanh %294 : vector<8x128xf32>
    %296 = arith.mulf %289, %295 : vector<8x128xf32>
    %c8_144 = arith.constant 8 : index
    %c0_145 = arith.constant 0 : index
    %297 = vector.load %arg13[%c8_144, %c0_145] : memref<64x128xf32, #tpu.memory_space<vmem>>, vector<8x128xf32>
    tpu.vector_store %arg13[%c8_144, %c0_145], %296 {strides = array<i32>} : memref<64x128xf32, #tpu.memory_space<vmem>>, vector<8x128xf32>,
    %c16_146 = arith.constant 16 : index
    %c0_147 = arith.constant 0 : index
    %298 = vector.load %arg14[%c16_146, %c0_147] : memref<64x512xf32, #tpu.memory_space<vmem>>, vector<8x512xf32>
    %299 = arith.truncf %296 : vector<8x128xf32> to vector<8x128xbf16>
    %cst_148 = arith.constant dense<0.000000e+00> : vector<8x512xf32>
    %300 = tpu.matmul %299, %253, %cst_148 {dimension_numbers = #tpu.dot_dimension_numbers<[1], [0], [0], [1], [0, 0, 1, 1], [], []>} : vector<8x128xbf16>, vector<128x512xbf16>, vector<8x512xf32> -> vector<8x512xf32>
    %301 = arith.addf %298, %300 : vector<8x512xf32>
    %302 = vector.extract_strided_slice %301 {offsets = [0, 0], sizes = [8, 384], strides = [1, 1]} : vector<8x512xf32> to vector<8x384xf32>
    %303 = arith.negf %302 : vector<8x384xf32>
    %304 = math.exp %303 : vector<8x384xf32>
    %cst_149 = arith.constant 1.000000e+00 : f32
    %305 = vector.broadcast %cst_149 : f32 to vector<8x384xf32>
    %306 = arith.addf %305, %304 : vector<8x384xf32>
    %307 = arith.divf %305, %306 : vector<8x384xf32>
    %308 = vector.extract_strided_slice %307 {offsets = [0, 0], sizes = [8, 128], strides = [1, 1]} : vector<8x384xf32> to vector<8x128xf32>
    %309 = vector.extract_strided_slice %307 {offsets = [0, 128], sizes = [8, 128], strides = [1, 1]} : vector<8x384xf32> to vector<8x128xf32>
    %310 = vector.extract_strided_slice %307 {offsets = [0, 256], sizes = [8, 128], strides = [1, 1]} : vector<8x384xf32> to vector<8x128xf32>
    %311 = vector.extract_strided_slice %301 {offsets = [0, 384], sizes = [8, 128], strides = [1, 1]} : vector<8x512xf32> to vector<8x128xf32>
    %312 = math.tanh %311 : vector<8x128xf32>
    %313 = arith.mulf %309, %294 : vector<8x128xf32>
    %314 = arith.mulf %308, %312 : vector<8x128xf32>
    %315 = arith.addf %313, %314 : vector<8x128xf32>
    %316 = math.tanh %315 : vector<8x128xf32>
    %317 = arith.mulf %310, %316 : vector<8x128xf32>
    %c16_150 = arith.constant 16 : index
    %c0_151 = arith.constant 0 : index
    %318 = vector.load %arg13[%c16_150, %c0_151] : memref<64x128xf32, #tpu.memory_space<vmem>>, vector<8x128xf32>
    tpu.vector_store %arg13[%c16_150, %c0_151], %317 {strides = array<i32>} : memref<64x128xf32, #tpu.memory_space<vmem>>, vector<8x128xf32>,
    %c24_152 = arith.constant 24 : index
    %c0_153 = arith.constant 0 : index
    %319 = vector.load %arg14[%c24_152, %c0_153] : memref<64x512xf32, #tpu.memory_space<vmem>>, vector<8x512xf32>
    %320 = arith.truncf %317 : vector<8x128xf32> to vector<8x128xbf16>
    %cst_154 = arith.constant dense<0.000000e+00> : vector<8x512xf32>
    %321 = tpu.matmul %320, %253, %cst_154 {dimension_numbers = #tpu.dot_dimension_numbers<[1], [0], [0], [1], [0, 0, 1, 1], [], []>} : vector<8x128xbf16>, vector<128x512xbf16>, vector<8x512xf32> -> vector<8x512xf32>
    %322 = arith.addf %319, %321 : vector<8x512xf32>
    %323 = vector.extract_strided_slice %322 {offsets = [0, 0], sizes = [8, 384], strides = [1, 1]} : vector<8x512xf32> to vector<8x384xf32>
    %324 = arith.negf %323 : vector<8x384xf32>
    %325 = math.exp %324 : vector<8x384xf32>
    %cst_155 = arith.constant 1.000000e+00 : f32
    %326 = vector.broadcast %cst_155 : f32 to vector<8x384xf32>
    %327 = arith.addf %326, %325 : vector<8x384xf32>
    %328 = arith.divf %326, %327 : vector<8x384xf32>
    %329 = vector.extract_strided_slice %328 {offsets = [0, 0], sizes = [8, 128], strides = [1, 1]} : vector<8x384xf32> to vector<8x128xf32>
    %330 = vector.extract_strided_slice %328 {offsets = [0, 128], sizes = [8, 128], strides = [1, 1]} : vector<8x384xf32> to vector<8x128xf32>
    %331 = vector.extract_strided_slice %328 {offsets = [0, 256], sizes = [8, 128], strides = [1, 1]} : vector<8x384xf32> to vector<8x128xf32>
    %332 = vector.extract_strided_slice %322 {offsets = [0, 384], sizes = [8, 128], strides = [1, 1]} : vector<8x512xf32> to vector<8x128xf32>
    %333 = math.tanh %332 : vector<8x128xf32>
    %334 = arith.mulf %330, %315 : vector<8x128xf32>
    %335 = arith.mulf %329, %333 : vector<8x128xf32>
    %336 = arith.addf %334, %335 : vector<8x128xf32>
    %337 = math.tanh %336 : vector<8x128xf32>
    %338 = arith.mulf %331, %337 : vector<8x128xf32>
    %c24_156 = arith.constant 24 : index
    %c0_157 = arith.constant 0 : index
    %339 = vector.load %arg13[%c24_156, %c0_157] : memref<64x128xf32, #tpu.memory_space<vmem>>, vector<8x128xf32>
    tpu.vector_store %arg13[%c24_156, %c0_157], %338 {strides = array<i32>} : memref<64x128xf32, #tpu.memory_space<vmem>>, vector<8x128xf32>,
    %c32_158 = arith.constant 32 : index
    %c0_159 = arith.constant 0 : index
    %340 = vector.load %arg14[%c32_158, %c0_159] : memref<64x512xf32, #tpu.memory_space<vmem>>, vector<8x512xf32>
    %341 = arith.truncf %338 : vector<8x128xf32> to vector<8x128xbf16>
    %cst_160 = arith.constant dense<0.000000e+00> : vector<8x512xf32>
    %342 = tpu.matmul %341, %253, %cst_160 {dimension_numbers = #tpu.dot_dimension_numbers<[1], [0], [0], [1], [0, 0, 1, 1], [], []>} : vector<8x128xbf16>, vector<128x512xbf16>, vector<8x512xf32> -> vector<8x512xf32>
    %343 = arith.addf %340, %342 : vector<8x512xf32>
    %344 = vector.extract_strided_slice %343 {offsets = [0, 0], sizes = [8, 384], strides = [1, 1]} : vector<8x512xf32> to vector<8x384xf32>
    %345 = arith.negf %344 : vector<8x384xf32>
    %346 = math.exp %345 : vector<8x384xf32>
    %cst_161 = arith.constant 1.000000e+00 : f32
    %347 = vector.broadcast %cst_161 : f32 to vector<8x384xf32>
    %348 = arith.addf %347, %346 : vector<8x384xf32>
    %349 = arith.divf %347, %348 : vector<8x384xf32>
    %350 = vector.extract_strided_slice %349 {offsets = [0, 0], sizes = [8, 128], strides = [1, 1]} : vector<8x384xf32> to vector<8x128xf32>
    %351 = vector.extract_strided_slice %349 {offsets = [0, 128], sizes = [8, 128], strides = [1, 1]} : vector<8x384xf32> to vector<8x128xf32>
    %352 = vector.extract_strided_slice %349 {offsets = [0, 256], sizes = [8, 128], strides = [1, 1]} : vector<8x384xf32> to vector<8x128xf32>
    %353 = vector.extract_strided_slice %343 {offsets = [0, 384], sizes = [8, 128], strides = [1, 1]} : vector<8x512xf32> to vector<8x128xf32>
    %354 = math.tanh %353 : vector<8x128xf32>
    %355 = arith.mulf %351, %336 : vector<8x128xf32>
    %356 = arith.mulf %350, %354 : vector<8x128xf32>
    %357 = arith.addf %355, %356 : vector<8x128xf32>
    %358 = math.tanh %357 : vector<8x128xf32>
    %359 = arith.mulf %352, %358 : vector<8x128xf32>
    %c32_162 = arith.constant 32 : index
    %c0_163 = arith.constant 0 : index
    %360 = vector.load %arg13[%c32_162, %c0_163] : memref<64x128xf32, #tpu.memory_space<vmem>>, vector<8x128xf32>
    tpu.vector_store %arg13[%c32_162, %c0_163], %359 {strides = array<i32>} : memref<64x128xf32, #tpu.memory_space<vmem>>, vector<8x128xf32>,
    %c40_164 = arith.constant 40 : index
    %c0_165 = arith.constant 0 : index
    %361 = vector.load %arg14[%c40_164, %c0_165] : memref<64x512xf32, #tpu.memory_space<vmem>>, vector<8x512xf32>
    %362 = arith.truncf %359 : vector<8x128xf32> to vector<8x128xbf16>
    %cst_166 = arith.constant dense<0.000000e+00> : vector<8x512xf32>
    %363 = tpu.matmul %362, %253, %cst_166 {dimension_numbers = #tpu.dot_dimension_numbers<[1], [0], [0], [1], [0, 0, 1, 1], [], []>} : vector<8x128xbf16>, vector<128x512xbf16>, vector<8x512xf32> -> vector<8x512xf32>
    %364 = arith.addf %361, %363 : vector<8x512xf32>
    %365 = vector.extract_strided_slice %364 {offsets = [0, 0], sizes = [8, 384], strides = [1, 1]} : vector<8x512xf32> to vector<8x384xf32>
    %366 = arith.negf %365 : vector<8x384xf32>
    %367 = math.exp %366 : vector<8x384xf32>
    %cst_167 = arith.constant 1.000000e+00 : f32
    %368 = vector.broadcast %cst_167 : f32 to vector<8x384xf32>
    %369 = arith.addf %368, %367 : vector<8x384xf32>
    %370 = arith.divf %368, %369 : vector<8x384xf32>
    %371 = vector.extract_strided_slice %370 {offsets = [0, 0], sizes = [8, 128], strides = [1, 1]} : vector<8x384xf32> to vector<8x128xf32>
    %372 = vector.extract_strided_slice %370 {offsets = [0, 128], sizes = [8, 128], strides = [1, 1]} : vector<8x384xf32> to vector<8x128xf32>
    %373 = vector.extract_strided_slice %370 {offsets = [0, 256], sizes = [8, 128], strides = [1, 1]} : vector<8x384xf32> to vector<8x128xf32>
    %374 = vector.extract_strided_slice %364 {offsets = [0, 384], sizes = [8, 128], strides = [1, 1]} : vector<8x512xf32> to vector<8x128xf32>
    %375 = math.tanh %374 : vector<8x128xf32>
    %376 = arith.mulf %372, %357 : vector<8x128xf32>
    %377 = arith.mulf %371, %375 : vector<8x128xf32>
    %378 = arith.addf %376, %377 : vector<8x128xf32>
    %379 = math.tanh %378 : vector<8x128xf32>
    %380 = arith.mulf %373, %379 : vector<8x128xf32>
    %c40_168 = arith.constant 40 : index
    %c0_169 = arith.constant 0 : index
    %381 = vector.load %arg13[%c40_168, %c0_169] : memref<64x128xf32, #tpu.memory_space<vmem>>, vector<8x128xf32>
    tpu.vector_store %arg13[%c40_168, %c0_169], %380 {strides = array<i32>} : memref<64x128xf32, #tpu.memory_space<vmem>>, vector<8x128xf32>,
    %c48_170 = arith.constant 48 : index
    %c0_171 = arith.constant 0 : index
    %382 = vector.load %arg14[%c48_170, %c0_171] : memref<64x512xf32, #tpu.memory_space<vmem>>, vector<8x512xf32>
    %383 = arith.truncf %380 : vector<8x128xf32> to vector<8x128xbf16>
    %cst_172 = arith.constant dense<0.000000e+00> : vector<8x512xf32>
    %384 = tpu.matmul %383, %253, %cst_172 {dimension_numbers = #tpu.dot_dimension_numbers<[1], [0], [0], [1], [0, 0, 1, 1], [], []>} : vector<8x128xbf16>, vector<128x512xbf16>, vector<8x512xf32> -> vector<8x512xf32>
    %385 = arith.addf %382, %384 : vector<8x512xf32>
    %386 = vector.extract_strided_slice %385 {offsets = [0, 0], sizes = [8, 384], strides = [1, 1]} : vector<8x512xf32> to vector<8x384xf32>
    %387 = arith.negf %386 : vector<8x384xf32>
    %388 = math.exp %387 : vector<8x384xf32>
    %cst_173 = arith.constant 1.000000e+00 : f32
    %389 = vector.broadcast %cst_173 : f32 to vector<8x384xf32>
    %390 = arith.addf %389, %388 : vector<8x384xf32>
    %391 = arith.divf %389, %390 : vector<8x384xf32>
    %392 = vector.extract_strided_slice %391 {offsets = [0, 0], sizes = [8, 128], strides = [1, 1]} : vector<8x384xf32> to vector<8x128xf32>
    %393 = vector.extract_strided_slice %391 {offsets = [0, 128], sizes = [8, 128], strides = [1, 1]} : vector<8x384xf32> to vector<8x128xf32>
    %394 = vector.extract_strided_slice %391 {offsets = [0, 256], sizes = [8, 128], strides = [1, 1]} : vector<8x384xf32> to vector<8x128xf32>
    %395 = vector.extract_strided_slice %385 {offsets = [0, 384], sizes = [8, 128], strides = [1, 1]} : vector<8x512xf32> to vector<8x128xf32>
    %396 = math.tanh %395 : vector<8x128xf32>
    %397 = arith.mulf %393, %378 : vector<8x128xf32>
    %398 = arith.mulf %392, %396 : vector<8x128xf32>
    %399 = arith.addf %397, %398 : vector<8x128xf32>
    %400 = math.tanh %399 : vector<8x128xf32>
    %401 = arith.mulf %394, %400 : vector<8x128xf32>
    %c48_174 = arith.constant 48 : index
    %c0_175 = arith.constant 0 : index
    %402 = vector.load %arg13[%c48_174, %c0_175] : memref<64x128xf32, #tpu.memory_space<vmem>>, vector<8x128xf32>
    tpu.vector_store %arg13[%c48_174, %c0_175], %401 {strides = array<i32>} : memref<64x128xf32, #tpu.memory_space<vmem>>, vector<8x128xf32>,
    %c56_176 = arith.constant 56 : index
    %c0_177 = arith.constant 0 : index
    %403 = vector.load %arg14[%c56_176, %c0_177] : memref<64x512xf32, #tpu.memory_space<vmem>>, vector<8x512xf32>
    %404 = arith.truncf %401 : vector<8x128xf32> to vector<8x128xbf16>
    %cst_178 = arith.constant dense<0.000000e+00> : vector<8x512xf32>
    %405 = tpu.matmul %404, %253, %cst_178 {dimension_numbers = #tpu.dot_dimension_numbers<[1], [0], [0], [1], [0, 0, 1, 1], [], []>} : vector<8x128xbf16>, vector<128x512xbf16>, vector<8x512xf32> -> vector<8x512xf32>
    %406 = arith.addf %403, %405 : vector<8x512xf32>
    %407 = vector.extract_strided_slice %406 {offsets = [0, 0], sizes = [8, 384], strides = [1, 1]} : vector<8x512xf32> to vector<8x384xf32>
    %408 = arith.negf %407 : vector<8x384xf32>
    %409 = math.exp %408 : vector<8x384xf32>
    %cst_179 = arith.constant 1.000000e+00 : f32
    %410 = vector.broadcast %cst_179 : f32 to vector<8x384xf32>
    %411 = arith.addf %410, %409 : vector<8x384xf32>
    %412 = arith.divf %410, %411 : vector<8x384xf32>
    %413 = vector.extract_strided_slice %412 {offsets = [0, 0], sizes = [8, 128], strides = [1, 1]} : vector<8x384xf32> to vector<8x128xf32>
    %414 = vector.extract_strided_slice %412 {offsets = [0, 128], sizes = [8, 128], strides = [1, 1]} : vector<8x384xf32> to vector<8x128xf32>
    %415 = vector.extract_strided_slice %412 {offsets = [0, 256], sizes = [8, 128], strides = [1, 1]} : vector<8x384xf32> to vector<8x128xf32>
    %416 = vector.extract_strided_slice %406 {offsets = [0, 384], sizes = [8, 128], strides = [1, 1]} : vector<8x512xf32> to vector<8x128xf32>
    %417 = math.tanh %416 : vector<8x128xf32>
    %418 = arith.mulf %414, %399 : vector<8x128xf32>
    %419 = arith.mulf %413, %417 : vector<8x128xf32>
    %420 = arith.addf %418, %419 : vector<8x128xf32>
    %421 = math.tanh %420 : vector<8x128xf32>
    %422 = arith.mulf %415, %421 : vector<8x128xf32>
    %c56_180 = arith.constant 56 : index
    %c0_181 = arith.constant 0 : index
    %423 = vector.load %arg13[%c56_180, %c0_181] : memref<64x128xf32, #tpu.memory_space<vmem>>, vector<8x128xf32>
    tpu.vector_store %arg13[%c56_180, %c0_181], %422 {strides = array<i32>} : memref<64x128xf32, #tpu.memory_space<vmem>>, vector<8x128xf32>,
    %c0_182 = arith.constant 0 : index
    %c0_183 = arith.constant 0 : index
    %424 = vector.load %arg13[%c0_182, %c0_183] : memref<64x128xf32, #tpu.memory_space<vmem>>, vector<64x128xf32>
    %425 = arith.truncf %424 : vector<64x128xf32> to vector<64x128xbf16>
    %c0_184 = arith.constant 0 : index
    %c0_185 = arith.constant 0 : index
    %426 = vector.load %arg8[%c0_184, %c0_185] : memref<128x128xbf16, #tpu.memory_space<vmem>>, vector<128x128xbf16>
    %cst_186 = arith.constant dense<0.000000e+00> : vector<64x128xf32>
    %427 = tpu.matmul %425, %426, %cst_186 {dimension_numbers = #tpu.dot_dimension_numbers<[1], [0], [0], [1], [0, 0, 1, 1], [], []>} : vector<64x128xbf16>, vector<128x128xbf16>, vector<64x128xf32> -> vector<64x128xf32>
    %c0_187 = arith.constant 0 : index
    %c0_188 = arith.constant 0 : index
    %428 = vector.load %arg9[%c0_187, %c0_188] : memref<1x128xf32, #tpu.memory_space<vmem>>, vector<1x128xf32>
    %429 = vector.broadcast %428 : vector<1x128xf32> to vector<64x128xf32>
    %430 = arith.addf %427, %429 : vector<64x128xf32>
    %c0_189 = arith.constant 0 : index
    %c0_190 = arith.constant 0 : index
    %431 = vector.load %arg10[%c0_189, %c0_190] : memref<64x128xf32, #tpu.memory_space<vmem>>, vector<64x128xf32>
    tpu.vector_store %arg10[%c0_189, %c0_190], %430 {strides = array<i32>} : memref<64x128xf32, #tpu.memory_space<vmem>>, vector<64x128xf32>,
    return
  }
}

</mosaic_0001>

<llo_original>
// kernel: lstm_model_forward.1
$region0: #{lstm_model_forward.1}
  #allocation0 [shape = 'u32[]', space=smem, size = 0x4, offset = 0x4, fixed_abs, tag = 'smem constant byte address 0x4 - core index']
  #allocation1 [shape = 'u32[144,128]{1,0:T(1,128)}', space=vmem, size = 0x12000, scoped, tag = 'internal scratch']
  #allocation2 [shape = 'f32[64,128]{1,0:T(8,128)}', space=vmem, size = 0x8000, scoped, tag = 'scratch operand']
  #allocation3 [shape = 'f32[64,128]{1,0:T(8,128)}', space=vmem, size = 0x8000, scoped, tag = 'scratch operand']
  #allocation4 [shape = 'f32[64,128]{1,0:T(8,128)}', space=vmem, size = 0x8000, scoped, tag = 'scratch operand']
  #allocation5 [shape = 'f32[64,512]{1,0:T(8,128)}', space=vmem, size = 0x20000, scoped, tag = 'scratch operand']
  %s0 = inlined_call_operand.hbm [shape: s32[2,8], index: 0, kind: input, shape index: {}]
  %s1 = inlined_call_operand.hbm [shape: f32[56,128], index: 1, kind: input, shape index: {}]
  %s2 = inlined_call_operand.hbm [shape: bf16[128,512], index: 2, kind: input, shape index: {}]
  %s3 = inlined_call_operand.hbm [shape: bf16[128,512], index: 3, kind: input, shape index: {}]
  %s4 = inlined_call_operand.vmem [shape: f32[1,512], index: 4, kind: input, shape index: {}]
  %s5 = inlined_call_operand.hbm [shape: bf16[128,512], index: 5, kind: input, shape index: {}]
  %s6 = inlined_call_operand.hbm [shape: bf16[128,512], index: 6, kind: input, shape index: {}]
  %s7 = inlined_call_operand.vmem [shape: f32[1,512], index: 7, kind: input, shape index: {}]
  %s8 = inlined_call_operand.hbm [shape: bf16[128,128], index: 8, kind: input, shape index: {}]
  %s9 = inlined_call_operand.vmem [shape: f32[1,128], index: 9, kind: input, shape index: {}]
  %s10 = inlined_call_operand.vmem [shape: f32[64,128], index: 10, kind: output, shape index: {}]
  %s11 = sld [smem:[#allocation0]]
  $region78: #{lstm_model_forward.1} parent=0
    _
  %s13 = ssub.s32 1, %s11
  %s14 = scalar_select 0, %s13, %s11
  $region1: #{lstm_model_forward.1} parent=0
    #allocation6 [shape = 'u8[1024]{0}', space=smem, size = 0x400, scoped, tag = 'input window, operand 0, single buffered']
    #allocation7 [shape = 's32[1]{0}', space=sflag, size = 0x4, scoped, tag = 'scoped memory for lstm_model_forward.1']
    #allocation8 [shape = 's32[1]{0}', space=sflag, size = 0x4, scoped, tag = 'scoped memory for lstm_model_forward.1']
    #allocation9 [shape = 'u8[28672]{0}', space=vmem, size = 0x7000, scoped, tag = 'input window, operand 1, single buffered']
    #allocation10 [shape = 'u8[131072]{0}', space=vmem, size = 0x20000, scoped, tag = 'input window, operand 2, single buffered']
    #allocation11 [shape = 's32[1]{0}', space=sflag, size = 0x4, scoped, tag = 'scoped memory for lstm_model_forward.1']
    #allocation12 [shape = 'u8[131072]{0}', space=vmem, size = 0x20000, scoped, tag = 'input window, operand 3, single buffered']
    #allocation13 [shape = 'u8[131072]{0}', space=vmem, size = 0x20000, scoped, tag = 'input window, operand 5, single buffered']
    #allocation14 [shape = 's32[1]{0}', space=sflag, size = 0x4, scoped, tag = 'scoped memory for lstm_model_forward.1']
    #allocation15 [shape = 'u8[131072]{0}', space=vmem, size = 0x20000, scoped, tag = 'input window, operand 6, single buffered']
    #allocation16 [shape = 'u8[32768]{0}', space=vmem, size = 0x8000, scoped, tag = 'input window, operand 8, single buffered']
    #allocation17 [shape = 's32[1]{0}', space=sflag, size = 0x4, scoped, tag = 'scoped memory for lstm_model_forward.1']
    %15 = vsyncpa [#allocation8], 0
    %16 = vsyncpa [#allocation7], 0
    %17 = vsyncpa [#allocation11], 0
    %18 = vsyncpa [#allocation14], 0
    %19 = vsyncpa [#allocation17], 0
    // Predicated region
    $region2: #{lstm_model_forward.1} parent=1 // pred_check
      _
    $region3: #{lstm_model_forward.1} parent=1 // pred_check_branch
      %21 = sbr.rel (0) target = $region5
    $region4: #{lstm_model_forward.1} parent=1 // pred_region
      %s23 = ssub.s32 32, 32
      %24 = vsyncadd [#allocation8], %s23
      %27 = dma.hbm_to_smem %s0, 32, [#allocation6], [#allocation8]
    $region5: #{lstm_model_forward.1} parent=1 // pred_fallthru
      _
    // Predicated region
    $region6: #{lstm_model_forward.1} parent=1 // pred_check
      _
    $region7: #{lstm_model_forward.1} parent=1 // pred_check_branch
      %29 = sbr.rel (0) target = $region9
    $region8: #{lstm_model_forward.1} parent=1 // pred_region
      %s31 = ssub.s32 896, 896
      %32 = vsyncadd [#allocation7], %s31
      %s33 = sshll.u32 [#allocation9], 4
      %s34 = int_to_ptr.vmem [resolvable:$true] %s33
      %39 = dma.hbm_to_vmem [thread:$0]  %s1, 896, %s34, [#allocation7], 128, 128, 8
    $region9: #{lstm_model_forward.1} parent=1 // pred_fallthru
      _
    // Predicated region
    $region10: #{lstm_model_forward.1} parent=1 // pred_check
      _
    $region11: #{lstm_model_forward.1} parent=1 // pred_check_branch
      %41 = sbr.rel (0) target = $region13
    $region12: #{lstm_model_forward.1} parent=1 // pred_region
      %s43 = ssub.s32 4096, 4096
      %44 = vsyncadd [#allocation11], %s43
      %s45 = sshll.u32 [#allocation10], 4
      %s46 = int_to_ptr.vmem [resolvable:$true] %s45
      %51 = dma.hbm_to_vmem [thread:$0]  %s2, 4096, %s46, [#allocation11], 256, 256, 16
    $region13: #{lstm_model_forward.1} parent=1 // pred_fallthru
      _
    // Predicated region
    $region14: #{lstm_model_forward.1} parent=1 // pred_check
      _
    $region15: #{lstm_model_forward.1} parent=1 // pred_check_branch
      %53 = sbr.rel (0) target = $region17
    $region16: #{lstm_model_forward.1} parent=1 // pred_region
      %s55 = ssub.s32 4096, 4096
      %56 = vsyncadd [#allocation11], %s55
      %s57 = sshll.u32 [#allocation12], 4
      %s58 = int_to_ptr.vmem [resolvable:$true] %s57
      %63 = dma.hbm_to_vmem [thread:$0]  %s3, 4096, %s58, [#allocation11], 256, 256, 16
    $region17: #{lstm_model_forward.1} parent=1 // pred_fallthru
      _
    // Predicated region
    $region18: #{lstm_model_forward.1} parent=1 // pred_check
      _
    $region19: #{lstm_model_forward.1} parent=1 // pred_check_branch
      %65 = sbr.rel (0) target = $region21
    $region20: #{lstm_model_forward.1} parent=1 // pred_region
      _
    $region21: #{lstm_model_forward.1} parent=1 // pred_fallthru
      _
    // Predicated region
    $region22: #{lstm_model_forward.1} parent=1 // pred_check
      _
    $region23: #{lstm_model_forward.1} parent=1 // pred_check_branch
      %67 = sbr.rel (0) target = $region25
    $region24: #{lstm_model_forward.1} parent=1 // pred_region
      %s69 = ssub.s32 4096, 4096
      %70 = vsyncadd [#allocation14], %s69
      %s71 = sshll.u32 [#allocation13], 4
      %s72 = int_to_ptr.vmem [resolvable:$true] %s71
      %77 = dma.hbm_to_vmem [thread:$0]  %s5, 4096, %s72, [#allocation14], 256, 256, 16
    $region25: #{lstm_model_forward.1} parent=1 // pred_fallthru
      _
    // Predicated region
    $region26: #{lstm_model_forward.1} parent=1 // pred_check
      _
    $region27: #{lstm_model_forward.1} parent=1 // pred_check_branch
      %79 = sbr.rel (0) target = $region29
    $region28: #{lstm_model_forward.1} parent=1 // pred_region
      %s81 = ssub.s32 4096, 4096
      %82 = vsyncadd [#allocation14], %s81
      %s83 = sshll.u32 [#allocation15], 4
      %s84 = int_to_ptr.vmem [resolvable:$true] %s83
      %89 = dma.hbm_to_vmem [thread:$0]  %s6, 4096, %s84, [#allocation14], 256, 256, 16
    $region29: #{lstm_model_forward.1} parent=1 // pred_fallthru
      _
    // Predicated region
    $region30: #{lstm_model_forward.1} parent=1 // pred_check
      _
    $region31: #{lstm_model_forward.1} parent=1 // pred_check_branch
      %91 = sbr.rel (0) target = $region33
    $region32: #{lstm_model_forward.1} parent=1 // pred_region
      _
    $region33: #{lstm_model_forward.1} parent=1 // pred_fallthru
      _
    // Predicated region
    $region34: #{lstm_model_forward.1} parent=1 // pred_check
      _
    $region35: #{lstm_model_forward.1} parent=1 // pred_check_branch
      %93 = sbr.rel (0) target = $region37
    $region36: #{lstm_model_forward.1} parent=1 // pred_region
      %s95 = ssub.s32 1024, 1024
      %96 = vsyncadd [#allocation17], %s95
      %s97 = sshll.u32 [#allocation16], 4
      %s98 = int_to_ptr.vmem [resolvable:$true] %s97
      %103 = dma.hbm_to_vmem [thread:$0]  %s8, 1024, %s98, [#allocation17], 64, 64, 4
    $region37: #{lstm_model_forward.1} parent=1 // pred_fallthru
      _
    // Predicated region
    $region38: #{lstm_model_forward.1} parent=1 // pred_check
      _
    $region39: #{lstm_model_forward.1} parent=1 // pred_check_branch
      %105 = sbr.rel (0) target = $region41
    $region40: #{lstm_model_forward.1} parent=1 // pred_region
      _
    $region41: #{lstm_model_forward.1} parent=1 // pred_fallthru
      _
    // Predicated region
    $region42: #{lstm_model_forward.1} parent=1 // pred_check
      _
    $region43: #{lstm_model_forward.1} parent=1 // pred_check_branch
      %107 = sbr.rel (0) target = $region45
    $region44: #{lstm_model_forward.1} parent=1 // pred_region
      %108 = dma.done [#allocation8], 32
    $region45: #{lstm_model_forward.1} parent=1 // pred_fallthru
      _
    // Predicated region
    $region46: #{lstm_model_forward.1} parent=1 // pred_check
      _
    $region47: #{lstm_model_forward.1} parent=1 // pred_check_branch
      %110 = sbr.rel (0) target = $region49
    $region48: #{lstm_model_forward.1} parent=1 // pred_region
      %111 = dma.done [#allocation7], 896
    $region49: #{lstm_model_forward.1} parent=1 // pred_fallthru
      _
    // Predicated region
    $region50: #{lstm_model_forward.1} parent=1 // pred_check
      _
    $region51: #{lstm_model_forward.1} parent=1 // pred_check_branch
      %113 = sbr.rel (0) target = $region53
    $region52: #{lstm_model_forward.1} parent=1 // pred_region
      %114 = dma.done [#allocation11], 4096
    $region53: #{lstm_model_forward.1} parent=1 // pred_fallthru
      _
    // Predicated region
    $region54: #{lstm_model_forward.1} parent=1 // pred_check
      _
    $region55: #{lstm_model_forward.1} parent=1 // pred_check_branch
      %116 = sbr.rel (0) target = $region57
    $region56: #{lstm_model_forward.1} parent=1 // pred_region
      %117 = dma.done [#allocation11], 4096
    $region57: #{lstm_model_forward.1} parent=1 // pred_fallthru
      _
    // Predicated region
    $region58: #{lstm_model_forward.1} parent=1 // pred_check
      _
    $region59: #{lstm_model_forward.1} parent=1 // pred_check_branch
      %119 = sbr.rel (0) target = $region61
    $region60: #{lstm_model_forward.1} parent=1 // pred_region
      %120 = dma.done [#allocation14], 4096
    $region61: #{lstm_model_forward.1} parent=1 // pred_fallthru
      _
    // Predicated region
    $region62: #{lstm_model_forward.1} parent=1 // pred_check
      _
    $region63: #{lstm_model_forward.1} parent=1 // pred_check_branch
      %122 = sbr.rel (0) target = $region65
    $region64: #{lstm_model_forward.1} parent=1 // pred_region
      %123 = dma.done [#allocation14], 4096
    $region65: #{lstm_model_forward.1} parent=1 // pred_fallthru
      _
    // Predicated region
    $region66: #{lstm_model_forward.1} parent=1 // pred_check
      _
    $region67: #{lstm_model_forward.1} parent=1 // pred_check_branch
      %125 = sbr.rel (0) target = $region69
    $region68: #{lstm_model_forward.1} parent=1 // pred_region
      %126 = dma.done [#allocation17], 1024
    $region69: #{lstm_model_forward.1} parent=1 // pred_fallthru
      _
    %127 = sfence
    %129 = vst [vmem:[#allocation2] sm:$0xff] 0.0
    %130 = vst [vmem:[#allocation2 + $0x8] sm:$0xff] 0.0
    %131 = vst [vmem:[#allocation2 + $0x10] sm:$0xff] 0.0
    %132 = vst [vmem:[#allocation2 + $0x18] sm:$0xff] 0.0
    %133 = vst [vmem:[#allocation2 + $0x20] sm:$0xff] 0.0
    %134 = vst [vmem:[#allocation2 + $0x28] sm:$0xff] 0.0
    %135 = vst [vmem:[#allocation2 + $0x30] sm:$0xff] 0.0
    %136 = vst [vmem:[#allocation2 + $0x38] sm:$0xff] 0.0
    %s137 = sld [smem:[#allocation6]]
    %s138 = scalar_lea.vmem [#allocation9], %s137
    %v139 = vld [vmem:[%s138] sm:$0x1]
    %140 = vst [vmem:[#allocation2] sm:$0x1] %v139
    %s141 = sld [smem:[#allocation6 + $0x80]]
    %s142 = scalar_lea.vmem [#allocation9], %s141
    %v143 = vld [vmem:[%s142] sm:$0x1]
    %144 = vst [vmem:[#allocation2 + $0x1] sm:$0x1] %v143
    %s145 = sld [smem:[#allocation6 + $0x1]]
    %s146 = scalar_lea.vmem [#allocation9], %s145
    %v147 = vld [vmem:[%s146] sm:$0x1]
    %148 = vst [vmem:[#allocation2 + $0x8] sm:$0x1] %v147
    %s149 = sld [smem:[#allocation6 + $0x81]]
    %s150 = scalar_lea.vmem [#allocation9], %s149
    %v151 = vld [vmem:[%s150] sm:$0x1]
    %152 = vst [vmem:[#allocation2 + $0x9] sm:$0x1] %v151
    %s153 = sld [smem:[#allocation6 + $0x2]]
    %s154 = scalar_lea.vmem [#allocation9], %s153
    %v155 = vld [vmem:[%s154] sm:$0x1]
    %156 = vst [vmem:[#allocation2 + $0x10] sm:$0x1] %v155
    %s157 = sld [smem:[#allocation6 + $0x82]]
    %s158 = scalar_lea.vmem [#allocation9], %s157
    %v159 = vld [vmem:[%s158] sm:$0x1]
    %160 = vst [vmem:[#allocation2 + $0x11] sm:$0x1] %v159
    %s161 = sld [smem:[#allocation6 + $0x3]]
    %s162 = scalar_lea.vmem [#allocation9], %s161
    %v163 = vld [vmem:[%s162] sm:$0x1]
    %164 = vst [vmem:[#allocation2 + $0x18] sm:$0x1] %v163
    %s165 = sld [smem:[#allocation6 + $0x83]]
    %s166 = scalar_lea.vmem [#allocation9], %s165
    %v167 = vld [vmem:[%s166] sm:$0x1]
    %168 = vst [vmem:[#allocation2 + $0x19] sm:$0x1] %v167
    %s169 = sld [smem:[#allocation6 + $0x4]]
    %s170 = scalar_lea.vmem [#allocation9], %s169
    %v171 = vld [vmem:[%s170] sm:$0x1]
    %172 = vst [vmem:[#allocation2 + $0x20] sm:$0x1] %v171
    %s173 = sld [smem:[#allocation6 + $0x84]]
    %s174 = scalar_lea.vmem [#allocation9], %s173
    %v175 = vld [vmem:[%s174] sm:$0x1]
    %176 = vst [vmem:[#allocation2 + $0x21] sm:$0x1] %v175
    %s177 = sld [smem:[#allocation6 + $0x5]]
    %s178 = scalar_lea.vmem [#allocation9], %s177
    %v179 = vld [vmem:[%s178] sm:$0x1]
    %180 = vst [vmem:[#allocation2 + $0x28] sm:$0x1] %v179
    %s181 = sld [smem:[#allocation6 + $0x85]]
    %s182 = scalar_lea.vmem [#allocation9], %s181
    %v183 = vld [vmem:[%s182] sm:$0x1]
    %184 = vst [vmem:[#allocation2 + $0x29] sm:$0x1] %v183
    %s185 = sld [smem:[#allocation6 + $0x6]]
    %s186 = scalar_lea.vmem [#allocation9], %s185
    %v187 = vld [vmem:[%s186] sm:$0x1]
    %188 = vst [vmem:[#allocation2 + $0x30] sm:$0x1] %v187
    %s189 = sld [smem:[#allocation6 + $0x86]]
    %s190 = scalar_lea.vmem [#allocation9], %s189
    %v191 = vld [vmem:[%s190] sm:$0x1]
    %192 = vst [vmem:[#allocation2 + $0x31] sm:$0x1] %v191
    %s193 = sld [smem:[#allocation6 + $0x7]]
    %s194 = scalar_lea.vmem [#allocation9], %s193
    %v195 = vld [vmem:[%s194] sm:$0x1]
    %196 = vst [vmem:[#allocation2 + $0x38] sm:$0x1] %v195
    %s197 = sld [smem:[#allocation6 + $0x87]]
    %s198 = scalar_lea.vmem [#allocation9], %s197
    %v199 = vld [vmem:[%s198] sm:$0x1]
    %200 = vst [vmem:[#allocation2 + $0x39] sm:$0x1] %v199
    %v201 = vld [vmem:[#allocation2] sm:$0xff]
    %v202 = vld [vmem:[#allocation2 + $0x8] sm:$0xff]
    %v203 = vld [vmem:[#allocation2 + $0x10] sm:$0xff]
    %v204 = vld [vmem:[#allocation2 + $0x18] sm:$0xff]
    %v205 = vld [vmem:[#allocation2 + $0x20] sm:$0xff]
    %v206 = vld [vmem:[#allocation2 + $0x28] sm:$0xff]
    %v207 = vld [vmem:[#allocation2 + $0x30] sm:$0xff]
    %v208 = vld [vmem:[#allocation2 + $0x38] sm:$0xff]
    %v209 = vpack.c.bf16 %v202, %v201
    %v210 = vpack.c.bf16 %v204, %v203
    %v211 = vpack.c.bf16 %v206, %v205
    %v212 = vpack.c.bf16 %v208, %v207
    %v213 = vld [vmem:[#allocation10] sm:$0xff]
    %v214 = vld [vmem:[#allocation10 + $0x8] sm:$0xff]
    %v215 = vld [vmem:[#allocation10 + $0x10] sm:$0xff]
    %v216 = vld [vmem:[#allocation10 + $0x18] sm:$0xff]
    %v217 = vld [vmem:[#allocation10 + $0x20] sm:$0xff]
    %v218 = vld [vmem:[#allocation10 + $0x28] sm:$0xff]
    %v219 = vld [vmem:[#allocation10 + $0x30] sm:$0xff]
    %v220 = vld [vmem:[#allocation10 + $0x38] sm:$0xff]
    %v221 = vld [vmem:[#allocation10 + $0x40] sm:$0xff]
    %v222 = vld [vmem:[#allocation10 + $0x48] sm:$0xff]
    %v223 = vld [vmem:[#allocation10 + $0x50] sm:$0xff]
    %v224 = vld [vmem:[#allocation10 + $0x58] sm:$0xff]
    %v225 = vld [vmem:[#allocation10 + $0x60] sm:$0xff]
    %v226 = vld [vmem:[#allocation10 + $0x68] sm:$0xff]
    %v227 = vld [vmem:[#allocation10 + $0x70] sm:$0xff]
    %v228 = vld [vmem:[#allocation10 + $0x78] sm:$0xff]
    %v229 = vld [vmem:[#allocation10 + $0x80] sm:$0xff]
    %v230 = vld [vmem:[#allocation10 + $0x88] sm:$0xff]
    %v231 = vld [vmem:[#allocation10 + $0x90] sm:$0xff]
    %v232 = vld [vmem:[#allocation10 + $0x98] sm:$0xff]
    %v233 = vld [vmem:[#allocation10 + $0xa0] sm:$0xff]
    %v234 = vld [vmem:[#allocation10 + $0xa8] sm:$0xff]
    %v235 = vld [vmem:[#allocation10 + $0xb0] sm:$0xff]
    %v236 = vld [vmem:[#allocation10 + $0xb8] sm:$0xff]
    %v237 = vld [vmem:[#allocation10 + $0xc0] sm:$0xff]
    %v238 = vld [vmem:[#allocation10 + $0xc8] sm:$0xff]
    %v239 = vld [vmem:[#allocation10 + $0xd0] sm:$0xff]
    %v240 = vld [vmem:[#allocation10 + $0xd8] sm:$0xff]
    %v241 = vld [vmem:[#allocation10 + $0xe0] sm:$0xff]
    %v242 = vld [vmem:[#allocation10 + $0xe8] sm:$0xff]
    %v243 = vld [vmem:[#allocation10 + $0xf0] sm:$0xff]
    %v244 = vld [vmem:[#allocation10 + $0xf8] sm:$0xff]
    %v245 = vld [vmem:[%s4] sm:$0xf]
    %v247 = vlaneseq
    %v248 = vshrl.u32 %v247, 7
    %v249 = vsub.s32 0, %v248
    %v250 = vrot.slane %v245, %v249
    %v251 = vlaneseq
    %v252 = vshrl.u32 %v251, 7
    %v253 = vsub.s32 1, %v252
    %v254 = vrot.slane %v245, %v253
    %v255 = vlaneseq
    %v256 = vshrl.u32 %v255, 7
    %v257 = vsub.s32 2, %v256
    %v258 = vrot.slane %v245, %v257
    %v259 = vlaneseq
    %v260 = vshrl.u32 %v259, 7
    %v261 = vsub.s32 3, %v260
    %v262 = vrot.slane %v245, %v261
    %v299 = vunpack.c.l.b16 %v213
    %v300 = vunpack.c.h.b16 %v213
    %v301 = vunpack.c.l.b16 %v214
    %v302 = vunpack.c.h.b16 %v214
    %v303 = vunpack.c.l.b16 %v215
    %v304 = vunpack.c.h.b16 %v215
    %v305 = vunpack.c.l.b16 %v216
    %v306 = vunpack.c.h.b16 %v216
    %v307 = vunpack.c.l.b16 %v217
    %v308 = vunpack.c.h.b16 %v217
    %v309 = vunpack.c.l.b16 %v218
    %v310 = vunpack.c.h.b16 %v218
    %v311 = vunpack.c.l.b16 %v219
    %v312 = vunpack.c.h.b16 %v219
    %v313 = vunpack.c.l.b16 %v220
    %v314 = vunpack.c.h.b16 %v220
    %v315 = vunpack.c.l.b16 %v221
    %v316 = vunpack.c.h.b16 %v221
    %v317 = vunpack.c.l.b16 %v222
    %v318 = vunpack.c.h.b16 %v222
    %v319 = vunpack.c.l.b16 %v223
    %v320 = vunpack.c.h.b16 %v223
    %v321 = vunpack.c.l.b16 %v224
    %v322 = vunpack.c.h.b16 %v224
    %v323 = vunpack.c.l.b16 %v225
    %v324 = vunpack.c.h.b16 %v225
    %v325 = vunpack.c.l.b16 %v226
    %v326 = vunpack.c.h.b16 %v226
    %v327 = vunpack.c.l.b16 %v227
    %v328 = vunpack.c.h.b16 %v227
    %v329 = vunpack.c.l.b16 %v228
    %v330 = vunpack.c.h.b16 %v228
    %v331 = vunpack.c.l.b16 %v229
    %v332 = vunpack.c.h.b16 %v229
    %v333 = vunpack.c.l.b16 %v230
    %v334 = vunpack.c.h.b16 %v230
    %v335 = vunpack.c.l.b16 %v231
    %v336 = vunpack.c.h.b16 %v231
    %v337 = vunpack.c.l.b16 %v232
    %v338 = vunpack.c.h.b16 %v232
    %v339 = vunpack.c.l.b16 %v233
    %v340 = vunpack.c.h.b16 %v233
    %v341 = vunpack.c.l.b16 %v234
    %v342 = vunpack.c.h.b16 %v234
    %v343 = vunpack.c.l.b16 %v235
    %v344 = vunpack.c.h.b16 %v235
    %v345 = vunpack.c.l.b16 %v236
    %v346 = vunpack.c.h.b16 %v236
    %v347 = vunpack.c.l.b16 %v237
    %v348 = vunpack.c.h.b16 %v237
    %v349 = vunpack.c.l.b16 %v238
    %v350 = vunpack.c.h.b16 %v238
    %v351 = vunpack.c.l.b16 %v239
    %v352 = vunpack.c.h.b16 %v239
    %v353 = vunpack.c.l.b16 %v240
    %v354 = vunpack.c.h.b16 %v240
    %v355 = vunpack.c.l.b16 %v241
    %v356 = vunpack.c.h.b16 %v241
    %v357 = vunpack.c.l.b16 %v242
    %v358 = vunpack.c.h.b16 %v242
    %v359 = vunpack.c.l.b16 %v243
    %v360 = vunpack.c.h.b16 %v243
    %v361 = vunpack.c.l.b16 %v244
    %v362 = vunpack.c.h.b16 %v244
    %v363 = vpack.c.b16 %v303, %v299
    %v364 = vpack.c.b16 %v304, %v300
    %v365 = vpack.c.b16 %v305, %v301
    %v366 = vpack.c.b16 %v306, %v302
    %v367 = vpack.c.b16 %v311, %v307
    %v368 = vpack.c.b16 %v312, %v308
    %v369 = vpack.c.b16 %v313, %v309
    %v370 = vpack.c.b16 %v314, %v310
    %v371 = vpack.c.b16 %v319, %v315
    %v372 = vpack.c.b16 %v320, %v316
    %v373 = vpack.c.b16 %v321, %v317
    %v374 = vpack.c.b16 %v322, %v318
    %v375 = vpack.c.b16 %v327, %v323
    %v376 = vpack.c.b16 %v328, %v324
    %v377 = vpack.c.b16 %v329, %v325
    %v378 = vpack.c.b16 %v330, %v326
    %v379 = vpack.c.b16 %v335, %v331
    %v380 = vpack.c.b16 %v336, %v332
    %v381 = vpack.c.b16 %v337, %v333
    %v382 = vpack.c.b16 %v338, %v334
    %v383 = vpack.c.b16 %v343, %v339
    %v384 = vpack.c.b16 %v344, %v340
    %v385 = vpack.c.b16 %v345, %v341
    %v386 = vpack.c.b16 %v346, %v342
    %v387 = vpack.c.b16 %v351, %v347
    %v388 = vpack.c.b16 %v352, %v348
    %v389 = vpack.c.b16 %v353, %v349
    %v390 = vpack.c.b16 %v354, %v350
    %v391 = vpack.c.b16 %v359, %v355
    %v392 = vpack.c.b16 %v360, %v356
    %v393 = vpack.c.b16 %v361, %v357
    %v394 = vpack.c.b16 %v362, %v358
    %427 = vmatprep.subr.bf16.mxu0 %v364
    %428 = vmatpush1.bf16.msra.mxu0 %v363
    %429 = vmatprep.subr.bf16.mxu0 %v368
    %430 = vmatpush1.bf16.msra.mxu0 %v367
    %431 = vmatprep.subr.bf16.mxu0 %v372
    %432 = vmatpush1.bf16.msra.mxu0 %v371
    %433 = vmatprep.subr.bf16.mxu0 %v376
    %434 = vmatpush1.bf16.msra.mxu0 %v375
    %435 = vmatprep.subr.bf16.mxu0 %v380
    %436 = vmatpush1.bf16.msra.mxu0 %v379
    %437 = vmatprep.subr.bf16.mxu0 %v384
    %438 = vmatpush1.bf16.msra.mxu0 %v383
    %439 = vmatprep.subr.bf16.mxu0 %v388
    %440 = vmatpush1.bf16.msra.mxu0 %v387
    %441 = vmatprep.subr.bf16.mxu0 %v392
    %442 = vmatpush1.bf16.msra.mxu0 %v391
    %443 = vmatprep.subr.bf16.mxu0 0
    %444 = vmatpush1.bf16.msra.mxu0 0
    %445 = vmatprep.subr.bf16.mxu0 0
    %446 = vmatpush1.bf16.msra.mxu0 0
    %447 = vmatprep.subr.bf16.mxu0 0
    %448 = vmatpush1.bf16.msra.mxu0 0
    %449 = vmatprep.subr.bf16.mxu0 0
    %450 = vmatpush1.bf16.msra.mxu0 0
    %451 = vmatprep.subr.bf16.mxu0 0
    %452 = vmatpush1.bf16.msra.mxu0 0
    %453 = vmatprep.subr.bf16.mxu0 0
    %454 = vmatpush1.bf16.msra.mxu0 0
    %455 = vmatprep.subr.bf16.mxu0 0
    %456 = vmatpush1.bf16.msra.mxu0 0
    %457 = vmatprep.subr.bf16.mxu0 0
    %458 = vmatpush1.bf16.msra.mxu0 0
    %459 = vmatprep.mubr.bf16.mxu0 0
    %460 = vmatmul.mubr.bf16.gmra.mrb[0].mxu0 %v209
    %v461 = vpop.f32.mrb[0].mxu0
    %v462 = vadd.f32 %v250, %v461
    %v463 = vpop.f32.mrb[0].mxu0
    %v464 = vadd.f32 %v254, %v463
    %v465 = vpop.f32.mrb[0].mxu0
    %v466 = vadd.f32 %v250, %v465
    %v467 = vpop.f32.mrb[0].mxu0
    %v468 = vadd.f32 %v254, %v467
    %469 = vmatprep.mubr.bf16.mxu0 0
    %470 = vmatmul.mubr.bf16.gmra.mrb[0].mxu0 %v210
    %v471 = vpop.f32.mrb[0].mxu0
    %v472 = vadd.f32 %v250, %v471
    %v473 = vpop.f32.mrb[0].mxu0
    %v474 = vadd.f32 %v254, %v473
    %v475 = vpop.f32.mrb[0].mxu0
    %v476 = vadd.f32 %v250, %v475
    %v477 = vpop.f32.mrb[0].mxu0
    %v478 = vadd.f32 %v254, %v477
    %479 = vmatprep.mubr.bf16.mxu0 0
    %480 = vmatmul.mubr.bf16.gmra.mrb[0].mxu0 %v211
    %v481 = vpop.f32.mrb[0].mxu0
    %v482 = vadd.f32 %v250, %v481
    %v483 = vpop.f32.mrb[0].mxu0
    %v484 = vadd.f32 %v254, %v483
    %v485 = vpop.f32.mrb[0].mxu0
    %v486 = vadd.f32 %v250, %v485
    %v487 = vpop.f32.mrb[0].mxu0
    %v488 = vadd.f32 %v254, %v487
    %489 = vmatprep.mubr.bf16.mxu0 0
    %490 = vmatmul.mubr.bf16.gmra.mrb[0].mxu0 %v212
    %v491 = vpop.f32.mrb[0].mxu0
    %v492 = vadd.f32 %v250, %v491
    %v493 = vpop.f32.mrb[0].mxu0
    %v494 = vadd.f32 %v254, %v493
    %v495 = vpop.f32.mrb[0].mxu0
    %v496 = vadd.f32 %v250, %v495
    %v497 = vpop.f32.mrb[0].mxu0
    %v498 = vadd.f32 %v254, %v497
    %499 = vdwg.mxu0
    %500 = vmatprep.subr.bf16.mxu0 %v366
    %501 = vmatpush1.bf16.msra.mxu0 %v365
    %502 = vmatprep.subr.bf16.mxu0 %v370
    %503 = vmatpush1.bf16.msra.mxu0 %v369
    %504 = vmatprep.subr.bf16.mxu0 %v374
    %505 = vmatpush1.bf16.msra.mxu0 %v373
    %506 = vmatprep.subr.bf16.mxu0 %v378
    %507 = vmatpush1.bf16.msra.mxu0 %v377
    %508 = vmatprep.subr.bf16.mxu0 %v382
    %509 = vmatpush1.bf16.msra.mxu0 %v381
    %510 = vmatprep.subr.bf16.mxu0 %v386
    %511 = vmatpush1.bf16.msra.mxu0 %v385
    %512 = vmatprep.subr.bf16.mxu0 %v390
    %513 = vmatpush1.bf16.msra.mxu0 %v389
    %514 = vmatprep.subr.bf16.mxu0 %v394
    %515 = vmatpush1.bf16.msra.mxu0 %v393
    %516 = vmatprep.subr.bf16.mxu0 0
    %517 = vmatpush1.bf16.msra.mxu0 0
    %518 = vmatprep.subr.bf16.mxu0 0
    %519 = vmatpush1.bf16.msra.mxu0 0
    %520 = vmatprep.subr.bf16.mxu0 0
    %521 = vmatpush1.bf16.msra.mxu0 0
    %522 = vmatprep.subr.bf16.mxu0 0
    %523 = vmatpush1.bf16.msra.mxu0 0
    %524 = vmatprep.subr.bf16.mxu0 0
    %525 = vmatpush1.bf16.msra.mxu0 0
    %526 = vmatprep.subr.bf16.mxu0 0
    %527 = vmatpush1.bf16.msra.mxu0 0
    %528 = vmatprep.subr.bf16.mxu0 0
    %529 = vmatpush1.bf16.msra.mxu0 0
    %530 = vmatprep.subr.bf16.mxu0 0
    %531 = vmatpush1.bf16.msra.mxu0 0
    %532 = vmatprep.mubr.bf16.mxu0 0
    %533 = vmatmul.mubr.bf16.gmra.mrb[0].mxu0 %v209
    %v534 = vpop.f32.mrb[0].mxu0
    %v535 = vadd.f32 %v258, %v534
    %v536 = vpop.f32.mrb[0].mxu0
    %v537 = vadd.f32 %v262, %v536
    %v538 = vpop.f32.mrb[0].mxu0
    %v539 = vadd.f32 %v258, %v538
    %v540 = vpop.f32.mrb[0].mxu0
    %v541 = vadd.f32 %v262, %v540
    %542 = vmatprep.mubr.bf16.mxu0 0
    %543 = vmatmul.mubr.bf16.gmra.mrb[0].mxu0 %v210
    %v544 = vpop.f32.mrb[0].mxu0
    %v545 = vadd.f32 %v258, %v544
    %v546 = vpop.f32.mrb[0].mxu0
    %v547 = vadd.f32 %v262, %v546
    %v548 = vpop.f32.mrb[0].mxu0
    %v549 = vadd.f32 %v258, %v548
    %v550 = vpop.f32.mrb[0].mxu0
    %v551 = vadd.f32 %v262, %v550
    %552 = vmatprep.mubr.bf16.mxu0 0
    %553 = vmatmul.mubr.bf16.gmra.mrb[0].mxu0 %v211
    %v554 = vpop.f32.mrb[0].mxu0
    %v555 = vadd.f32 %v258, %v554
    %v556 = vpop.f32.mrb[0].mxu0
    %v557 = vadd.f32 %v262, %v556
    %v558 = vpop.f32.mrb[0].mxu0
    %v559 = vadd.f32 %v258, %v558
    %v560 = vpop.f32.mrb[0].mxu0
    %v561 = vadd.f32 %v262, %v560
    %562 = vmatprep.mubr.bf16.mxu0 0
    %563 = vmatmul.mubr.bf16.gmra.mrb[0].mxu0 %v212
    %v564 = vpop.f32.mrb[0].mxu0
    %v565 = vadd.f32 %v258, %v564
    %v566 = vpop.f32.mrb[0].mxu0
    %v567 = vadd.f32 %v262, %v566
    %v568 = vpop.f32.mrb[0].mxu0
    %v569 = vadd.f32 %v258, %v568
    %v570 = vpop.f32.mrb[0].mxu0
    %v571 = vadd.f32 %v262, %v570
    %572 = vdwg.mxu0
    %573 = vst [vmem:[#allocation5] sm:$0xff] %v462
    %574 = vst [vmem:[#allocation5 + $0x8] sm:$0xff] %v464
    %575 = vst [vmem:[#allocation5 + $0x10] sm:$0xff] %v535
    %576 = vst [vmem:[#allocation5 + $0x18] sm:$0xff] %v537
    %577 = vst [vmem:[#allocation5 + $0x20] sm:$0xff] %v466
    %578 = vst [vmem:[#allocation5 + $0x28] sm:$0xff] %v468
    %579 = vst [vmem:[#allocation5 + $0x30] sm:$0xff] %v539
    %580 = vst [vmem:[#allocation5 + $0x38] sm:$0xff] %v541
    %581 = vst [vmem:[#allocation5 + $0x40] sm:$0xff] %v472
    %582 = vst [vmem:[#allocation5 + $0x48] sm:$0xff] %v474
    %583 = vst [vmem:[#allocation5 + $0x50] sm:$0xff] %v545
    %584 = vst [vmem:[#allocation5 + $0x58] sm:$0xff] %v547
    %585 = vst [vmem:[#allocation5 + $0x60] sm:$0xff] %v476
    %586 = vst [vmem:[#allocation5 + $0x68] sm:$0xff] %v478
    %587 = vst [vmem:[#allocation5 + $0x70] sm:$0xff] %v549
    %588 = vst [vmem:[#allocation5 + $0x78] sm:$0xff] %v551
    %589 = vst [vmem:[#allocation5 + $0x80] sm:$0xff] %v482
    %590 = vst [vmem:[#allocation5 + $0x88] sm:$0xff] %v484
    %591 = vst [vmem:[#allocation5 + $0x90] sm:$0xff] %v555
    %592 = vst [vmem:[#allocation5 + $0x98] sm:$0xff] %v557
    %593 = vst [vmem:[#allocation5 + $0xa0] sm:$0xff] %v486
    %594 = vst [vmem:[#allocation5 + $0xa8] sm:$0xff] %v488
    %595 = vst [vmem:[#allocation5 + $0xb0] sm:$0xff] %v559
    %596 = vst [vmem:[#allocation5 + $0xb8] sm:$0xff] %v561
    %597 = vst [vmem:[#allocation5 + $0xc0] sm:$0xff] %v492
    %598 = vst [vmem:[#allocation5 + $0xc8] sm:$0xff] %v494
    %599 = vst [vmem:[#allocation5 + $0xd0] sm:$0xff] %v565
    %600 = vst [vmem:[#allocation5 + $0xd8] sm:$0xff] %v567
    %601 = vst [vmem:[#allocation5 + $0xe0] sm:$0xff] %v496
    %602 = vst [vmem:[#allocation5 + $0xe8] sm:$0xff] %v498
    %603 = vst [vmem:[#allocation5 + $0xf0] sm:$0xff] %v569
    %604 = vst [vmem:[#allocation5 + $0xf8] sm:$0xff] %v571
    %v605 = vld [vmem:[#allocation12] sm:$0xff]
    %v606 = vld [vmem:[#allocation12 + $0x8] sm:$0xff]
    %v607 = vld [vmem:[#allocation12 + $0x10] sm:$0xff]
    %v608 = vld [vmem:[#allocation12 + $0x18] sm:$0xff]
    %v609 = vld [vmem:[#allocation12 + $0x20] sm:$0xff]
    %v610 = vld [vmem:[#allocation12 + $0x28] sm:$0xff]
    %v611 = vld [vmem:[#allocation12 + $0x30] sm:$0xff]
    %v612 = vld [vmem:[#allocation12 + $0x38] sm:$0xff]
    %v613 = vld [vmem:[#allocation12 + $0x40] sm:$0xff]
    %v614 = vld [vmem:[#allocation12 + $0x48] sm:$0xff]
    %v615 = vld [vmem:[#allocation12 + $0x50] sm:$0xff]
    %v616 = vld [vmem:[#allocation12 + $0x58] sm:$0xff]
    %v617 = vld [vmem:[#allocation12 + $0x60] sm:$0xff]
    %v618 = vld [vmem:[#allocation12 + $0x68] sm:$0xff]
    %v619 = vld [vmem:[#allocation12 + $0x70] sm:$0xff]
    %v620 = vld [vmem:[#allocation12 + $0x78] sm:$0xff]
    %v621 = vld [vmem:[#allocation12 + $0x80] sm:$0xff]
    %v622 = vld [vmem:[#allocation12 + $0x88] sm:$0xff]
    %v623 = vld [vmem:[#allocation12 + $0x90] sm:$0xff]
    %v624 = vld [vmem:[#allocation12 + $0x98] sm:$0xff]
    %v625 = vld [vmem:[#allocation12 + $0xa0] sm:$0xff]
    %v626 = vld [vmem:[#allocation12 + $0xa8] sm:$0xff]
    %v627 = vld [vmem:[#allocation12 + $0xb0] sm:$0xff]
    %v628 = vld [vmem:[#allocation12 + $0xb8] sm:$0xff]
    %v629 = vld [vmem:[#allocation12 + $0xc0] sm:$0xff]
    %v630 = vld [vmem:[#allocation12 + $0xc8] sm:$0xff]
    %v631 = vld [vmem:[#allocation12 + $0xd0] sm:$0xff]
    %v632 = vld [vmem:[#allocation12 + $0xd8] sm:$0xff]
    %v633 = vld [vmem:[#allocation12 + $0xe0] sm:$0xff]
    %v634 = vld [vmem:[#allocation12 + $0xe8] sm:$0xff]
    %v635 = vld [vmem:[#allocation12 + $0xf0] sm:$0xff]
    %v636 = vld [vmem:[#allocation12 + $0xf8] sm:$0xff]
    %v637 = vld [vmem:[#allocation5] sm:$0xff]
    %v638 = vld [vmem:[#allocation5 + $0x8] sm:$0xff]
    %v639 = vld [vmem:[#allocation5 + $0x10] sm:$0xff]
    %v640 = vld [vmem:[#allocation5 + $0x18] sm:$0xff]
    %v673 = vunpack.c.l.b16 %v605
    %v674 = vunpack.c.h.b16 %v605
    %v675 = vunpack.c.l.b16 %v606
    %v676 = vunpack.c.h.b16 %v606
    %v677 = vunpack.c.l.b16 %v607
    %v678 = vunpack.c.h.b16 %v607
    %v679 = vunpack.c.l.b16 %v608
    %v680 = vunpack.c.h.b16 %v608
    %v681 = vunpack.c.l.b16 %v609
    %v682 = vunpack.c.h.b16 %v609
    %v683 = vunpack.c.l.b16 %v610
    %v684 = vunpack.c.h.b16 %v610
    %v685 = vunpack.c.l.b16 %v611
    %v686 = vunpack.c.h.b16 %v611
    %v687 = vunpack.c.l.b16 %v612
    %v688 = vunpack.c.h.b16 %v612
    %v689 = vunpack.c.l.b16 %v613
    %v690 = vunpack.c.h.b16 %v613
    %v691 = vunpack.c.l.b16 %v614
    %v692 = vunpack.c.h.b16 %v614
    %v693 = vunpack.c.l.b16 %v615
    %v694 = vunpack.c.h.b16 %v615
    %v695 = vunpack.c.l.b16 %v616
    %v696 = vunpack.c.h.b16 %v616
    %v697 = vunpack.c.l.b16 %v617
    %v698 = vunpack.c.h.b16 %v617
    %v699 = vunpack.c.l.b16 %v618
    %v700 = vunpack.c.h.b16 %v618
    %v701 = vunpack.c.l.b16 %v619
    %v702 = vunpack.c.h.b16 %v619
    %v703 = vunpack.c.l.b16 %v620
    %v704 = vunpack.c.h.b16 %v620
    %v705 = vunpack.c.l.b16 %v621
    %v706 = vunpack.c.h.b16 %v621
    %v707 = vunpack.c.l.b16 %v622
    %v708 = vunpack.c.h.b16 %v622
    %v709 = vunpack.c.l.b16 %v623
    %v710 = vunpack.c.h.b16 %v623
    %v711 = vunpack.c.l.b16 %v624
    %v712 = vunpack.c.h.b16 %v624
    %v713 = vunpack.c.l.b16 %v625
    %v714 = vunpack.c.h.b16 %v625
    %v715 = vunpack.c.l.b16 %v626
    %v716 = vunpack.c.h.b16 %v626
    %v717 = vunpack.c.l.b16 %v627
    %v718 = vunpack.c.h.b16 %v627
    %v719 = vunpack.c.l.b16 %v628
    %v720 = vunpack.c.h.b16 %v628
    %v721 = vunpack.c.l.b16 %v629
    %v722 = vunpack.c.h.b16 %v629
    %v723 = vunpack.c.l.b16 %v630
    %v724 = vunpack.c.h.b16 %v630
    %v725 = vunpack.c.l.b16 %v631
    %v726 = vunpack.c.h.b16 %v631
    %v727 = vunpack.c.l.b16 %v632
    %v728 = vunpack.c.h.b16 %v632
    %v729 = vunpack.c.l.b16 %v633
    %v730 = vunpack.c.h.b16 %v633
    %v731 = vunpack.c.l.b16 %v634
    %v732 = vunpack.c.h.b16 %v634
    %v733 = vunpack.c.l.b16 %v635
    %v734 = vunpack.c.h.b16 %v635
    %v735 = vunpack.c.l.b16 %v636
    %v736 = vunpack.c.h.b16 %v636
    %v737 = vpack.c.b16 %v677, %v673
    %v738 = vpack.c.b16 %v678, %v674
    %v739 = vpack.c.b16 %v679, %v675
    %v740 = vpack.c.b16 %v680, %v676
    %v741 = vpack.c.b16 %v685, %v681
    %v742 = vpack.c.b16 %v686, %v682
    %v743 = vpack.c.b16 %v687, %v683
    %v744 = vpack.c.b16 %v688, %v684
    %v745 = vpack.c.b16 %v693, %v689
    %v746 = vpack.c.b16 %v694, %v690
    %v747 = vpack.c.b16 %v695, %v691
    %v748 = vpack.c.b16 %v696, %v692
    %v749 = vpack.c.b16 %v701, %v697
    %v750 = vpack.c.b16 %v702, %v698
    %v751 = vpack.c.b16 %v703, %v699
    %v752 = vpack.c.b16 %v704, %v700
    %v753 = vpack.c.b16 %v709, %v705
    %v754 = vpack.c.b16 %v710, %v706
    %v755 = vpack.c.b16 %v711, %v707
    %v756 = vpack.c.b16 %v712, %v708
    %v757 = vpack.c.b16 %v717, %v713
    %v758 = vpack.c.b16 %v718, %v714
    %v759 = vpack.c.b16 %v719, %v715
    %v760 = vpack.c.b16 %v720, %v716
    %v761 = vpack.c.b16 %v725, %v721
    %v762 = vpack.c.b16 %v726, %v722
    %v763 = vpack.c.b16 %v727, %v723
    %v764 = vpack.c.b16 %v728, %v724
    %v765 = vpack.c.b16 %v733, %v729
    %v766 = vpack.c.b16 %v734, %v730
    %v767 = vpack.c.b16 %v735, %v731
    %v768 = vpack.c.b16 %v736, %v732
    %801 = vmatprep.subr.bf16.mxu0 %v738
    %802 = vmatpush1.bf16.msra.mxu0 %v737
    %803 = vmatprep.subr.bf16.mxu0 %v742
    %804 = vmatpush1.bf16.msra.mxu0 %v741
    %805 = vmatprep.subr.bf16.mxu0 %v746
    %806 = vmatpush1.bf16.msra.mxu0 %v745
    %807 = vmatprep.subr.bf16.mxu0 %v750
    %808 = vmatpush1.bf16.msra.mxu0 %v749
    %809 = vmatprep.subr.bf16.mxu0 %v754
    %810 = vmatpush1.bf16.msra.mxu0 %v753
    %811 = vmatprep.subr.bf16.mxu0 %v758
    %812 = vmatpush1.bf16.msra.mxu0 %v757
    %813 = vmatprep.subr.bf16.mxu0 %v762
    %814 = vmatpush1.bf16.msra.mxu0 %v761
    %815 = vmatprep.subr.bf16.mxu0 %v766
    %816 = vmatpush1.bf16.msra.mxu0 %v765
    %817 = vmatprep.subr.bf16.mxu0 0
    %818 = vmatpush1.bf16.msra.mxu0 0
    %819 = vmatprep.subr.bf16.mxu0 0
    %820 = vmatpush1.bf16.msra.mxu0 0
    %821 = vmatprep.subr.bf16.mxu0 0
    %822 = vmatpush1.bf16.msra.mxu0 0
    %823 = vmatprep.subr.bf16.mxu0 0
    %824 = vmatpush1.bf16.msra.mxu0 0
    %825 = vmatprep.subr.bf16.mxu0 0
    %826 = vmatpush1.bf16.msra.mxu0 0
    %827 = vmatprep.subr.bf16.mxu0 0
    %828 = vmatpush1.bf16.msra.mxu0 0
    %829 = vmatprep.subr.bf16.mxu0 0
    %830 = vmatpush1.bf16.msra.mxu0 0
    %831 = vmatprep.subr.bf16.mxu0 0
    %832 = vmatpush1.bf16.msra.mxu0 0
    %833 = vmatprep.mubr.bf16.mxu0 0
    %834 = vmatmul.mubr.bf16.gmra.mrb[0].mxu0 0
    %v835 = vpop.f32.mrb[0].mxu0
    %v836 = vadd.f32 0.0, %v835
    %v837 = vpop.f32.mrb[0].mxu0
    %v838 = vadd.f32 0.0, %v837
    %v839 = vpop.f32.mrb[0].mxu0
    %v840 = vpop.f32.mrb[0].mxu0
    %841 = vdwg.mxu0
    %842 = vmatprep.subr.bf16.mxu0 %v740
    %843 = vmatpush1.bf16.msra.mxu0 %v739
    %844 = vmatprep.subr.bf16.mxu0 %v744
    %845 = vmatpush1.bf16.msra.mxu0 %v743
    %846 = vmatprep.subr.bf16.mxu0 %v748
    %847 = vmatpush1.bf16.msra.mxu0 %v747
    %848 = vmatprep.subr.bf16.mxu0 %v752
    %849 = vmatpush1.bf16.msra.mxu0 %v751
    %850 = vmatprep.subr.bf16.mxu0 %v756
    %851 = vmatpush1.bf16.msra.mxu0 %v755
    %852 = vmatprep.subr.bf16.mxu0 %v760
    %853 = vmatpush1.bf16.msra.mxu0 %v759
    %854 = vmatprep.subr.bf16.mxu0 %v764
    %855 = vmatpush1.bf16.msra.mxu0 %v763
    %856 = vmatprep.subr.bf16.mxu0 %v768
    %857 = vmatpush1.bf16.msra.mxu0 %v767
    %858 = vmatprep.subr.bf16.mxu0 0
    %859 = vmatpush1.bf16.msra.mxu0 0
    %860 = vmatprep.subr.bf16.mxu0 0
    %861 = vmatpush1.bf16.msra.mxu0 0
    %862 = vmatprep.subr.bf16.mxu0 0
    %863 = vmatpush1.bf16.msra.mxu0 0
    %864 = vmatprep.subr.bf16.mxu0 0
    %865 = vmatpush1.bf16.msra.mxu0 0
    %866 = vmatprep.subr.bf16.mxu0 0
    %867 = vmatpush1.bf16.msra.mxu0 0
    %868 = vmatprep.subr.bf16.mxu0 0
    %869 = vmatpush1.bf16.msra.mxu0 0
    %870 = vmatprep.subr.bf16.mxu0 0
    %871 = vmatpush1.bf16.msra.mxu0 0
    %872 = vmatprep.subr.bf16.mxu0 0
    %873 = vmatpush1.bf16.msra.mxu0 0
    %874 = vmatprep.mubr.bf16.mxu0 0
    %875 = vmatmul.mubr.bf16.gmra.mrb[0].mxu0 0
    %v876 = vpop.f32.mrb[0].mxu0
    %v877 = vadd.f32 0.0, %v876
    %v878 = vpop.f32.mrb[0].mxu0
    %v879 = vadd.f32 0.0, %v878
    %v880 = vpop.f32.mrb[0].mxu0
    %v881 = vpop.f32.mrb[0].mxu0
    %882 = vdwg.mxu0
    %v883 = vadd.f32 %v637, %v836
    %v884 = vadd.f32 %v638, %v838
    %v885 = vadd.f32 %v639, %v877
    %v886 = vadd.f32 %v640, %v879
    %v887 = vxor.u32 %v883, 2147483648
    %v888 = vxor.u32 %v884, 2147483648
    %v889 = vxor.u32 %v885, 2147483648
    %v890 = vmul.f32 %v887, 1.442695
    %v891 = vpow.pop %v890
    %v892 = vmul.f32 %v888, 1.442695
    %v893 = vpow.pop %v892
    %v894 = vmul.f32 %v889, 1.442695
    %v895 = vpow.pop %v894
    %v896 = vadd.f32 %v891, 1.0
    %v897 = vadd.f32 %v893, 1.0
    %v898 = vadd.f32 %v895, 1.0
    %v899 = vrcp.pop %v896
    %v900 = vmul.f32 1.0, %v899
    %v901 = vrcp.pop %v897
    %v902 = vmul.f32 1.0, %v901
    %v903 = vrcp.pop %v898
    %v904 = vmul.f32 1.0, %v903
    %v905 = vtanh.pop %v886
    %v906 = vmul.f32 %v902, 0.0
    %v907 = vmul.f32 %v900, %v905
    %v908 = vadd.f32 %v906, %v907
    %v909 = vtanh.pop %v908
    %v910 = vmul.f32 %v904, %v909
    %911 = vst [vmem:[#allocation3] sm:$0xff] %v910
    %v912 = vld [vmem:[#allocation5 + $0x20] sm:$0xff]
    %v913 = vld [vmem:[#allocation5 + $0x28] sm:$0xff]
    %v914 = vld [vmem:[#allocation5 + $0x30] sm:$0xff]
    %v915 = vld [vmem:[#allocation5 + $0x38] sm:$0xff]
    %v916 = vpack.c.bf16 %v910, %v910
    %917 = vmatprep.subr.bf16.mxu0 %v738
    %918 = vmatpush1.bf16.msra.mxu0 %v737
    %919 = vmatprep.subr.bf16.mxu0 %v742
    %920 = vmatpush1.bf16.msra.mxu0 %v741
    %921 = vmatprep.subr.bf16.mxu0 %v746
    %922 = vmatpush1.bf16.msra.mxu0 %v745
    %923 = vmatprep.subr.bf16.mxu0 %v750
    %924 = vmatpush1.bf16.msra.mxu0 %v749
    %925 = vmatprep.subr.bf16.mxu0 %v754
    %926 = vmatpush1.bf16.msra.mxu0 %v753
    %927 = vmatprep.subr.bf16.mxu0 %v758
    %928 = vmatpush1.bf16.msra.mxu0 %v757
    %929 = vmatprep.subr.bf16.mxu0 %v762
    %930 = vmatpush1.bf16.msra.mxu0 %v761
    %931 = vmatprep.subr.bf16.mxu0 %v766
    %932 = vmatpush1.bf16.msra.mxu0 %v765
    %933 = vmatprep.subr.bf16.mxu0 0
    %934 = vmatpush1.bf16.msra.mxu0 0
    %935 = vmatprep.subr.bf16.mxu0 0
    %936 = vmatpush1.bf16.msra.mxu0 0
    %937 = vmatprep.subr.bf16.mxu0 0
    %938 = vmatpush1.bf16.msra.mxu0 0
    %939 = vmatprep.subr.bf16.mxu0 0
    %940 = vmatpush1.bf16.msra.mxu0 0
    %941 = vmatprep.subr.bf16.mxu0 0
    %942 = vmatpush1.bf16.msra.mxu0 0
    %943 = vmatprep.subr.bf16.mxu0 0
    %944 = vmatpush1.bf16.msra.mxu0 0
    %945 = vmatprep.subr.bf16.mxu0 0
    %946 = vmatpush1.bf16.msra.mxu0 0
    %947 = vmatprep.subr.bf16.mxu0 0
    %948 = vmatpush1.bf16.msra.mxu0 0
    %949 = vmatprep.mubr.bf16.mxu0 0
    %950 = vmatmul.mubr.bf16.gmra.mrb[0].mxu0 %v916
    %v951 = vpop.f32.mrb[0].mxu0
    %v952 = vadd.f32 0.0, %v951
    %v953 = vpop.f32.mrb[0].mxu0
    %v954 = vadd.f32 0.0, %v953
    %v955 = vpop.f32.mrb[0].mxu0
    %v956 = vpop.f32.mrb[0].mxu0
    %957 = vdwg.mxu0
    %958 = vmatprep.subr.bf16.mxu0 %v740
    %959 = vmatpush1.bf16.msra.mxu0 %v739
    %960 = vmatprep.subr.bf16.mxu0 %v744
    %961 = vmatpush1.bf16.msra.mxu0 %v743
    %962 = vmatprep.subr.bf16.mxu0 %v748
    %963 = vmatpush1.bf16.msra.mxu0 %v747
    %964 = vmatprep.subr.bf16.mxu0 %v752
    %965 = vmatpush1.bf16.msra.mxu0 %v751
    %966 = vmatprep.subr.bf16.mxu0 %v756
    %967 = vmatpush1.bf16.msra.mxu0 %v755
    %968 = vmatprep.subr.bf16.mxu0 %v760
    %969 = vmatpush1.bf16.msra.mxu0 %v759
    %970 = vmatprep.subr.bf16.mxu0 %v764
    %971 = vmatpush1.bf16.msra.mxu0 %v763
    %972 = vmatprep.subr.bf16.mxu0 %v768
    %973 = vmatpush1.bf16.msra.mxu0 %v767
    %974 = vmatprep.subr.bf16.mxu0 0
    %975 = vmatpush1.bf16.msra.mxu0 0
    %976 = vmatprep.subr.bf16.mxu0 0
    %977 = vmatpush1.bf16.msra.mxu0 0
    %978 = vmatprep.subr.bf16.mxu0 0
    %979 = vmatpush1.bf16.msra.mxu0 0
    %980 = vmatprep.subr.bf16.mxu0 0
    %981 = vmatpush1.bf16.msra.mxu0 0
    %982 = vmatprep.subr.bf16.mxu0 0
    %983 = vmatpush1.bf16.msra.mxu0 0
    %984 = vmatprep.subr.bf16.mxu0 0
    %985 = vmatpush1.bf16.msra.mxu0 0
    %986 = vmatprep.subr.bf16.mxu0 0
    %987 = vmatpush1.bf16.msra.mxu0 0
    %988 = vmatprep.subr.bf16.mxu0 0
    %989 = vmatpush1.bf16.msra.mxu0 0
    %990 = vmatprep.mubr.bf16.mxu0 0
    %991 = vmatmul.mubr.bf16.gmra.mrb[0].mxu0 %v916
    %v992 = vpop.f32.mrb[0].mxu0
    %v993 = vadd.f32 0.0, %v992
    %v994 = vpop.f32.mrb[0].mxu0
    %v995 = vadd.f32 0.0, %v994
    %v996 = vpop.f32.mrb[0].mxu0
    %v997 = vpop.f32.mrb[0].mxu0
    %998 = vdwg.mxu0
    %v999 = vadd.f32 %v912, %v952
    %v1000 = vadd.f32 %v913, %v954
    %v1001 = vadd.f32 %v914, %v993
    %v1002 = vadd.f32 %v915, %v995
    %v1003 = vxor.u32 %v999, 2147483648
    %v1004 = vxor.u32 %v1000, 2147483648
    %v1005 = vxor.u32 %v1001, 2147483648
    %v1006 = vmul.f32 %v1003, 1.442695
    %v1007 = vpow.pop %v1006
    %v1008 = vmul.f32 %v1004, 1.442695
    %v1009 = vpow.pop %v1008
    %v1010 = vmul.f32 %v1005, 1.442695
    %v1011 = vpow.pop %v1010
    %v1012 = vadd.f32 %v1007, 1.0
    %v1013 = vadd.f32 %v1009, 1.0
    %v1014 = vadd.f32 %v1011, 1.0
    %v1015 = vrcp.pop %v1012
    %v1016 = vmul.f32 1.0, %v1015
    %v1017 = vrcp.pop %v1013
    %v1018 = vmul.f32 1.0, %v1017
    %v1019 = vrcp.pop %v1014
    %v1020 = vmul.f32 1.0, %v1019
    %v1021 = vtanh.pop %v1002
    %v1022 = vmul.f32 %v1018, %v908
    %v1023 = vmul.f32 %v1016, %v1021
    %v1024 = vadd.f32 %v1022, %v1023
    %v1025 = vtanh.pop %v1024
    %v1026 = vmul.f32 %v1020, %v1025
    %1027 = vst [vmem:[#allocation3 + $0x8] sm:$0xff] %v1026
    %v1028 = vld [vmem:[#allocation5 + $0x40] sm:$0xff]
    %v1029 = vld [vmem:[#allocation5 + $0x48] sm:$0xff]
    %v1030 = vld [vmem:[#allocation5 + $0x50] sm:$0xff]
    %v1031 = vld [vmem:[#allocation5 + $0x58] sm:$0xff]
    %v1032 = vpack.c.bf16 %v1026, %v1026
    %1033 = vmatprep.subr.bf16.mxu0 %v738
    %1034 = vmatpush1.bf16.msra.mxu0 %v737
    %1035 = vmatprep.subr.bf16.mxu0 %v742
    %1036 = vmatpush1.bf16.msra.mxu0 %v741
    %1037 = vmatprep.subr.bf16.mxu0 %v746
    %1038 = vmatpush1.bf16.msra.mxu0 %v745
    %1039 = vmatprep.subr.bf16.mxu0 %v750
    %1040 = vmatpush1.bf16.msra.mxu0 %v749
    %1041 = vmatprep.subr.bf16.mxu0 %v754
    %1042 = vmatpush1.bf16.msra.mxu0 %v753
    %1043 = vmatprep.subr.bf16.mxu0 %v758
    %1044 = vmatpush1.bf16.msra.mxu0 %v757
    %1045 = vmatprep.subr.bf16.mxu0 %v762
    %1046 = vmatpush1.bf16.msra.mxu0 %v761
    %1047 = vmatprep.subr.bf16.mxu0 %v766
    %1048 = vmatpush1.bf16.msra.mxu0 %v765
    %1049 = vmatprep.subr.bf16.mxu0 0
    %1050 = vmatpush1.bf16.msra.mxu0 0
    %1051 = vmatprep.subr.bf16.mxu0 0
    %1052 = vmatpush1.bf16.msra.mxu0 0
    %1053 = vmatprep.subr.bf16.mxu0 0
    %1054 = vmatpush1.bf16.msra.mxu0 0
    %1055 = vmatprep.subr.bf16.mxu0 0
    %1056 = vmatpush1.bf16.msra.mxu0 0
    %1057 = vmatprep.subr.bf16.mxu0 0
    %1058 = vmatpush1.bf16.msra.mxu0 0
    %1059 = vmatprep.subr.bf16.mxu0 0
    %1060 = vmatpush1.bf16.msra.mxu0 0
    %1061 = vmatprep.subr.bf16.mxu0 0
    %1062 = vmatpush1.bf16.msra.mxu0 0
    %1063 = vmatprep.subr.bf16.mxu0 0
    %1064 = vmatpush1.bf16.msra.mxu0 0
    %1065 = vmatprep.mubr.bf16.mxu0 0
    %1066 = vmatmul.mubr.bf16.gmra.mrb[0].mxu0 %v1032
    %v1067 = vpop.f32.mrb[0].mxu0
    %v1068 = vadd.f32 0.0, %v1067
    %v1069 = vpop.f32.mrb[0].mxu0
    %v1070 = vadd.f32 0.0, %v1069
    %v1071 = vpop.f32.mrb[0].mxu0
    %v1072 = vpop.f32.mrb[0].mxu0
    %1073 = vdwg.mxu0
    %1074 = vmatprep.subr.bf16.mxu0 %v740
    %1075 = vmatpush1.bf16.msra.mxu0 %v739
    %1076 = vmatprep.subr.bf16.mxu0 %v744
    %1077 = vmatpush1.bf16.msra.mxu0 %v743
    %1078 = vmatprep.subr.bf16.mxu0 %v748
    %1079 = vmatpush1.bf16.msra.mxu0 %v747
    %1080 = vmatprep.subr.bf16.mxu0 %v752
    %1081 = vmatpush1.bf16.msra.mxu0 %v751
    %1082 = vmatprep.subr.bf16.mxu0 %v756
    %1083 = vmatpush1.bf16.msra.mxu0 %v755
    %1084 = vmatprep.subr.bf16.mxu0 %v760
    %1085 = vmatpush1.bf16.msra.mxu0 %v759
    %1086 = vmatprep.subr.bf16.mxu0 %v764
    %1087 = vmatpush1.bf16.msra.mxu0 %v763
    %1088 = vmatprep.subr.bf16.mxu0 %v768
    %1089 = vmatpush1.bf16.msra.mxu0 %v767
    %1090 = vmatprep.subr.bf16.mxu0 0
    %1091 = vmatpush1.bf16.msra.mxu0 0
    %1092 = vmatprep.subr.bf16.mxu0 0
    %1093 = vmatpush1.bf16.msra.mxu0 0
    %1094 = vmatprep.subr.bf16.mxu0 0
    %1095 = vmatpush1.bf16.msra.mxu0 0
    %1096 = vmatprep.subr.bf16.mxu0 0
    %1097 = vmatpush1.bf16.msra.mxu0 0
    %1098 = vmatprep.subr.bf16.mxu0 0
    %1099 = vmatpush1.bf16.msra.mxu0 0
    %1100 = vmatprep.subr.bf16.mxu0 0
    %1101 = vmatpush1.bf16.msra.mxu0 0
    %1102 = vmatprep.subr.bf16.mxu0 0
    %1103 = vmatpush1.bf16.msra.mxu0 0
    %1104 = vmatprep.subr.bf16.mxu0 0
    %1105 = vmatpush1.bf16.msra.mxu0 0
    %1106 = vmatprep.mubr.bf16.mxu0 0
    %1107 = vmatmul.mubr.bf16.gmra.mrb[0].mxu0 %v1032
    %v1108 = vpop.f32.mrb[0].mxu0
    %v1109 = vadd.f32 0.0, %v1108
    %v1110 = vpop.f32.mrb[0].mxu0
    %v1111 = vadd.f32 0.0, %v1110
    %v1112 = vpop.f32.mrb[0].mxu0
    %v1113 = vpop.f32.mrb[0].mxu0
    %1114 = vdwg.mxu0
    %v1115 = vadd.f32 %v1028, %v1068
    %v1116 = vadd.f32 %v1029, %v1070
    %v1117 = vadd.f32 %v1030, %v1109
    %v1118 = vadd.f32 %v1031, %v1111
    %v1119 = vxor.u32 %v1115, 2147483648
    %v1120 = vxor.u32 %v1116, 2147483648
    %v1121 = vxor.u32 %v1117, 2147483648
    %v1122 = vmul.f32 %v1119, 1.442695
    %v1123 = vpow.pop %v1122
    %v1124 = vmul.f32 %v1120, 1.442695
    %v1125 = vpow.pop %v1124
    %v1126 = vmul.f32 %v1121, 1.442695
    %v1127 = vpow.pop %v1126
    %v1128 = vadd.f32 %v1123, 1.0
    %v1129 = vadd.f32 %v1125, 1.0
    %v1130 = vadd.f32 %v1127, 1.0
    %v1131 = vrcp.pop %v1128
    %v1132 = vmul.f32 1.0, %v1131
    %v1133 = vrcp.pop %v1129
    %v1134 = vmul.f32 1.0, %v1133
    %v1135 = vrcp.pop %v1130
    %v1136 = vmul.f32 1.0, %v1135
    %v1137 = vtanh.pop %v1118
    %v1138 = vmul.f32 %v1134, %v1024
    %v1139 = vmul.f32 %v1132, %v1137
    %v1140 = vadd.f32 %v1138, %v1139
    %v1141 = vtanh.pop %v1140
    %v1142 = vmul.f32 %v1136, %v1141
    %1143 = vst [vmem:[#allocation3 + $0x10] sm:$0xff] %v1142
    %v1144 = vld [vmem:[#allocation5 + $0x60] sm:$0xff]
    %v1145 = vld [vmem:[#allocation5 + $0x68] sm:$0xff]
    %v1146 = vld [vmem:[#allocation5 + $0x70] sm:$0xff]
    %v1147 = vld [vmem:[#allocation5 + $0x78] sm:$0xff]
    %v1148 = vpack.c.bf16 %v1142, %v1142
    %1149 = vmatprep.subr.bf16.mxu0 %v738
    %1150 = vmatpush1.bf16.msra.mxu0 %v737
    %1151 = vmatprep.subr.bf16.mxu0 %v742
    %1152 = vmatpush1.bf16.msra.mxu0 %v741
    %1153 = vmatprep.subr.bf16.mxu0 %v746
    %1154 = vmatpush1.bf16.msra.mxu0 %v745
    %1155 = vmatprep.subr.bf16.mxu0 %v750
    %1156 = vmatpush1.bf16.msra.mxu0 %v749
    %1157 = vmatprep.subr.bf16.mxu0 %v754
    %1158 = vmatpush1.bf16.msra.mxu0 %v753
    %1159 = vmatprep.subr.bf16.mxu0 %v758
    %1160 = vmatpush1.bf16.msra.mxu0 %v757
    %1161 = vmatprep.subr.bf16.mxu0 %v762
    %1162 = vmatpush1.bf16.msra.mxu0 %v761
    %1163 = vmatprep.subr.bf16.mxu0 %v766
    %1164 = vmatpush1.bf16.msra.mxu0 %v765
    %1165 = vmatprep.subr.bf16.mxu0 0
    %1166 = vmatpush1.bf16.msra.mxu0 0
    %1167 = vmatprep.subr.bf16.mxu0 0
    %1168 = vmatpush1.bf16.msra.mxu0 0
    %1169 = vmatprep.subr.bf16.mxu0 0
    %1170 = vmatpush1.bf16.msra.mxu0 0
    %1171 = vmatprep.subr.bf16.mxu0 0
    %1172 = vmatpush1.bf16.msra.mxu0 0
    %1173 = vmatprep.subr.bf16.mxu0 0
    %1174 = vmatpush1.bf16.msra.mxu0 0
    %1175 = vmatprep.subr.bf16.mxu0 0
    %1176 = vmatpush1.bf16.msra.mxu0 0
    %1177 = vmatprep.subr.bf16.mxu0 0
    %1178 = vmatpush1.bf16.msra.mxu0 0
    %1179 = vmatprep.subr.bf16.mxu0 0
    %1180 = vmatpush1.bf16.msra.mxu0 0
    %1181 = vmatprep.mubr.bf16.mxu0 0
    %1182 = vmatmul.mubr.bf16.gmra.mrb[0].mxu0 %v1148
    %v1183 = vpop.f32.mrb[0].mxu0
    %v1184 = vadd.f32 0.0, %v1183
    %v1185 = vpop.f32.mrb[0].mxu0
    %v1186 = vadd.f32 0.0, %v1185
    %v1187 = vpop.f32.mrb[0].mxu0
    %v1188 = vpop.f32.mrb[0].mxu0
    %1189 = vdwg.mxu0
    %1190 = vmatprep.subr.bf16.mxu0 %v740
    %1191 = vmatpush1.bf16.msra.mxu0 %v739
    %1192 = vmatprep.subr.bf16.mxu0 %v744
    %1193 = vmatpush1.bf16.msra.mxu0 %v743
    %1194 = vmatprep.subr.bf16.mxu0 %v748
    %1195 = vmatpush1.bf16.msra.mxu0 %v747
    %1196 = vmatprep.subr.bf16.mxu0 %v752
    %1197 = vmatpush1.bf16.msra.mxu0 %v751
    %1198 = vmatprep.subr.bf16.mxu0 %v756
    %1199 = vmatpush1.bf16.msra.mxu0 %v755
    %1200 = vmatprep.subr.bf16.mxu0 %v760
    %1201 = vmatpush1.bf16.msra.mxu0 %v759
    %1202 = vmatprep.subr.bf16.mxu0 %v764
    %1203 = vmatpush1.bf16.msra.mxu0 %v763
    %1204 = vmatprep.subr.bf16.mxu0 %v768
    %1205 = vmatpush1.bf16.msra.mxu0 %v767
    %1206 = vmatprep.subr.bf16.mxu0 0
    %1207 = vmatpush1.bf16.msra.mxu0 0
    %1208 = vmatprep.subr.bf16.mxu0 0
    %1209 = vmatpush1.bf16.msra.mxu0 0
    %1210 = vmatprep.subr.bf16.mxu0 0
    %1211 = vmatpush1.bf16.msra.mxu0 0
    %1212 = vmatprep.subr.bf16.mxu0 0
    %1213 = vmatpush1.bf16.msra.mxu0 0
    %1214 = vmatprep.subr.bf16.mxu0 0
    %1215 = vmatpush1.bf16.msra.mxu0 0
    %1216 = vmatprep.subr.bf16.mxu0 0
    %1217 = vmatpush1.bf16.msra.mxu0 0
    %1218 = vmatprep.subr.bf16.mxu0 0
    %1219 = vmatpush1.bf16.msra.mxu0 0
    %1220 = vmatprep.subr.bf16.mxu0 0
    %1221 = vmatpush1.bf16.msra.mxu0 0
    %1222 = vmatprep.mubr.bf16.mxu0 0
    %1223 = vmatmul.mubr.bf16.gmra.mrb[0].mxu0 %v1148
    %v1224 = vpop.f32.mrb[0].mxu0
    %v1225 = vadd.f32 0.0, %v1224
    %v1226 = vpop.f32.mrb[0].mxu0
    %v1227 = vadd.f32 0.0, %v1226
    %v1228 = vpop.f32.mrb[0].mxu0
    %v1229 = vpop.f32.mrb[0].mxu0
    %1230 = vdwg.mxu0
    %v1231 = vadd.f32 %v1144, %v1184
    %v1232 = vadd.f32 %v1145, %v1186
    %v1233 = vadd.f32 %v1146, %v1225
    %v1234 = vadd.f32 %v1147, %v1227
    %v1235 = vxor.u32 %v1231, 2147483648
    %v1236 = vxor.u32 %v1232, 2147483648
    %v1237 = vxor.u32 %v1233, 2147483648
    %v1238 = vmul.f32 %v1235, 1.442695
    %v1239 = vpow.pop %v1238
    %v1240 = vmul.f32 %v1236, 1.442695
    %v1241 = vpow.pop %v1240
    %v1242 = vmul.f32 %v1237, 1.442695
    %v1243 = vpow.pop %v1242
    %v1244 = vadd.f32 %v1239, 1.0
    %v1245 = vadd.f32 %v1241, 1.0
    %v1246 = vadd.f32 %v1243, 1.0
    %v1247 = vrcp.pop %v1244
    %v1248 = vmul.f32 1.0, %v1247
    %v1249 = vrcp.pop %v1245
    %v1250 = vmul.f32 1.0, %v1249
    %v1251 = vrcp.pop %v1246
    %v1252 = vmul.f32 1.0, %v1251
    %v1253 = vtanh.pop %v1234
    %v1254 = vmul.f32 %v1250, %v1140
    %v1255 = vmul.f32 %v1248, %v1253
    %v1256 = vadd.f32 %v1254, %v1255
    %v1257 = vtanh.pop %v1256
    %v1258 = vmul.f32 %v1252, %v1257
    %1259 = vst [vmem:[#allocation3 + $0x18] sm:$0xff] %v1258
    %v1260 = vld [vmem:[#allocation5 + $0x80] sm:$0xff]
    %v1261 = vld [vmem:[#allocation5 + $0x88] sm:$0xff]
    %v1262 = vld [vmem:[#allocation5 + $0x90] sm:$0xff]
    %v1263 = vld [vmem:[#allocation5 + $0x98] sm:$0xff]
    %v1264 = vpack.c.bf16 %v1258, %v1258
    %1265 = vmatprep.subr.bf16.mxu0 %v738
    %1266 = vmatpush1.bf16.msra.mxu0 %v737
    %1267 = vmatprep.subr.bf16.mxu0 %v742
    %1268 = vmatpush1.bf16.msra.mxu0 %v741
    %1269 = vmatprep.subr.bf16.mxu0 %v746
    %1270 = vmatpush1.bf16.msra.mxu0 %v745
    %1271 = vmatprep.subr.bf16.mxu0 %v750
    %1272 = vmatpush1.bf16.msra.mxu0 %v749
    %1273 = vmatprep.subr.bf16.mxu0 %v754
    %1274 = vmatpush1.bf16.msra.mxu0 %v753
    %1275 = vmatprep.subr.bf16.mxu0 %v758
    %1276 = vmatpush1.bf16.msra.mxu0 %v757
    %1277 = vmatprep.subr.bf16.mxu0 %v762
    %1278 = vmatpush1.bf16.msra.mxu0 %v761
    %1279 = vmatprep.subr.bf16.mxu0 %v766
    %1280 = vmatpush1.bf16.msra.mxu0 %v765
    %1281 = vmatprep.subr.bf16.mxu0 0
    %1282 = vmatpush1.bf16.msra.mxu0 0
    %1283 = vmatprep.subr.bf16.mxu0 0
    %1284 = vmatpush1.bf16.msra.mxu0 0
    %1285 = vmatprep.subr.bf16.mxu0 0
    %1286 = vmatpush1.bf16.msra.mxu0 0
    %1287 = vmatprep.subr.bf16.mxu0 0
    %1288 = vmatpush1.bf16.msra.mxu0 0
    %1289 = vmatprep.subr.bf16.mxu0 0
    %1290 = vmatpush1.bf16.msra.mxu0 0
    %1291 = vmatprep.subr.bf16.mxu0 0
    %1292 = vmatpush1.bf16.msra.mxu0 0
    %1293 = vmatprep.subr.bf16.mxu0 0
    %1294 = vmatpush1.bf16.msra.mxu0 0
    %1295 = vmatprep.subr.bf16.mxu0 0
    %1296 = vmatpush1.bf16.msra.mxu0 0
    %1297 = vmatprep.mubr.bf16.mxu0 0
    %1298 = vmatmul.mubr.bf16.gmra.mrb[0].mxu0 %v1264
    %v1299 = vpop.f32.mrb[0].mxu0
    %v1300 = vadd.f32 0.0, %v1299
    %v1301 = vpop.f32.mrb[0].mxu0
    %v1302 = vadd.f32 0.0, %v1301
    %v1303 = vpop.f32.mrb[0].mxu0
    %v1304 = vpop.f32.mrb[0].mxu0
    %1305 = vdwg.mxu0
    %1306 = vmatprep.subr.bf16.mxu0 %v740
    %1307 = vmatpush1.bf16.msra.mxu0 %v739
    %1308 = vmatprep.subr.bf16.mxu0 %v744
    %1309 = vmatpush1.bf16.msra.mxu0 %v743
    %1310 = vmatprep.subr.bf16.mxu0 %v748
    %1311 = vmatpush1.bf16.msra.mxu0 %v747
    %1312 = vmatprep.subr.bf16.mxu0 %v752
    %1313 = vmatpush1.bf16.msra.mxu0 %v751
    %1314 = vmatprep.subr.bf16.mxu0 %v756
    %1315 = vmatpush1.bf16.msra.mxu0 %v755
    %1316 = vmatprep.subr.bf16.mxu0 %v760
    %1317 = vmatpush1.bf16.msra.mxu0 %v759
    %1318 = vmatprep.subr.bf16.mxu0 %v764
    %1319 = vmatpush1.bf16.msra.mxu0 %v763
    %1320 = vmatprep.subr.bf16.mxu0 %v768
    %1321 = vmatpush1.bf16.msra.mxu0 %v767
    %1322 = vmatprep.subr.bf16.mxu0 0
    %1323 = vmatpush1.bf16.msra.mxu0 0
    %1324 = vmatprep.subr.bf16.mxu0 0
    %1325 = vmatpush1.bf16.msra.mxu0 0
    %1326 = vmatprep.subr.bf16.mxu0 0
    %1327 = vmatpush1.bf16.msra.mxu0 0
    %1328 = vmatprep.subr.bf16.mxu0 0
    %1329 = vmatpush1.bf16.msra.mxu0 0
    %1330 = vmatprep.subr.bf16.mxu0 0
    %1331 = vmatpush1.bf16.msra.mxu0 0
    %1332 = vmatprep.subr.bf16.mxu0 0
    %1333 = vmatpush1.bf16.msra.mxu0 0
    %1334 = vmatprep.subr.bf16.mxu0 0
    %1335 = vmatpush1.bf16.msra.mxu0 0
    %1336 = vmatprep.subr.bf16.mxu0 0
    %1337 = vmatpush1.bf16.msra.mxu0 0
    %1338 = vmatprep.mubr.bf16.mxu0 0
    %1339 = vmatmul.mubr.bf16.gmra.mrb[0].mxu0 %v1264
    %v1340 = vpop.f32.mrb[0].mxu0
    %v1341 = vadd.f32 0.0, %v1340
    %v1342 = vpop.f32.mrb[0].mxu0
    %v1343 = vadd.f32 0.0, %v1342
    %v1344 = vpop.f32.mrb[0].mxu0
    %v1345 = vpop.f32.mrb[0].mxu0
    %1346 = vdwg.mxu0
    %v1347 = vadd.f32 %v1260, %v1300
    %v1348 = vadd.f32 %v1261, %v1302
    %v1349 = vadd.f32 %v1262, %v1341
    %v1350 = vadd.f32 %v1263, %v1343
    %v1351 = vxor.u32 %v1347, 2147483648
    %v1352 = vxor.u32 %v1348, 2147483648
    %v1353 = vxor.u32 %v1349, 2147483648
    %v1354 = vmul.f32 %v1351, 1.442695
    %v1355 = vpow.pop %v1354
    %v1356 = vmul.f32 %v1352, 1.442695
    %v1357 = vpow.pop %v1356
    %v1358 = vmul.f32 %v1353, 1.442695
    %v1359 = vpow.pop %v1358
    %v1360 = vadd.f32 %v1355, 1.0
    %v1361 = vadd.f32 %v1357, 1.0
    %v1362 = vadd.f32 %v1359, 1.0
    %v1363 = vrcp.pop %v1360
    %v1364 = vmul.f32 1.0, %v1363
    %v1365 = vrcp.pop %v1361
    %v1366 = vmul.f32 1.0, %v1365
    %v1367 = vrcp.pop %v1362
    %v1368 = vmul.f32 1.0, %v1367
    %v1369 = vtanh.pop %v1350
    %v1370 = vmul.f32 %v1366, %v1256
    %v1371 = vmul.f32 %v1364, %v1369
    %v1372 = vadd.f32 %v1370, %v1371
    %v1373 = vtanh.pop %v1372
    %v1374 = vmul.f32 %v1368, %v1373
    %1375 = vst [vmem:[#allocation3 + $0x20] sm:$0xff] %v1374
    %v1376 = vld [vmem:[#allocation5 + $0xa0] sm:$0xff]
    %v1377 = vld [vmem:[#allocation5 + $0xa8] sm:$0xff]
    %v1378 = vld [vmem:[#allocation5 + $0xb0] sm:$0xff]
    %v1379 = vld [vmem:[#allocation5 + $0xb8] sm:$0xff]
    %v1380 = vpack.c.bf16 %v1374, %v1374
    %1381 = vmatprep.subr.bf16.mxu0 %v738
    %1382 = vmatpush1.bf16.msra.mxu0 %v737
    %1383 = vmatprep.subr.bf16.mxu0 %v742
    %1384 = vmatpush1.bf16.msra.mxu0 %v741
    %1385 = vmatprep.subr.bf16.mxu0 %v746
    %1386 = vmatpush1.bf16.msra.mxu0 %v745
    %1387 = vmatprep.subr.bf16.mxu0 %v750
    %1388 = vmatpush1.bf16.msra.mxu0 %v749
    %1389 = vmatprep.subr.bf16.mxu0 %v754
    %1390 = vmatpush1.bf16.msra.mxu0 %v753
    %1391 = vmatprep.subr.bf16.mxu0 %v758
    %1392 = vmatpush1.bf16.msra.mxu0 %v757
    %1393 = vmatprep.subr.bf16.mxu0 %v762
    %1394 = vmatpush1.bf16.msra.mxu0 %v761
    %1395 = vmatprep.subr.bf16.mxu0 %v766
    %1396 = vmatpush1.bf16.msra.mxu0 %v765
    %1397 = vmatprep.subr.bf16.mxu0 0
    %1398 = vmatpush1.bf16.msra.mxu0 0
    %1399 = vmatprep.subr.bf16.mxu0 0
    %1400 = vmatpush1.bf16.msra.mxu0 0
    %1401 = vmatprep.subr.bf16.mxu0 0
    %1402 = vmatpush1.bf16.msra.mxu0 0
    %1403 = vmatprep.subr.bf16.mxu0 0
    %1404 = vmatpush1.bf16.msra.mxu0 0
    %1405 = vmatprep.subr.bf16.mxu0 0
    %1406 = vmatpush1.bf16.msra.mxu0 0
    %1407 = vmatprep.subr.bf16.mxu0 0
    %1408 = vmatpush1.bf16.msra.mxu0 0
    %1409 = vmatprep.subr.bf16.mxu0 0
    %1410 = vmatpush1.bf16.msra.mxu0 0
    %1411 = vmatprep.subr.bf16.mxu0 0
    %1412 = vmatpush1.bf16.msra.mxu0 0
    %1413 = vmatprep.mubr.bf16.mxu0 0
    %1414 = vmatmul.mubr.bf16.gmra.mrb[0].mxu0 %v1380
    %v1415 = vpop.f32.mrb[0].mxu0
    %v1416 = vadd.f32 0.0, %v1415
    %v1417 = vpop.f32.mrb[0].mxu0
    %v1418 = vadd.f32 0.0, %v1417
    %v1419 = vpop.f32.mrb[0].mxu0
    %v1420 = vpop.f32.mrb[0].mxu0
    %1421 = vdwg.mxu0
    %1422 = vmatprep.subr.bf16.mxu0 %v740
    %1423 = vmatpush1.bf16.msra.mxu0 %v739
    %1424 = vmatprep.subr.bf16.mxu0 %v744
    %1425 = vmatpush1.bf16.msra.mxu0 %v743
    %1426 = vmatprep.subr.bf16.mxu0 %v748
    %1427 = vmatpush1.bf16.msra.mxu0 %v747
    %1428 = vmatprep.subr.bf16.mxu0 %v752
    %1429 = vmatpush1.bf16.msra.mxu0 %v751
    %1430 = vmatprep.subr.bf16.mxu0 %v756
    %1431 = vmatpush1.bf16.msra.mxu0 %v755
    %1432 = vmatprep.subr.bf16.mxu0 %v760
    %1433 = vmatpush1.bf16.msra.mxu0 %v759
    %1434 = vmatprep.subr.bf16.mxu0 %v764
    %1435 = vmatpush1.bf16.msra.mxu0 %v763
    %1436 = vmatprep.subr.bf16.mxu0 %v768
    %1437 = vmatpush1.bf16.msra.mxu0 %v767
    %1438 = vmatprep.subr.bf16.mxu0 0
    %1439 = vmatpush1.bf16.msra.mxu0 0
    %1440 = vmatprep.subr.bf16.mxu0 0
    %1441 = vmatpush1.bf16.msra.mxu0 0
    %1442 = vmatprep.subr.bf16.mxu0 0
    %1443 = vmatpush1.bf16.msra.mxu0 0
    %1444 = vmatprep.subr.bf16.mxu0 0
    %1445 = vmatpush1.bf16.msra.mxu0 0
    %1446 = vmatprep.subr.bf16.mxu0 0
    %1447 = vmatpush1.bf16.msra.mxu0 0
    %1448 = vmatprep.subr.bf16.mxu0 0
    %1449 = vmatpush1.bf16.msra.mxu0 0
    %1450 = vmatprep.subr.bf16.mxu0 0
    %1451 = vmatpush1.bf16.msra.mxu0 0
    %1452 = vmatprep.subr.bf16.mxu0 0
    %1453 = vmatpush1.bf16.msra.mxu0 0
    %1454 = vmatprep.mubr.bf16.mxu0 0
    %1455 = vmatmul.mubr.bf16.gmra.mrb[0].mxu0 %v1380
    %v1456 = vpop.f32.mrb[0].mxu0
    %v1457 = vadd.f32 0.0, %v1456
    %v1458 = vpop.f32.mrb[0].mxu0
    %v1459 = vadd.f32 0.0, %v1458
    %v1460 = vpop.f32.mrb[0].mxu0
    %v1461 = vpop.f32.mrb[0].mxu0
    %1462 = vdwg.mxu0
    %v1463 = vadd.f32 %v1376, %v1416
    %v1464 = vadd.f32 %v1377, %v1418
    %v1465 = vadd.f32 %v1378, %v1457
    %v1466 = vadd.f32 %v1379, %v1459
    %v1467 = vxor.u32 %v1463, 2147483648
    %v1468 = vxor.u32 %v1464, 2147483648
    %v1469 = vxor.u32 %v1465, 2147483648
    %v1470 = vmul.f32 %v1467, 1.442695
    %v1471 = vpow.pop %v1470
    %v1472 = vmul.f32 %v1468, 1.442695
    %v1473 = vpow.pop %v1472
    %v1474 = vmul.f32 %v1469, 1.442695
    %v1475 = vpow.pop %v1474
    %v1476 = vadd.f32 %v1471, 1.0
    %v1477 = vadd.f32 %v1473, 1.0
    %v1478 = vadd.f32 %v1475, 1.0
    %v1479 = vrcp.pop %v1476
    %v1480 = vmul.f32 1.0, %v1479
    %v1481 = vrcp.pop %v1477
    %v1482 = vmul.f32 1.0, %v1481
    %v1483 = vrcp.pop %v1478
    %v1484 = vmul.f32 1.0, %v1483
    %v1485 = vtanh.pop %v1466
    %v1486 = vmul.f32 %v1482, %v1372
    %v1487 = vmul.f32 %v1480, %v1485
    %v1488 = vadd.f32 %v1486, %v1487
    %v1489 = vtanh.pop %v1488
    %v1490 = vmul.f32 %v1484, %v1489
    %1491 = vst [vmem:[#allocation3 + $0x28] sm:$0xff] %v1490
    %v1492 = vld [vmem:[#allocation5 + $0xc0] sm:$0xff]
    %v1493 = vld [vmem:[#allocation5 + $0xc8] sm:$0xff]
    %v1494 = vld [vmem:[#allocation5 + $0xd0] sm:$0xff]
    %v1495 = vld [vmem:[#allocation5 + $0xd8] sm:$0xff]
    %v1496 = vpack.c.bf16 %v1490, %v1490
    %1497 = vmatprep.subr.bf16.mxu0 %v738
    %1498 = vmatpush1.bf16.msra.mxu0 %v737
    %1499 = vmatprep.subr.bf16.mxu0 %v742
    %1500 = vmatpush1.bf16.msra.mxu0 %v741
    %1501 = vmatprep.subr.bf16.mxu0 %v746
    %1502 = vmatpush1.bf16.msra.mxu0 %v745
    %1503 = vmatprep.subr.bf16.mxu0 %v750
    %1504 = vmatpush1.bf16.msra.mxu0 %v749
    %1505 = vmatprep.subr.bf16.mxu0 %v754
    %1506 = vmatpush1.bf16.msra.mxu0 %v753
    %1507 = vmatprep.subr.bf16.mxu0 %v758
    %1508 = vmatpush1.bf16.msra.mxu0 %v757
    %1509 = vmatprep.subr.bf16.mxu0 %v762
    %1510 = vmatpush1.bf16.msra.mxu0 %v761
    %1511 = vmatprep.subr.bf16.mxu0 %v766
    %1512 = vmatpush1.bf16.msra.mxu0 %v765
    %1513 = vmatprep.subr.bf16.mxu0 0
    %1514 = vmatpush1.bf16.msra.mxu0 0
    %1515 = vmatprep.subr.bf16.mxu0 0
    %1516 = vmatpush1.bf16.msra.mxu0 0
    %1517 = vmatprep.subr.bf16.mxu0 0
    %1518 = vmatpush1.bf16.msra.mxu0 0
    %1519 = vmatprep.subr.bf16.mxu0 0
    %1520 = vmatpush1.bf16.msra.mxu0 0
    %1521 = vmatprep.subr.bf16.mxu0 0
    %1522 = vmatpush1.bf16.msra.mxu0 0
    %1523 = vmatprep.subr.bf16.mxu0 0
    %1524 = vmatpush1.bf16.msra.mxu0 0
    %1525 = vmatprep.subr.bf16.mxu0 0
    %1526 = vmatpush1.bf16.msra.mxu0 0
    %1527 = vmatprep.subr.bf16.mxu0 0
    %1528 = vmatpush1.bf16.msra.mxu0 0
    %1529 = vmatprep.mubr.bf16.mxu0 0
    %1530 = vmatmul.mubr.bf16.gmra.mrb[0].mxu0 %v1496
    %v1531 = vpop.f32.mrb[0].mxu0
    %v1532 = vadd.f32 0.0, %v1531
    %v1533 = vpop.f32.mrb[0].mxu0
    %v1534 = vadd.f32 0.0, %v1533
    %v1535 = vpop.f32.mrb[0].mxu0
    %v1536 = vpop.f32.mrb[0].mxu0
    %1537 = vdwg.mxu0
    %1538 = vmatprep.subr.bf16.mxu0 %v740
    %1539 = vmatpush1.bf16.msra.mxu0 %v739
    %1540 = vmatprep.subr.bf16.mxu0 %v744
    %1541 = vmatpush1.bf16.msra.mxu0 %v743
    %1542 = vmatprep.subr.bf16.mxu0 %v748
    %1543 = vmatpush1.bf16.msra.mxu0 %v747
    %1544 = vmatprep.subr.bf16.mxu0 %v752
    %1545 = vmatpush1.bf16.msra.mxu0 %v751
    %1546 = vmatprep.subr.bf16.mxu0 %v756
    %1547 = vmatpush1.bf16.msra.mxu0 %v755
    %1548 = vmatprep.subr.bf16.mxu0 %v760
    %1549 = vmatpush1.bf16.msra.mxu0 %v759
    %1550 = vmatprep.subr.bf16.mxu0 %v764
    %1551 = vmatpush1.bf16.msra.mxu0 %v763
    %1552 = vmatprep.subr.bf16.mxu0 %v768
    %1553 = vmatpush1.bf16.msra.mxu0 %v767
    %1554 = vmatprep.subr.bf16.mxu0 0
    %1555 = vmatpush1.bf16.msra.mxu0 0
    %1556 = vmatprep.subr.bf16.mxu0 0
    %1557 = vmatpush1.bf16.msra.mxu0 0
    %1558 = vmatprep.subr.bf16.mxu0 0
    %1559 = vmatpush1.bf16.msra.mxu0 0
    %1560 = vmatprep.subr.bf16.mxu0 0
    %1561 = vmatpush1.bf16.msra.mxu0 0
    %1562 = vmatprep.subr.bf16.mxu0 0
    %1563 = vmatpush1.bf16.msra.mxu0 0
    %1564 = vmatprep.subr.bf16.mxu0 0
    %1565 = vmatpush1.bf16.msra.mxu0 0
    %1566 = vmatprep.subr.bf16.mxu0 0
    %1567 = vmatpush1.bf16.msra.mxu0 0
    %1568 = vmatprep.subr.bf16.mxu0 0
    %1569 = vmatpush1.bf16.msra.mxu0 0
    %1570 = vmatprep.mubr.bf16.mxu0 0
    %1571 = vmatmul.mubr.bf16.gmra.mrb[0].mxu0 %v1496
    %v1572 = vpop.f32.mrb[0].mxu0
    %v1573 = vadd.f32 0.0, %v1572
    %v1574 = vpop.f32.mrb[0].mxu0
    %v1575 = vadd.f32 0.0, %v1574
    %v1576 = vpop.f32.mrb[0].mxu0
    %v1577 = vpop.f32.mrb[0].mxu0
    %1578 = vdwg.mxu0
    %v1579 = vadd.f32 %v1492, %v1532
    %v1580 = vadd.f32 %v1493, %v1534
    %v1581 = vadd.f32 %v1494, %v1573
    %v1582 = vadd.f32 %v1495, %v1575
    %v1583 = vxor.u32 %v1579, 2147483648
    %v1584 = vxor.u32 %v1580, 2147483648
    %v1585 = vxor.u32 %v1581, 2147483648
    %v1586 = vmul.f32 %v1583, 1.442695
    %v1587 = vpow.pop %v1586
    %v1588 = vmul.f32 %v1584, 1.442695
    %v1589 = vpow.pop %v1588
    %v1590 = vmul.f32 %v1585, 1.442695
    %v1591 = vpow.pop %v1590
    %v1592 = vadd.f32 %v1587, 1.0
    %v1593 = vadd.f32 %v1589, 1.0
    %v1594 = vadd.f32 %v1591, 1.0
    %v1595 = vrcp.pop %v1592
    %v1596 = vmul.f32 1.0, %v1595
    %v1597 = vrcp.pop %v1593
    %v1598 = vmul.f32 1.0, %v1597
    %v1599 = vrcp.pop %v1594
    %v1600 = vmul.f32 1.0, %v1599
    %v1601 = vtanh.pop %v1582
    %v1602 = vmul.f32 %v1598, %v1488
    %v1603 = vmul.f32 %v1596, %v1601
    %v1604 = vadd.f32 %v1602, %v1603
    %v1605 = vtanh.pop %v1604
    %v1606 = vmul.f32 %v1600, %v1605
    %1607 = vst [vmem:[#allocation3 + $0x30] sm:$0xff] %v1606
    %v1608 = vld [vmem:[#allocation5 + $0xe0] sm:$0xff]
    %v1609 = vld [vmem:[#allocation5 + $0xe8] sm:$0xff]
    %v1610 = vld [vmem:[#allocation5 + $0xf0] sm:$0xff]
    %v1611 = vld [vmem:[#allocation5 + $0xf8] sm:$0xff]
    %v1612 = vpack.c.bf16 %v1606, %v1606
    %1613 = vmatprep.subr.bf16.mxu0 %v738
    %1614 = vmatpush1.bf16.msra.mxu0 %v737
    %1615 = vmatprep.subr.bf16.mxu0 %v742
    %1616 = vmatpush1.bf16.msra.mxu0 %v741
    %1617 = vmatprep.subr.bf16.mxu0 %v746
    %1618 = vmatpush1.bf16.msra.mxu0 %v745
    %1619 = vmatprep.subr.bf16.mxu0 %v750
    %1620 = vmatpush1.bf16.msra.mxu0 %v749
    %1621 = vmatprep.subr.bf16.mxu0 %v754
    %1622 = vmatpush1.bf16.msra.mxu0 %v753
    %1623 = vmatprep.subr.bf16.mxu0 %v758
    %1624 = vmatpush1.bf16.msra.mxu0 %v757
    %1625 = vmatprep.subr.bf16.mxu0 %v762
    %1626 = vmatpush1.bf16.msra.mxu0 %v761
    %1627 = vmatprep.subr.bf16.mxu0 %v766
    %1628 = vmatpush1.bf16.msra.mxu0 %v765
    %1629 = vmatprep.subr.bf16.mxu0 0
    %1630 = vmatpush1.bf16.msra.mxu0 0
    %1631 = vmatprep.subr.bf16.mxu0 0
    %1632 = vmatpush1.bf16.msra.mxu0 0
    %1633 = vmatprep.subr.bf16.mxu0 0
    %1634 = vmatpush1.bf16.msra.mxu0 0
    %1635 = vmatprep.subr.bf16.mxu0 0
    %1636 = vmatpush1.bf16.msra.mxu0 0
    %1637 = vmatprep.subr.bf16.mxu0 0
    %1638 = vmatpush1.bf16.msra.mxu0 0
    %1639 = vmatprep.subr.bf16.mxu0 0
    %1640 = vmatpush1.bf16.msra.mxu0 0
    %1641 = vmatprep.subr.bf16.mxu0 0
    %1642 = vmatpush1.bf16.msra.mxu0 0
    %1643 = vmatprep.subr.bf16.mxu0 0
    %1644 = vmatpush1.bf16.msra.mxu0 0
    %1645 = vmatprep.mubr.bf16.mxu0 0
    %1646 = vmatmul.mubr.bf16.gmra.mrb[0].mxu0 %v1612
    %v1647 = vpop.f32.mrb[0].mxu0
    %v1648 = vadd.f32 0.0, %v1647
    %v1649 = vpop.f32.mrb[0].mxu0
    %v1650 = vadd.f32 0.0, %v1649
    %v1651 = vpop.f32.mrb[0].mxu0
    %v1652 = vpop.f32.mrb[0].mxu0
    %1653 = vdwg.mxu0
    %1654 = vmatprep.subr.bf16.mxu0 %v740
    %1655 = vmatpush1.bf16.msra.mxu0 %v739
    %1656 = vmatprep.subr.bf16.mxu0 %v744
    %1657 = vmatpush1.bf16.msra.mxu0 %v743
    %1658 = vmatprep.subr.bf16.mxu0 %v748
    %1659 = vmatpush1.bf16.msra.mxu0 %v747
    %1660 = vmatprep.subr.bf16.mxu0 %v752
    %1661 = vmatpush1.bf16.msra.mxu0 %v751
    %1662 = vmatprep.subr.bf16.mxu0 %v756
    %1663 = vmatpush1.bf16.msra.mxu0 %v755
    %1664 = vmatprep.subr.bf16.mxu0 %v760
    %1665 = vmatpush1.bf16.msra.mxu0 %v759
    %1666 = vmatprep.subr.bf16.mxu0 %v764
    %1667 = vmatpush1.bf16.msra.mxu0 %v763
    %1668 = vmatprep.subr.bf16.mxu0 %v768
    %1669 = vmatpush1.bf16.msra.mxu0 %v767
    %1670 = vmatprep.subr.bf16.mxu0 0
    %1671 = vmatpush1.bf16.msra.mxu0 0
    %1672 = vmatprep.subr.bf16.mxu0 0
    %1673 = vmatpush1.bf16.msra.mxu0 0
    %1674 = vmatprep.subr.bf16.mxu0 0
    %1675 = vmatpush1.bf16.msra.mxu0 0
    %1676 = vmatprep.subr.bf16.mxu0 0
    %1677 = vmatpush1.bf16.msra.mxu0 0
    %1678 = vmatprep.subr.bf16.mxu0 0
    %1679 = vmatpush1.bf16.msra.mxu0 0
    %1680 = vmatprep.subr.bf16.mxu0 0
    %1681 = vmatpush1.bf16.msra.mxu0 0
    %1682 = vmatprep.subr.bf16.mxu0 0
    %1683 = vmatpush1.bf16.msra.mxu0 0
    %1684 = vmatprep.subr.bf16.mxu0 0
    %1685 = vmatpush1.bf16.msra.mxu0 0
    %1686 = vmatprep.mubr.bf16.mxu0 0
    %1687 = vmatmul.mubr.bf16.gmra.mrb[0].mxu0 %v1612
    %v1688 = vpop.f32.mrb[0].mxu0
    %v1689 = vadd.f32 0.0, %v1688
    %v1690 = vpop.f32.mrb[0].mxu0
    %v1691 = vadd.f32 0.0, %v1690
    %v1692 = vpop.f32.mrb[0].mxu0
    %v1693 = vpop.f32.mrb[0].mxu0
    %1694 = vdwg.mxu0
    %v1695 = vadd.f32 %v1608, %v1648
    %v1696 = vadd.f32 %v1609, %v1650
    %v1697 = vadd.f32 %v1610, %v1689
    %v1698 = vadd.f32 %v1611, %v1691
    %v1699 = vxor.u32 %v1695, 2147483648
    %v1700 = vxor.u32 %v1696, 2147483648
    %v1701 = vxor.u32 %v1697, 2147483648
    %v1702 = vmul.f32 %v1699, 1.442695
    %v1703 = vpow.pop %v1702
    %v1704 = vmul.f32 %v1700, 1.442695
    %v1705 = vpow.pop %v1704
    %v1706 = vmul.f32 %v1701, 1.442695
    %v1707 = vpow.pop %v1706
    %v1708 = vadd.f32 %v1703, 1.0
    %v1709 = vadd.f32 %v1705, 1.0
    %v1710 = vadd.f32 %v1707, 1.0
    %v1711 = vrcp.pop %v1708
    %v1712 = vmul.f32 1.0, %v1711
    %v1713 = vrcp.pop %v1709
    %v1714 = vmul.f32 1.0, %v1713
    %v1715 = vrcp.pop %v1710
    %v1716 = vmul.f32 1.0, %v1715
    %v1717 = vtanh.pop %v1698
    %v1718 = vmul.f32 %v1714, %v1604
    %v1719 = vmul.f32 %v1712, %v1717
    %v1720 = vadd.f32 %v1718, %v1719
    %v1721 = vtanh.pop %v1720
    %v1722 = vmul.f32 %v1716, %v1721
    %1723 = vst [vmem:[#allocation3 + $0x38] sm:$0xff] %v1722
    %v1724 = vld [vmem:[#allocation3] sm:$0xff]
    %v1725 = vld [vmem:[#allocation3 + $0x8] sm:$0xff]
    %v1726 = vld [vmem:[#allocation3 + $0x10] sm:$0xff]
    %v1727 = vld [vmem:[#allocation3 + $0x18] sm:$0xff]
    %v1728 = vld [vmem:[#allocation3 + $0x20] sm:$0xff]
    %v1729 = vld [vmem:[#allocation3 + $0x28] sm:$0xff]
    %v1730 = vld [vmem:[#allocation3 + $0x30] sm:$0xff]
    %v1731 = vld [vmem:[#allocation3 + $0x38] sm:$0xff]
    %v1732 = vpack.c.bf16 %v1725, %v1724
    %v1733 = vpack.c.bf16 %v1727, %v1726
    %v1734 = vpack.c.bf16 %v1729, %v1728
    %v1735 = vpack.c.bf16 %v1731, %v1730
    %v1736 = vld [vmem:[#allocation13] sm:$0xff]
    %v1737 = vld [vmem:[#allocation13 + $0x8] sm:$0xff]
    %v1738 = vld [vmem:[#allocation13 + $0x10] sm:$0xff]
    %v1739 = vld [vmem:[#allocation13 + $0x18] sm:$0xff]
    %v1740 = vld [vmem:[#allocation13 + $0x20] sm:$0xff]
    %v1741 = vld [vmem:[#allocation13 + $0x28] sm:$0xff]
    %v1742 = vld [vmem:[#allocation13 + $0x30] sm:$0xff]
    %v1743 = vld [vmem:[#allocation13 + $0x38] sm:$0xff]
    %v1744 = vld [vmem:[#allocation13 + $0x40] sm:$0xff]
    %v1745 = vld [vmem:[#allocation13 + $0x48] sm:$0xff]
    %v1746 = vld [vmem:[#allocation13 + $0x50] sm:$0xff]
    %v1747 = vld [vmem:[#allocation13 + $0x58] sm:$0xff]
    %v1748 = vld [vmem:[#allocation13 + $0x60] sm:$0xff]
    %v1749 = vld [vmem:[#allocation13 + $0x68] sm:$0xff]
    %v1750 = vld [vmem:[#allocation13 + $0x70] sm:$0xff]
    %v1751 = vld [vmem:[#allocation13 + $0x78] sm:$0xff]
    %v1752 = vld [vmem:[#allocation13 + $0x80] sm:$0xff]
    %v1753 = vld [vmem:[#allocation13 + $0x88] sm:$0xff]
    %v1754 = vld [vmem:[#allocation13 + $0x90] sm:$0xff]
    %v1755 = vld [vmem:[#allocation13 + $0x98] sm:$0xff]
    %v1756 = vld [vmem:[#allocation13 + $0xa0] sm:$0xff]
    %v1757 = vld [vmem:[#allocation13 + $0xa8] sm:$0xff]
    %v1758 = vld [vmem:[#allocation13 + $0xb0] sm:$0xff]
    %v1759 = vld [vmem:[#allocation13 + $0xb8] sm:$0xff]
    %v1760 = vld [vmem:[#allocation13 + $0xc0] sm:$0xff]
    %v1761 = vld [vmem:[#allocation13 + $0xc8] sm:$0xff]
    %v1762 = vld [vmem:[#allocation13 + $0xd0] sm:$0xff]
    %v1763 = vld [vmem:[#allocation13 + $0xd8] sm:$0xff]
    %v1764 = vld [vmem:[#allocation13 + $0xe0] sm:$0xff]
    %v1765 = vld [vmem:[#allocation13 + $0xe8] sm:$0xff]
    %v1766 = vld [vmem:[#allocation13 + $0xf0] sm:$0xff]
    %v1767 = vld [vmem:[#allocation13 + $0xf8] sm:$0xff]
    %v1768 = vld [vmem:[%s7] sm:$0xf]
    %v1770 = vlaneseq
    %v1771 = vshrl.u32 %v1770, 7
    %v1772 = vsub.s32 0, %v1771
    %v1773 = vrot.slane %v1768, %v1772
    %v1774 = vlaneseq
    %v1775 = vshrl.u32 %v1774, 7
    %v1776 = vsub.s32 1, %v1775
    %v1777 = vrot.slane %v1768, %v1776
    %v1778 = vlaneseq
    %v1779 = vshrl.u32 %v1778, 7
    %v1780 = vsub.s32 2, %v1779
    %v1781 = vrot.slane %v1768, %v1780
    %v1782 = vlaneseq
    %v1783 = vshrl.u32 %v1782, 7
    %v1784 = vsub.s32 3, %v1783
    %v1785 = vrot.slane %v1768, %v1784
    %v1822 = vunpack.c.l.b16 %v1736
    %v1823 = vunpack.c.h.b16 %v1736
    %v1824 = vunpack.c.l.b16 %v1737
    %v1825 = vunpack.c.h.b16 %v1737
    %v1826 = vunpack.c.l.b16 %v1738
    %v1827 = vunpack.c.h.b16 %v1738
    %v1828 = vunpack.c.l.b16 %v1739
    %v1829 = vunpack.c.h.b16 %v1739
    %v1830 = vunpack.c.l.b16 %v1740
    %v1831 = vunpack.c.h.b16 %v1740
    %v1832 = vunpack.c.l.b16 %v1741
    %v1833 = vunpack.c.h.b16 %v1741
    %v1834 = vunpack.c.l.b16 %v1742
    %v1835 = vunpack.c.h.b16 %v1742
    %v1836 = vunpack.c.l.b16 %v1743
    %v1837 = vunpack.c.h.b16 %v1743
    %v1838 = vunpack.c.l.b16 %v1744
    %v1839 = vunpack.c.h.b16 %v1744
    %v1840 = vunpack.c.l.b16 %v1745
    %v1841 = vunpack.c.h.b16 %v1745
    %v1842 = vunpack.c.l.b16 %v1746
    %v1843 = vunpack.c.h.b16 %v1746
    %v1844 = vunpack.c.l.b16 %v1747
    %v1845 = vunpack.c.h.b16 %v1747
    %v1846 = vunpack.c.l.b16 %v1748
    %v1847 = vunpack.c.h.b16 %v1748
    %v1848 = vunpack.c.l.b16 %v1749
    %v1849 = vunpack.c.h.b16 %v1749
    %v1850 = vunpack.c.l.b16 %v1750
    %v1851 = vunpack.c.h.b16 %v1750
    %v1852 = vunpack.c.l.b16 %v1751
    %v1853 = vunpack.c.h.b16 %v1751
    %v1854 = vunpack.c.l.b16 %v1752
    %v1855 = vunpack.c.h.b16 %v1752
    %v1856 = vunpack.c.l.b16 %v1753
    %v1857 = vunpack.c.h.b16 %v1753
    %v1858 = vunpack.c.l.b16 %v1754
    %v1859 = vunpack.c.h.b16 %v1754
    %v1860 = vunpack.c.l.b16 %v1755
    %v1861 = vunpack.c.h.b16 %v1755
    %v1862 = vunpack.c.l.b16 %v1756
    %v1863 = vunpack.c.h.b16 %v1756
    %v1864 = vunpack.c.l.b16 %v1757
    %v1865 = vunpack.c.h.b16 %v1757
    %v1866 = vunpack.c.l.b16 %v1758
    %v1867 = vunpack.c.h.b16 %v1758
    %v1868 = vunpack.c.l.b16 %v1759
    %v1869 = vunpack.c.h.b16 %v1759
    %v1870 = vunpack.c.l.b16 %v1760
    %v1871 = vunpack.c.h.b16 %v1760
    %v1872 = vunpack.c.l.b16 %v1761
    %v1873 = vunpack.c.h.b16 %v1761
    %v1874 = vunpack.c.l.b16 %v1762
    %v1875 = vunpack.c.h.b16 %v1762
    %v1876 = vunpack.c.l.b16 %v1763
    %v1877 = vunpack.c.h.b16 %v1763
    %v1878 = vunpack.c.l.b16 %v1764
    %v1879 = vunpack.c.h.b16 %v1764
    %v1880 = vunpack.c.l.b16 %v1765
    %v1881 = vunpack.c.h.b16 %v1765
    %v1882 = vunpack.c.l.b16 %v1766
    %v1883 = vunpack.c.h.b16 %v1766
    %v1884 = vunpack.c.l.b16 %v1767
    %v1885 = vunpack.c.h.b16 %v1767
    %v1886 = vpack.c.b16 %v1826, %v1822
    %v1887 = vpack.c.b16 %v1827, %v1823
    %v1888 = vpack.c.b16 %v1828, %v1824
    %v1889 = vpack.c.b16 %v1829, %v1825
    %v1890 = vpack.c.b16 %v1834, %v1830
    %v1891 = vpack.c.b16 %v1835, %v1831
    %v1892 = vpack.c.b16 %v1836, %v1832
    %v1893 = vpack.c.b16 %v1837, %v1833
    %v1894 = vpack.c.b16 %v1842, %v1838
    %v1895 = vpack.c.b16 %v1843, %v1839
    %v1896 = vpack.c.b16 %v1844, %v1840
    %v1897 = vpack.c.b16 %v1845, %v1841
    %v1898 = vpack.c.b16 %v1850, %v1846
    %v1899 = vpack.c.b16 %v1851, %v1847
    %v1900 = vpack.c.b16 %v1852, %v1848
    %v1901 = vpack.c.b16 %v1853, %v1849
    %v1902 = vpack.c.b16 %v1858, %v1854
    %v1903 = vpack.c.b16 %v1859, %v1855
    %v1904 = vpack.c.b16 %v1860, %v1856
    %v1905 = vpack.c.b16 %v1861, %v1857
    %v1906 = vpack.c.b16 %v1866, %v1862
    %v1907 = vpack.c.b16 %v1867, %v1863
    %v1908 = vpack.c.b16 %v1868, %v1864
    %v1909 = vpack.c.b16 %v1869, %v1865
    %v1910 = vpack.c.b16 %v1874, %v1870
    %v1911 = vpack.c.b16 %v1875, %v1871
    %v1912 = vpack.c.b16 %v1876, %v1872
    %v1913 = vpack.c.b16 %v1877, %v1873
    %v1914 = vpack.c.b16 %v1882, %v1878
    %v1915 = vpack.c.b16 %v1883, %v1879
    %v1916 = vpack.c.b16 %v1884, %v1880
    %v1917 = vpack.c.b16 %v1885, %v1881
    %1950 = vmatprep.subr.bf16.mxu0 %v1887
    %1951 = vmatpush1.bf16.msra.mxu0 %v1886
    %1952 = vmatprep.subr.bf16.mxu0 %v1891
    %1953 = vmatpush1.bf16.msra.mxu0 %v1890
    %1954 = vmatprep.subr.bf16.mxu0 %v1895
    %1955 = vmatpush1.bf16.msra.mxu0 %v1894
    %1956 = vmatprep.subr.bf16.mxu0 %v1899
    %1957 = vmatpush1.bf16.msra.mxu0 %v1898
    %1958 = vmatprep.subr.bf16.mxu0 %v1903
    %1959 = vmatpush1.bf16.msra.mxu0 %v1902
    %1960 = vmatprep.subr.bf16.mxu0 %v1907
    %1961 = vmatpush1.bf16.msra.mxu0 %v1906
    %1962 = vmatprep.subr.bf16.mxu0 %v1911
    %1963 = vmatpush1.bf16.msra.mxu0 %v1910
    %1964 = vmatprep.subr.bf16.mxu0 %v1915
    %1965 = vmatpush1.bf16.msra.mxu0 %v1914
    %1966 = vmatprep.subr.bf16.mxu0 0
    %1967 = vmatpush1.bf16.msra.mxu0 0
    %1968 = vmatprep.subr.bf16.mxu0 0
    %1969 = vmatpush1.bf16.msra.mxu0 0
    %1970 = vmatprep.subr.bf16.mxu0 0
    %1971 = vmatpush1.bf16.msra.mxu0 0
    %1972 = vmatprep.subr.bf16.mxu0 0
    %1973 = vmatpush1.bf16.msra.mxu0 0
    %1974 = vmatprep.subr.bf16.mxu0 0
    %1975 = vmatpush1.bf16.msra.mxu0 0
    %1976 = vmatprep.subr.bf16.mxu0 0
    %1977 = vmatpush1.bf16.msra.mxu0 0
    %1978 = vmatprep.subr.bf16.mxu0 0
    %1979 = vmatpush1.bf16.msra.mxu0 0
    %1980 = vmatprep.subr.bf16.mxu0 0
    %1981 = vmatpush1.bf16.msra.mxu0 0
    %1982 = vmatprep.mubr.bf16.mxu0 0
    %1983 = vmatmul.mubr.bf16.gmra.mrb[0].mxu0 %v1732
    %v1984 = vpop.f32.mrb[0].mxu0
    %v1985 = vadd.f32 %v1773, %v1984
    %v1986 = vpop.f32.mrb[0].mxu0
    %v1987 = vadd.f32 %v1777, %v1986
    %v1988 = vpop.f32.mrb[0].mxu0
    %v1989 = vadd.f32 %v1773, %v1988
    %v1990 = vpop.f32.mrb[0].mxu0
    %v1991 = vadd.f32 %v1777, %v1990
    %1992 = vmatprep.mubr.bf16.mxu0 0
    %1993 = vmatmul.mubr.bf16.gmra.mrb[0].mxu0 %v1733
    %v1994 = vpop.f32.mrb[0].mxu0
    %v1995 = vadd.f32 %v1773, %v1994
    %v1996 = vpop.f32.mrb[0].mxu0
    %v1997 = vadd.f32 %v1777, %v1996
    %v1998 = vpop.f32.mrb[0].mxu0
    %v1999 = vadd.f32 %v1773, %v1998
    %v2000 = vpop.f32.mrb[0].mxu0
    %v2001 = vadd.f32 %v1777, %v2000
    %2002 = vmatprep.mubr.bf16.mxu0 0
    %2003 = vmatmul.mubr.bf16.gmra.mrb[0].mxu0 %v1734
    %v2004 = vpop.f32.mrb[0].mxu0
    %v2005 = vadd.f32 %v1773, %v2004
    %v2006 = vpop.f32.mrb[0].mxu0
    %v2007 = vadd.f32 %v1777, %v2006
    %v2008 = vpop.f32.mrb[0].mxu0
    %v2009 = vadd.f32 %v1773, %v2008
    %v2010 = vpop.f32.mrb[0].mxu0
    %v2011 = vadd.f32 %v1777, %v2010
    %2012 = vmatprep.mubr.bf16.mxu0 0
    %2013 = vmatmul.mubr.bf16.gmra.mrb[0].mxu0 %v1735
    %v2014 = vpop.f32.mrb[0].mxu0
    %v2015 = vadd.f32 %v1773, %v2014
    %v2016 = vpop.f32.mrb[0].mxu0
    %v2017 = vadd.f32 %v1777, %v2016
    %v2018 = vpop.f32.mrb[0].mxu0
    %v2019 = vadd.f32 %v1773, %v2018
    %v2020 = vpop.f32.mrb[0].mxu0
    %v2021 = vadd.f32 %v1777, %v2020
    %2022 = vdwg.mxu0
    %2023 = vmatprep.subr.bf16.mxu0 %v1889
    %2024 = vmatpush1.bf16.msra.mxu0 %v1888
    %2025 = vmatprep.subr.bf16.mxu0 %v1893
    %2026 = vmatpush1.bf16.msra.mxu0 %v1892
    %2027 = vmatprep.subr.bf16.mxu0 %v1897
    %2028 = vmatpush1.bf16.msra.mxu0 %v1896
    %2029 = vmatprep.subr.bf16.mxu0 %v1901
    %2030 = vmatpush1.bf16.msra.mxu0 %v1900
    %2031 = vmatprep.subr.bf16.mxu0 %v1905
    %2032 = vmatpush1.bf16.msra.mxu0 %v1904
    %2033 = vmatprep.subr.bf16.mxu0 %v1909
    %2034 = vmatpush1.bf16.msra.mxu0 %v1908
    %2035 = vmatprep.subr.bf16.mxu0 %v1913
    %2036 = vmatpush1.bf16.msra.mxu0 %v1912
    %2037 = vmatprep.subr.bf16.mxu0 %v1917
    %2038 = vmatpush1.bf16.msra.mxu0 %v1916
    %2039 = vmatprep.subr.bf16.mxu0 0
    %2040 = vmatpush1.bf16.msra.mxu0 0
    %2041 = vmatprep.subr.bf16.mxu0 0
    %2042 = vmatpush1.bf16.msra.mxu0 0
    %2043 = vmatprep.subr.bf16.mxu0 0
    %2044 = vmatpush1.bf16.msra.mxu0 0
    %2045 = vmatprep.subr.bf16.mxu0 0
    %2046 = vmatpush1.bf16.msra.mxu0 0
    %2047 = vmatprep.subr.bf16.mxu0 0
    %2048 = vmatpush1.bf16.msra.mxu0 0
    %2049 = vmatprep.subr.bf16.mxu0 0
    %2050 = vmatpush1.bf16.msra.mxu0 0
    %2051 = vmatprep.subr.bf16.mxu0 0
    %2052 = vmatpush1.bf16.msra.mxu0 0
    %2053 = vmatprep.subr.bf16.mxu0 0
    %2054 = vmatpush1.bf16.msra.mxu0 0
    %2055 = vmatprep.mubr.bf16.mxu0 0
    %2056 = vmatmul.mubr.bf16.gmra.mrb[0].mxu0 %v1732
    %v2057 = vpop.f32.mrb[0].mxu0
    %v2058 = vadd.f32 %v1781, %v2057
    %v2059 = vpop.f32.mrb[0].mxu0
    %v2060 = vadd.f32 %v1785, %v2059
    %v2061 = vpop.f32.mrb[0].mxu0
    %v2062 = vadd.f32 %v1781, %v2061
    %v2063 = vpop.f32.mrb[0].mxu0
    %v2064 = vadd.f32 %v1785, %v2063
    %2065 = vmatprep.mubr.bf16.mxu0 0
    %2066 = vmatmul.mubr.bf16.gmra.mrb[0].mxu0 %v1733
    %v2067 = vpop.f32.mrb[0].mxu0
    %v2068 = vadd.f32 %v1781, %v2067
    %v2069 = vpop.f32.mrb[0].mxu0
    %v2070 = vadd.f32 %v1785, %v2069
    %v2071 = vpop.f32.mrb[0].mxu0
    %v2072 = vadd.f32 %v1781, %v2071
    %v2073 = vpop.f32.mrb[0].mxu0
    %v2074 = vadd.f32 %v1785, %v2073
    %2075 = vmatprep.mubr.bf16.mxu0 0
    %2076 = vmatmul.mubr.bf16.gmra.mrb[0].mxu0 %v1734
    %v2077 = vpop.f32.mrb[0].mxu0
    %v2078 = vadd.f32 %v1781, %v2077
    %v2079 = vpop.f32.mrb[0].mxu0
    %v2080 = vadd.f32 %v1785, %v2079
    %v2081 = vpop.f32.mrb[0].mxu0
    %v2082 = vadd.f32 %v1781, %v2081
    %v2083 = vpop.f32.mrb[0].mxu0
    %v2084 = vadd.f32 %v1785, %v2083
    %2085 = vmatprep.mubr.bf16.mxu0 0
    %2086 = vmatmul.mubr.bf16.gmra.mrb[0].mxu0 %v1735
    %v2087 = vpop.f32.mrb[0].mxu0
    %v2088 = vadd.f32 %v1781, %v2087
    %v2089 = vpop.f32.mrb[0].mxu0
    %v2090 = vadd.f32 %v1785, %v2089
    %v2091 = vpop.f32.mrb[0].mxu0
    %v2092 = vadd.f32 %v1781, %v2091
    %v2093 = vpop.f32.mrb[0].mxu0
    %v2094 = vadd.f32 %v1785, %v2093
    %2095 = vdwg.mxu0
    %2096 = vst [vmem:[#allocation5] sm:$0xff] %v1985
    %2097 = vst [vmem:[#allocation5 + $0x8] sm:$0xff] %v1987
    %2098 = vst [vmem:[#allocation5 + $0x10] sm:$0xff] %v2058
    %2099 = vst [vmem:[#allocation5 + $0x18] sm:$0xff] %v2060
    %2100 = vst [vmem:[#allocation5 + $0x20] sm:$0xff] %v1989
    %2101 = vst [vmem:[#allocation5 + $0x28] sm:$0xff] %v1991
    %2102 = vst [vmem:[#allocation5 + $0x30] sm:$0xff] %v2062
    %2103 = vst [vmem:[#allocation5 + $0x38] sm:$0xff] %v2064
    %2104 = vst [vmem:[#allocation5 + $0x40] sm:$0xff] %v1995
    %2105 = vst [vmem:[#allocation5 + $0x48] sm:$0xff] %v1997
    %2106 = vst [vmem:[#allocation5 + $0x50] sm:$0xff] %v2068
    %2107 = vst [vmem:[#allocation5 + $0x58] sm:$0xff] %v2070
    %2108 = vst [vmem:[#allocation5 + $0x60] sm:$0xff] %v1999
    %2109 = vst [vmem:[#allocation5 + $0x68] sm:$0xff] %v2001
    %2110 = vst [vmem:[#allocation5 + $0x70] sm:$0xff] %v2072
    %2111 = vst [vmem:[#allocation5 + $0x78] sm:$0xff] %v2074
    %2112 = vst [vmem:[#allocation5 + $0x80] sm:$0xff] %v2005
    %2113 = vst [vmem:[#allocation5 + $0x88] sm:$0xff] %v2007
    %2114 = vst [vmem:[#allocation5 + $0x90] sm:$0xff] %v2078
    %2115 = vst [vmem:[#allocation5 + $0x98] sm:$0xff] %v2080
    %2116 = vst [vmem:[#allocation5 + $0xa0] sm:$0xff] %v2009
    %2117 = vst [vmem:[#allocation5 + $0xa8] sm:$0xff] %v2011
    %2118 = vst [vmem:[#allocation5 + $0xb0] sm:$0xff] %v2082
    %2119 = vst [vmem:[#allocation5 + $0xb8] sm:$0xff] %v2084
    %2120 = vst [vmem:[#allocation5 + $0xc0] sm:$0xff] %v2015
    %2121 = vst [vmem:[#allocation5 + $0xc8] sm:$0xff] %v2017
    %2122 = vst [vmem:[#allocation5 + $0xd0] sm:$0xff] %v2088
    %2123 = vst [vmem:[#allocation5 + $0xd8] sm:$0xff] %v2090
    %2124 = vst [vmem:[#allocation5 + $0xe0] sm:$0xff] %v2019
    %2125 = vst [vmem:[#allocation5 + $0xe8] sm:$0xff] %v2021
    %2126 = vst [vmem:[#allocation5 + $0xf0] sm:$0xff] %v2092
    %2127 = vst [vmem:[#allocation5 + $0xf8] sm:$0xff] %v2094
    %v2128 = vld [vmem:[#allocation15] sm:$0xff]
    %v2129 = vld [vmem:[#allocation15 + $0x8] sm:$0xff]
    %v2130 = vld [vmem:[#allocation15 + $0x10] sm:$0xff]
    %v2131 = vld [vmem:[#allocation15 + $0x18] sm:$0xff]
    %v2132 = vld [vmem:[#allocation15 + $0x20] sm:$0xff]
    %v2133 = vld [vmem:[#allocation15 + $0x28] sm:$0xff]
    %v2134 = vld [vmem:[#allocation15 + $0x30] sm:$0xff]
    %v2135 = vld [vmem:[#allocation15 + $0x38] sm:$0xff]
    %v2136 = vld [vmem:[#allocation15 + $0x40] sm:$0xff]
    %v2137 = vld [vmem:[#allocation15 + $0x48] sm:$0xff]
    %v2138 = vld [vmem:[#allocation15 + $0x50] sm:$0xff]
    %v2139 = vld [vmem:[#allocation15 + $0x58] sm:$0xff]
    %v2140 = vld [vmem:[#allocation15 + $0x60] sm:$0xff]
    %v2141 = vld [vmem:[#allocation15 + $0x68] sm:$0xff]
    %v2142 = vld [vmem:[#allocation15 + $0x70] sm:$0xff]
    %v2143 = vld [vmem:[#allocation15 + $0x78] sm:$0xff]
    %v2144 = vld [vmem:[#allocation15 + $0x80] sm:$0xff]
    %v2145 = vld [vmem:[#allocation15 + $0x88] sm:$0xff]
    %v2146 = vld [vmem:[#allocation15 + $0x90] sm:$0xff]
    %v2147 = vld [vmem:[#allocation15 + $0x98] sm:$0xff]
    %v2148 = vld [vmem:[#allocation15 + $0xa0] sm:$0xff]
    %v2149 = vld [vmem:[#allocation15 + $0xa8] sm:$0xff]
    %v2150 = vld [vmem:[#allocation15 + $0xb0] sm:$0xff]
    %v2151 = vld [vmem:[#allocation15 + $0xb8] sm:$0xff]
    %v2152 = vld [vmem:[#allocation15 + $0xc0] sm:$0xff]
    %v2153 = vld [vmem:[#allocation15 + $0xc8] sm:$0xff]
    %v2154 = vld [vmem:[#allocation15 + $0xd0] sm:$0xff]
    %v2155 = vld [vmem:[#allocation15 + $0xd8] sm:$0xff]
    %v2156 = vld [vmem:[#allocation15 + $0xe0] sm:$0xff]
    %v2157 = vld [vmem:[#allocation15 + $0xe8] sm:$0xff]
    %v2158 = vld [vmem:[#allocation15 + $0xf0] sm:$0xff]
    %v2159 = vld [vmem:[#allocation15 + $0xf8] sm:$0xff]
    %v2160 = vld [vmem:[#allocation5] sm:$0xff]
    %v2161 = vld [vmem:[#allocation5 + $0x8] sm:$0xff]
    %v2162 = vld [vmem:[#allocation5 + $0x10] sm:$0xff]
    %v2163 = vld [vmem:[#allocation5 + $0x18] sm:$0xff]
    %v2196 = vunpack.c.l.b16 %v2128
    %v2197 = vunpack.c.h.b16 %v2128
    %v2198 = vunpack.c.l.b16 %v2129
    %v2199 = vunpack.c.h.b16 %v2129
    %v2200 = vunpack.c.l.b16 %v2130
    %v2201 = vunpack.c.h.b16 %v2130
    %v2202 = vunpack.c.l.b16 %v2131
    %v2203 = vunpack.c.h.b16 %v2131
    %v2204 = vunpack.c.l.b16 %v2132
    %v2205 = vunpack.c.h.b16 %v2132
    %v2206 = vunpack.c.l.b16 %v2133
    %v2207 = vunpack.c.h.b16 %v2133
    %v2208 = vunpack.c.l.b16 %v2134
    %v2209 = vunpack.c.h.b16 %v2134
    %v2210 = vunpack.c.l.b16 %v2135
    %v2211 = vunpack.c.h.b16 %v2135
    %v2212 = vunpack.c.l.b16 %v2136
    %v2213 = vunpack.c.h.b16 %v2136
    %v2214 = vunpack.c.l.b16 %v2137
    %v2215 = vunpack.c.h.b16 %v2137
    %v2216 = vunpack.c.l.b16 %v2138
    %v2217 = vunpack.c.h.b16 %v2138
    %v2218 = vunpack.c.l.b16 %v2139
    %v2219 = vunpack.c.h.b16 %v2139
    %v2220 = vunpack.c.l.b16 %v2140
    %v2221 = vunpack.c.h.b16 %v2140
    %v2222 = vunpack.c.l.b16 %v2141
    %v2223 = vunpack.c.h.b16 %v2141
    %v2224 = vunpack.c.l.b16 %v2142
    %v2225 = vunpack.c.h.b16 %v2142
    %v2226 = vunpack.c.l.b16 %v2143
    %v2227 = vunpack.c.h.b16 %v2143
    %v2228 = vunpack.c.l.b16 %v2144
    %v2229 = vunpack.c.h.b16 %v2144
    %v2230 = vunpack.c.l.b16 %v2145
    %v2231 = vunpack.c.h.b16 %v2145
    %v2232 = vunpack.c.l.b16 %v2146
    %v2233 = vunpack.c.h.b16 %v2146
    %v2234 = vunpack.c.l.b16 %v2147
    %v2235 = vunpack.c.h.b16 %v2147
    %v2236 = vunpack.c.l.b16 %v2148
    %v2237 = vunpack.c.h.b16 %v2148
    %v2238 = vunpack.c.l.b16 %v2149
    %v2239 = vunpack.c.h.b16 %v2149
    %v2240 = vunpack.c.l.b16 %v2150
    %v2241 = vunpack.c.h.b16 %v2150
    %v2242 = vunpack.c.l.b16 %v2151
    %v2243 = vunpack.c.h.b16 %v2151
    %v2244 = vunpack.c.l.b16 %v2152
    %v2245 = vunpack.c.h.b16 %v2152
    %v2246 = vunpack.c.l.b16 %v2153
    %v2247 = vunpack.c.h.b16 %v2153
    %v2248 = vunpack.c.l.b16 %v2154
    %v2249 = vunpack.c.h.b16 %v2154
    %v2250 = vunpack.c.l.b16 %v2155
    %v2251 = vunpack.c.h.b16 %v2155
    %v2252 = vunpack.c.l.b16 %v2156
    %v2253 = vunpack.c.h.b16 %v2156
    %v2254 = vunpack.c.l.b16 %v2157
    %v2255 = vunpack.c.h.b16 %v2157
    %v2256 = vunpack.c.l.b16 %v2158
    %v2257 = vunpack.c.h.b16 %v2158
    %v2258 = vunpack.c.l.b16 %v2159
    %v2259 = vunpack.c.h.b16 %v2159
    %v2260 = vpack.c.b16 %v2200, %v2196
    %v2261 = vpack.c.b16 %v2201, %v2197
    %v2262 = vpack.c.b16 %v2202, %v2198
    %v2263 = vpack.c.b16 %v2203, %v2199
    %v2264 = vpack.c.b16 %v2208, %v2204
    %v2265 = vpack.c.b16 %v2209, %v2205
    %v2266 = vpack.c.b16 %v2210, %v2206
    %v2267 = vpack.c.b16 %v2211, %v2207
    %v2268 = vpack.c.b16 %v2216, %v2212
    %v2269 = vpack.c.b16 %v2217, %v2213
    %v2270 = vpack.c.b16 %v2218, %v2214
    %v2271 = vpack.c.b16 %v2219, %v2215
    %v2272 = vpack.c.b16 %v2224, %v2220
    %v2273 = vpack.c.b16 %v2225, %v2221
    %v2274 = vpack.c.b16 %v2226, %v2222
    %v2275 = vpack.c.b16 %v2227, %v2223
    %v2276 = vpack.c.b16 %v2232, %v2228
    %v2277 = vpack.c.b16 %v2233, %v2229
    %v2278 = vpack.c.b16 %v2234, %v2230
    %v2279 = vpack.c.b16 %v2235, %v2231
    %v2280 = vpack.c.b16 %v2240, %v2236
    %v2281 = vpack.c.b16 %v2241, %v2237
    %v2282 = vpack.c.b16 %v2242, %v2238
    %v2283 = vpack.c.b16 %v2243, %v2239
    %v2284 = vpack.c.b16 %v2248, %v2244
    %v2285 = vpack.c.b16 %v2249, %v2245
    %v2286 = vpack.c.b16 %v2250, %v2246
    %v2287 = vpack.c.b16 %v2251, %v2247
    %v2288 = vpack.c.b16 %v2256, %v2252
    %v2289 = vpack.c.b16 %v2257, %v2253
    %v2290 = vpack.c.b16 %v2258, %v2254
    %v2291 = vpack.c.b16 %v2259, %v2255
    %2324 = vmatprep.subr.bf16.mxu0 %v2261
    %2325 = vmatpush1.bf16.msra.mxu0 %v2260
    %2326 = vmatprep.subr.bf16.mxu0 %v2265
    %2327 = vmatpush1.bf16.msra.mxu0 %v2264
    %2328 = vmatprep.subr.bf16.mxu0 %v2269
    %2329 = vmatpush1.bf16.msra.mxu0 %v2268
    %2330 = vmatprep.subr.bf16.mxu0 %v2273
    %2331 = vmatpush1.bf16.msra.mxu0 %v2272
    %2332 = vmatprep.subr.bf16.mxu0 %v2277
    %2333 = vmatpush1.bf16.msra.mxu0 %v2276
    %2334 = vmatprep.subr.bf16.mxu0 %v2281
    %2335 = vmatpush1.bf16.msra.mxu0 %v2280
    %2336 = vmatprep.subr.bf16.mxu0 %v2285
    %2337 = vmatpush1.bf16.msra.mxu0 %v2284
    %2338 = vmatprep.subr.bf16.mxu0 %v2289
    %2339 = vmatpush1.bf16.msra.mxu0 %v2288
    %2340 = vmatprep.subr.bf16.mxu0 0
    %2341 = vmatpush1.bf16.msra.mxu0 0
    %2342 = vmatprep.subr.bf16.mxu0 0
    %2343 = vmatpush1.bf16.msra.mxu0 0
    %2344 = vmatprep.subr.bf16.mxu0 0
    %2345 = vmatpush1.bf16.msra.mxu0 0
    %2346 = vmatprep.subr.bf16.mxu0 0
    %2347 = vmatpush1.bf16.msra.mxu0 0
    %2348 = vmatprep.subr.bf16.mxu0 0
    %2349 = vmatpush1.bf16.msra.mxu0 0
    %2350 = vmatprep.subr.bf16.mxu0 0
    %2351 = vmatpush1.bf16.msra.mxu0 0
    %2352 = vmatprep.subr.bf16.mxu0 0
    %2353 = vmatpush1.bf16.msra.mxu0 0
    %2354 = vmatprep.subr.bf16.mxu0 0
    %2355 = vmatpush1.bf16.msra.mxu0 0
    %2356 = vmatprep.mubr.bf16.mxu0 0
    %2357 = vmatmul.mubr.bf16.gmra.mrb[0].mxu0 0
    %v2358 = vpop.f32.mrb[0].mxu0
    %v2359 = vadd.f32 0.0, %v2358
    %v2360 = vpop.f32.mrb[0].mxu0
    %v2361 = vadd.f32 0.0, %v2360
    %v2362 = vpop.f32.mrb[0].mxu0
    %v2363 = vpop.f32.mrb[0].mxu0
    %2364 = vdwg.mxu0
    %2365 = vmatprep.subr.bf16.mxu0 %v2263
    %2366 = vmatpush1.bf16.msra.mxu0 %v2262
    %2367 = vmatprep.subr.bf16.mxu0 %v2267
    %2368 = vmatpush1.bf16.msra.mxu0 %v2266
    %2369 = vmatprep.subr.bf16.mxu0 %v2271
    %2370 = vmatpush1.bf16.msra.mxu0 %v2270
    %2371 = vmatprep.subr.bf16.mxu0 %v2275
    %2372 = vmatpush1.bf16.msra.mxu0 %v2274
    %2373 = vmatprep.subr.bf16.mxu0 %v2279
    %2374 = vmatpush1.bf16.msra.mxu0 %v2278
    %2375 = vmatprep.subr.bf16.mxu0 %v2283
    %2376 = vmatpush1.bf16.msra.mxu0 %v2282
    %2377 = vmatprep.subr.bf16.mxu0 %v2287
    %2378 = vmatpush1.bf16.msra.mxu0 %v2286
    %2379 = vmatprep.subr.bf16.mxu0 %v2291
    %2380 = vmatpush1.bf16.msra.mxu0 %v2290
    %2381 = vmatprep.subr.bf16.mxu0 0
    %2382 = vmatpush1.bf16.msra.mxu0 0
    %2383 = vmatprep.subr.bf16.mxu0 0
    %2384 = vmatpush1.bf16.msra.mxu0 0
    %2385 = vmatprep.subr.bf16.mxu0 0
    %2386 = vmatpush1.bf16.msra.mxu0 0
    %2387 = vmatprep.subr.bf16.mxu0 0
    %2388 = vmatpush1.bf16.msra.mxu0 0
    %2389 = vmatprep.subr.bf16.mxu0 0
    %2390 = vmatpush1.bf16.msra.mxu0 0
    %2391 = vmatprep.subr.bf16.mxu0 0
    %2392 = vmatpush1.bf16.msra.mxu0 0
    %2393 = vmatprep.subr.bf16.mxu0 0
    %2394 = vmatpush1.bf16.msra.mxu0 0
    %2395 = vmatprep.subr.bf16.mxu0 0
    %2396 = vmatpush1.bf16.msra.mxu0 0
    %2397 = vmatprep.mubr.bf16.mxu0 0
    %2398 = vmatmul.mubr.bf16.gmra.mrb[0].mxu0 0
    %v2399 = vpop.f32.mrb[0].mxu0
    %v2400 = vadd.f32 0.0, %v2399
    %v2401 = vpop.f32.mrb[0].mxu0
    %v2402 = vadd.f32 0.0, %v2401
    %v2403 = vpop.f32.mrb[0].mxu0
    %v2404 = vpop.f32.mrb[0].mxu0
    %2405 = vdwg.mxu0
    %v2406 = vadd.f32 %v2160, %v2359
    %v2407 = vadd.f32 %v2161, %v2361
    %v2408 = vadd.f32 %v2162, %v2400
    %v2409 = vadd.f32 %v2163, %v2402
    %v2410 = vxor.u32 %v2406, 2147483648
    %v2411 = vxor.u32 %v2407, 2147483648
    %v2412 = vxor.u32 %v2408, 2147483648
    %v2413 = vmul.f32 %v2410, 1.442695
    %v2414 = vpow.pop %v2413
    %v2415 = vmul.f32 %v2411, 1.442695
    %v2416 = vpow.pop %v2415
    %v2417 = vmul.f32 %v2412, 1.442695
    %v2418 = vpow.pop %v2417
    %v2419 = vadd.f32 %v2414, 1.0
    %v2420 = vadd.f32 %v2416, 1.0
    %v2421 = vadd.f32 %v2418, 1.0
    %v2422 = vrcp.pop %v2419
    %v2423 = vmul.f32 1.0, %v2422
    %v2424 = vrcp.pop %v2420
    %v2425 = vmul.f32 1.0, %v2424
    %v2426 = vrcp.pop %v2421
    %v2427 = vmul.f32 1.0, %v2426
    %v2428 = vtanh.pop %v2409
    %v2429 = vmul.f32 %v2425, 0.0
    %v2430 = vmul.f32 %v2423, %v2428
    %v2431 = vadd.f32 %v2429, %v2430
    %v2432 = vtanh.pop %v2431
    %v2433 = vmul.f32 %v2427, %v2432
    %2434 = vst [vmem:[#allocation4] sm:$0xff] %v2433
    %v2435 = vld [vmem:[#allocation5 + $0x20] sm:$0xff]
    %v2436 = vld [vmem:[#allocation5 + $0x28] sm:$0xff]
    %v2437 = vld [vmem:[#allocation5 + $0x30] sm:$0xff]
    %v2438 = vld [vmem:[#allocation5 + $0x38] sm:$0xff]
    %v2439 = vpack.c.bf16 %v2433, %v2433
    %2440 = vmatprep.subr.bf16.mxu0 %v2261
    %2441 = vmatpush1.bf16.msra.mxu0 %v2260
    %2442 = vmatprep.subr.bf16.mxu0 %v2265
    %2443 = vmatpush1.bf16.msra.mxu0 %v2264
    %2444 = vmatprep.subr.bf16.mxu0 %v2269
    %2445 = vmatpush1.bf16.msra.mxu0 %v2268
    %2446 = vmatprep.subr.bf16.mxu0 %v2273
    %2447 = vmatpush1.bf16.msra.mxu0 %v2272
    %2448 = vmatprep.subr.bf16.mxu0 %v2277
    %2449 = vmatpush1.bf16.msra.mxu0 %v2276
    %2450 = vmatprep.subr.bf16.mxu0 %v2281
    %2451 = vmatpush1.bf16.msra.mxu0 %v2280
    %2452 = vmatprep.subr.bf16.mxu0 %v2285
    %2453 = vmatpush1.bf16.msra.mxu0 %v2284
    %2454 = vmatprep.subr.bf16.mxu0 %v2289
    %2455 = vmatpush1.bf16.msra.mxu0 %v2288
    %2456 = vmatprep.subr.bf16.mxu0 0
    %2457 = vmatpush1.bf16.msra.mxu0 0
    %2458 = vmatprep.subr.bf16.mxu0 0
    %2459 = vmatpush1.bf16.msra.mxu0 0
    %2460 = vmatprep.subr.bf16.mxu0 0
    %2461 = vmatpush1.bf16.msra.mxu0 0
    %2462 = vmatprep.subr.bf16.mxu0 0
    %2463 = vmatpush1.bf16.msra.mxu0 0
    %2464 = vmatprep.subr.bf16.mxu0 0
    %2465 = vmatpush1.bf16.msra.mxu0 0
    %2466 = vmatprep.subr.bf16.mxu0 0
    %2467 = vmatpush1.bf16.msra.mxu0 0
    %2468 = vmatprep.subr.bf16.mxu0 0
    %2469 = vmatpush1.bf16.msra.mxu0 0
    %2470 = vmatprep.subr.bf16.mxu0 0
    %2471 = vmatpush1.bf16.msra.mxu0 0
    %2472 = vmatprep.mubr.bf16.mxu0 0
    %2473 = vmatmul.mubr.bf16.gmra.mrb[0].mxu0 %v2439
    %v2474 = vpop.f32.mrb[0].mxu0
    %v2475 = vadd.f32 0.0, %v2474
    %v2476 = vpop.f32.mrb[0].mxu0
    %v2477 = vadd.f32 0.0, %v2476
    %v2478 = vpop.f32.mrb[0].mxu0
    %v2479 = vpop.f32.mrb[0].mxu0
    %2480 = vdwg.mxu0
    %2481 = vmatprep.subr.bf16.mxu0 %v2263
    %2482 = vmatpush1.bf16.msra.mxu0 %v2262
    %2483 = vmatprep.subr.bf16.mxu0 %v2267
    %2484 = vmatpush1.bf16.msra.mxu0 %v2266
    %2485 = vmatprep.subr.bf16.mxu0 %v2271
    %2486 = vmatpush1.bf16.msra.mxu0 %v2270
    %2487 = vmatprep.subr.bf16.mxu0 %v2275
    %2488 = vmatpush1.bf16.msra.mxu0 %v2274
    %2489 = vmatprep.subr.bf16.mxu0 %v2279
    %2490 = vmatpush1.bf16.msra.mxu0 %v2278
    %2491 = vmatprep.subr.bf16.mxu0 %v2283
    %2492 = vmatpush1.bf16.msra.mxu0 %v2282
    %2493 = vmatprep.subr.bf16.mxu0 %v2287
    %2494 = vmatpush1.bf16.msra.mxu0 %v2286
    %2495 = vmatprep.subr.bf16.mxu0 %v2291
    %2496 = vmatpush1.bf16.msra.mxu0 %v2290
    %2497 = vmatprep.subr.bf16.mxu0 0
    %2498 = vmatpush1.bf16.msra.mxu0 0
    %2499 = vmatprep.subr.bf16.mxu0 0
    %2500 = vmatpush1.bf16.msra.mxu0 0
    %2501 = vmatprep.subr.bf16.mxu0 0
    %2502 = vmatpush1.bf16.msra.mxu0 0
    %2503 = vmatprep.subr.bf16.mxu0 0
    %2504 = vmatpush1.bf16.msra.mxu0 0
    %2505 = vmatprep.subr.bf16.mxu0 0
    %2506 = vmatpush1.bf16.msra.mxu0 0
    %2507 = vmatprep.subr.bf16.mxu0 0
    %2508 = vmatpush1.bf16.msra.mxu0 0
    %2509 = vmatprep.subr.bf16.mxu0 0
    %2510 = vmatpush1.bf16.msra.mxu0 0
    %2511 = vmatprep.subr.bf16.mxu0 0
    %2512 = vmatpush1.bf16.msra.mxu0 0
    %2513 = vmatprep.mubr.bf16.mxu0 0
    %2514 = vmatmul.mubr.bf16.gmra.mrb[0].mxu0 %v2439
    %v2515 = vpop.f32.mrb[0].mxu0
    %v2516 = vadd.f32 0.0, %v2515
    %v2517 = vpop.f32.mrb[0].mxu0
    %v2518 = vadd.f32 0.0, %v2517
    %v2519 = vpop.f32.mrb[0].mxu0
    %v2520 = vpop.f32.mrb[0].mxu0
    %2521 = vdwg.mxu0
    %v2522 = vadd.f32 %v2435, %v2475
    %v2523 = vadd.f32 %v2436, %v2477
    %v2524 = vadd.f32 %v2437, %v2516
    %v2525 = vadd.f32 %v2438, %v2518
    %v2526 = vxor.u32 %v2522, 2147483648
    %v2527 = vxor.u32 %v2523, 2147483648
    %v2528 = vxor.u32 %v2524, 2147483648
    %v2529 = vmul.f32 %v2526, 1.442695
    %v2530 = vpow.pop %v2529
    %v2531 = vmul.f32 %v2527, 1.442695
    %v2532 = vpow.pop %v2531
    %v2533 = vmul.f32 %v2528, 1.442695
    %v2534 = vpow.pop %v2533
    %v2535 = vadd.f32 %v2530, 1.0
    %v2536 = vadd.f32 %v2532, 1.0
    %v2537 = vadd.f32 %v2534, 1.0
    %v2538 = vrcp.pop %v2535
    %v2539 = vmul.f32 1.0, %v2538
    %v2540 = vrcp.pop %v2536
    %v2541 = vmul.f32 1.0, %v2540
    %v2542 = vrcp.pop %v2537
    %v2543 = vmul.f32 1.0, %v2542
    %v2544 = vtanh.pop %v2525
    %v2545 = vmul.f32 %v2541, %v2431
    %v2546 = vmul.f32 %v2539, %v2544
    %v2547 = vadd.f32 %v2545, %v2546
    %v2548 = vtanh.pop %v2547
    %v2549 = vmul.f32 %v2543, %v2548
    %2550 = vst [vmem:[#allocation4 + $0x8] sm:$0xff] %v2549
    %v2551 = vld [vmem:[#allocation5 + $0x40] sm:$0xff]
    %v2552 = vld [vmem:[#allocation5 + $0x48] sm:$0xff]
    %v2553 = vld [vmem:[#allocation5 + $0x50] sm:$0xff]
    %v2554 = vld [vmem:[#allocation5 + $0x58] sm:$0xff]
    %v2555 = vpack.c.bf16 %v2549, %v2549
    %2556 = vmatprep.subr.bf16.mxu0 %v2261
    %2557 = vmatpush1.bf16.msra.mxu0 %v2260
    %2558 = vmatprep.subr.bf16.mxu0 %v2265
    %2559 = vmatpush1.bf16.msra.mxu0 %v2264
    %2560 = vmatprep.subr.bf16.mxu0 %v2269
    %2561 = vmatpush1.bf16.msra.mxu0 %v2268
    %2562 = vmatprep.subr.bf16.mxu0 %v2273
    %2563 = vmatpush1.bf16.msra.mxu0 %v2272
    %2564 = vmatprep.subr.bf16.mxu0 %v2277
    %2565 = vmatpush1.bf16.msra.mxu0 %v2276
    %2566 = vmatprep.subr.bf16.mxu0 %v2281
    %2567 = vmatpush1.bf16.msra.mxu0 %v2280
    %2568 = vmatprep.subr.bf16.mxu0 %v2285
    %2569 = vmatpush1.bf16.msra.mxu0 %v2284
    %2570 = vmatprep.subr.bf16.mxu0 %v2289
    %2571 = vmatpush1.bf16.msra.mxu0 %v2288
    %2572 = vmatprep.subr.bf16.mxu0 0
    %2573 = vmatpush1.bf16.msra.mxu0 0
    %2574 = vmatprep.subr.bf16.mxu0 0
    %2575 = vmatpush1.bf16.msra.mxu0 0
    %2576 = vmatprep.subr.bf16.mxu0 0
    %2577 = vmatpush1.bf16.msra.mxu0 0
    %2578 = vmatprep.subr.bf16.mxu0 0
    %2579 = vmatpush1.bf16.msra.mxu0 0
    %2580 = vmatprep.subr.bf16.mxu0 0
    %2581 = vmatpush1.bf16.msra.mxu0 0
    %2582 = vmatprep.subr.bf16.mxu0 0
    %2583 = vmatpush1.bf16.msra.mxu0 0
    %2584 = vmatprep.subr.bf16.mxu0 0
    %2585 = vmatpush1.bf16.msra.mxu0 0
    %2586 = vmatprep.subr.bf16.mxu0 0
    %2587 = vmatpush1.bf16.msra.mxu0 0
    %2588 = vmatprep.mubr.bf16.mxu0 0
    %2589 = vmatmul.mubr.bf16.gmra.mrb[0].mxu0 %v2555
    %v2590 = vpop.f32.mrb[0].mxu0
    %v2591 = vadd.f32 0.0, %v2590
    %v2592 = vpop.f32.mrb[0].mxu0
    %v2593 = vadd.f32 0.0, %v2592
    %v2594 = vpop.f32.mrb[0].mxu0
    %v2595 = vpop.f32.mrb[0].mxu0
    %2596 = vdwg.mxu0
    %2597 = vmatprep.subr.bf16.mxu0 %v2263
    %2598 = vmatpush1.bf16.msra.mxu0 %v2262
    %2599 = vmatprep.subr.bf16.mxu0 %v2267
    %2600 = vmatpush1.bf16.msra.mxu0 %v2266
    %2601 = vmatprep.subr.bf16.mxu0 %v2271
    %2602 = vmatpush1.bf16.msra.mxu0 %v2270
    %2603 = vmatprep.subr.bf16.mxu0 %v2275
    %2604 = vmatpush1.bf16.msra.mxu0 %v2274
    %2605 = vmatprep.subr.bf16.mxu0 %v2279
    %2606 = vmatpush1.bf16.msra.mxu0 %v2278
    %2607 = vmatprep.subr.bf16.mxu0 %v2283
    %2608 = vmatpush1.bf16.msra.mxu0 %v2282
    %2609 = vmatprep.subr.bf16.mxu0 %v2287
    %2610 = vmatpush1.bf16.msra.mxu0 %v2286
    %2611 = vmatprep.subr.bf16.mxu0 %v2291
    %2612 = vmatpush1.bf16.msra.mxu0 %v2290
    %2613 = vmatprep.subr.bf16.mxu0 0
    %2614 = vmatpush1.bf16.msra.mxu0 0
    %2615 = vmatprep.subr.bf16.mxu0 0
    %2616 = vmatpush1.bf16.msra.mxu0 0
    %2617 = vmatprep.subr.bf16.mxu0 0
    %2618 = vmatpush1.bf16.msra.mxu0 0
    %2619 = vmatprep.subr.bf16.mxu0 0
    %2620 = vmatpush1.bf16.msra.mxu0 0
    %2621 = vmatprep.subr.bf16.mxu0 0
    %2622 = vmatpush1.bf16.msra.mxu0 0
    %2623 = vmatprep.subr.bf16.mxu0 0
    %2624 = vmatpush1.bf16.msra.mxu0 0
    %2625 = vmatprep.subr.bf16.mxu0 0
    %2626 = vmatpush1.bf16.msra.mxu0 0
    %2627 = vmatprep.subr.bf16.mxu0 0
    %2628 = vmatpush1.bf16.msra.mxu0 0
    %2629 = vmatprep.mubr.bf16.mxu0 0
    %2630 = vmatmul.mubr.bf16.gmra.mrb[0].mxu0 %v2555
    %v2631 = vpop.f32.mrb[0].mxu0
    %v2632 = vadd.f32 0.0, %v2631
    %v2633 = vpop.f32.mrb[0].mxu0
    %v2634 = vadd.f32 0.0, %v2633
    %v2635 = vpop.f32.mrb[0].mxu0
    %v2636 = vpop.f32.mrb[0].mxu0
    %2637 = vdwg.mxu0
    %v2638 = vadd.f32 %v2551, %v2591
    %v2639 = vadd.f32 %v2552, %v2593
    %v2640 = vadd.f32 %v2553, %v2632
    %v2641 = vadd.f32 %v2554, %v2634
    %v2642 = vxor.u32 %v2638, 2147483648
    %v2643 = vxor.u32 %v2639, 2147483648
    %v2644 = vxor.u32 %v2640, 2147483648
    %v2645 = vmul.f32 %v2642, 1.442695
    %v2646 = vpow.pop %v2645
    %v2647 = vmul.f32 %v2643, 1.442695
    %v2648 = vpow.pop %v2647
    %v2649 = vmul.f32 %v2644, 1.442695
    %v2650 = vpow.pop %v2649
    %v2651 = vadd.f32 %v2646, 1.0
    %v2652 = vadd.f32 %v2648, 1.0
    %v2653 = vadd.f32 %v2650, 1.0
    %v2654 = vrcp.pop %v2651
    %v2655 = vmul.f32 1.0, %v2654
    %v2656 = vrcp.pop %v2652
    %v2657 = vmul.f32 1.0, %v2656
    %v2658 = vrcp.pop %v2653
    %v2659 = vmul.f32 1.0, %v2658
    %v2660 = vtanh.pop %v2641
    %v2661 = vmul.f32 %v2657, %v2547
    %v2662 = vmul.f32 %v2655, %v2660
    %v2663 = vadd.f32 %v2661, %v2662
    %v2664 = vtanh.pop %v2663
    %v2665 = vmul.f32 %v2659, %v2664
    %2666 = vst [vmem:[#allocation4 + $0x10] sm:$0xff] %v2665
    %v2667 = vld [vmem:[#allocation5 + $0x60] sm:$0xff]
    %v2668 = vld [vmem:[#allocation5 + $0x68] sm:$0xff]
    %v2669 = vld [vmem:[#allocation5 + $0x70] sm:$0xff]
    %v2670 = vld [vmem:[#allocation5 + $0x78] sm:$0xff]
    %v2671 = vpack.c.bf16 %v2665, %v2665
    %2672 = vmatprep.subr.bf16.mxu0 %v2261
    %2673 = vmatpush1.bf16.msra.mxu0 %v2260
    %2674 = vmatprep.subr.bf16.mxu0 %v2265
    %2675 = vmatpush1.bf16.msra.mxu0 %v2264
    %2676 = vmatprep.subr.bf16.mxu0 %v2269
    %2677 = vmatpush1.bf16.msra.mxu0 %v2268
    %2678 = vmatprep.subr.bf16.mxu0 %v2273
    %2679 = vmatpush1.bf16.msra.mxu0 %v2272
    %2680 = vmatprep.subr.bf16.mxu0 %v2277
    %2681 = vmatpush1.bf16.msra.mxu0 %v2276
    %2682 = vmatprep.subr.bf16.mxu0 %v2281
    %2683 = vmatpush1.bf16.msra.mxu0 %v2280
    %2684 = vmatprep.subr.bf16.mxu0 %v2285
    %2685 = vmatpush1.bf16.msra.mxu0 %v2284
    %2686 = vmatprep.subr.bf16.mxu0 %v2289
    %2687 = vmatpush1.bf16.msra.mxu0 %v2288
    %2688 = vmatprep.subr.bf16.mxu0 0
    %2689 = vmatpush1.bf16.msra.mxu0 0
    %2690 = vmatprep.subr.bf16.mxu0 0
    %2691 = vmatpush1.bf16.msra.mxu0 0
    %2692 = vmatprep.subr.bf16.mxu0 0
    %2693 = vmatpush1.bf16.msra.mxu0 0
    %2694 = vmatprep.subr.bf16.mxu0 0
    %2695 = vmatpush1.bf16.msra.mxu0 0
    %2696 = vmatprep.subr.bf16.mxu0 0
    %2697 = vmatpush1.bf16.msra.mxu0 0
    %2698 = vmatprep.subr.bf16.mxu0 0
    %2699 = vmatpush1.bf16.msra.mxu0 0
    %2700 = vmatprep.subr.bf16.mxu0 0
    %2701 = vmatpush1.bf16.msra.mxu0 0
    %2702 = vmatprep.subr.bf16.mxu0 0
    %2703 = vmatpush1.bf16.msra.mxu0 0
    %2704 = vmatprep.mubr.bf16.mxu0 0
    %2705 = vmatmul.mubr.bf16.gmra.mrb[0].mxu0 %v2671
    %v2706 = vpop.f32.mrb[0].mxu0
    %v2707 = vadd.f32 0.0, %v2706
    %v2708 = vpop.f32.mrb[0].mxu0
    %v2709 = vadd.f32 0.0, %v2708
    %v2710 = vpop.f32.mrb[0].mxu0
    %v2711 = vpop.f32.mrb[0].mxu0
    %2712 = vdwg.mxu0
    %2713 = vmatprep.subr.bf16.mxu0 %v2263
    %2714 = vmatpush1.bf16.msra.mxu0 %v2262
    %2715 = vmatprep.subr.bf16.mxu0 %v2267
    %2716 = vmatpush1.bf16.msra.mxu0 %v2266
    %2717 = vmatprep.subr.bf16.mxu0 %v2271
    %2718 = vmatpush1.bf16.msra.mxu0 %v2270
    %2719 = vmatprep.subr.bf16.mxu0 %v2275
    %2720 = vmatpush1.bf16.msra.mxu0 %v2274
    %2721 = vmatprep.subr.bf16.mxu0 %v2279
    %2722 = vmatpush1.bf16.msra.mxu0 %v2278
    %2723 = vmatprep.subr.bf16.mxu0 %v2283
    %2724 = vmatpush1.bf16.msra.mxu0 %v2282
    %2725 = vmatprep.subr.bf16.mxu0 %v2287
    %2726 = vmatpush1.bf16.msra.mxu0 %v2286
    %2727 = vmatprep.subr.bf16.mxu0 %v2291
    %2728 = vmatpush1.bf16.msra.mxu0 %v2290
    %2729 = vmatprep.subr.bf16.mxu0 0
    %2730 = vmatpush1.bf16.msra.mxu0 0
    %2731 = vmatprep.subr.bf16.mxu0 0
    %2732 = vmatpush1.bf16.msra.mxu0 0
    %2733 = vmatprep.subr.bf16.mxu0 0
    %2734 = vmatpush1.bf16.msra.mxu0 0
    %2735 = vmatprep.subr.bf16.mxu0 0
    %2736 = vmatpush1.bf16.msra.mxu0 0
    %2737 = vmatprep.subr.bf16.mxu0 0
    %2738 = vmatpush1.bf16.msra.mxu0 0
    %2739 = vmatprep.subr.bf16.mxu0 0
    %2740 = vmatpush1.bf16.msra.mxu0 0
    %2741 = vmatprep.subr.bf16.mxu0 0
    %2742 = vmatpush1.bf16.msra.mxu0 0
    %2743 = vmatprep.subr.bf16.mxu0 0
    %2744 = vmatpush1.bf16.msra.mxu0 0
    %2745 = vmatprep.mubr.bf16.mxu0 0
    %2746 = vmatmul.mubr.bf16.gmra.mrb[0].mxu0 %v2671
    %v2747 = vpop.f32.mrb[0].mxu0
    %v2748 = vadd.f32 0.0, %v2747
    %v2749 = vpop.f32.mrb[0].mxu0
    %v2750 = vadd.f32 0.0, %v2749
    %v2751 = vpop.f32.mrb[0].mxu0
    %v2752 = vpop.f32.mrb[0].mxu0
    %2753 = vdwg.mxu0
    %v2754 = vadd.f32 %v2667, %v2707
    %v2755 = vadd.f32 %v2668, %v2709
    %v2756 = vadd.f32 %v2669, %v2748
    %v2757 = vadd.f32 %v2670, %v2750
    %v2758 = vxor.u32 %v2754, 2147483648
    %v2759 = vxor.u32 %v2755, 2147483648
    %v2760 = vxor.u32 %v2756, 2147483648
    %v2761 = vmul.f32 %v2758, 1.442695
    %v2762 = vpow.pop %v2761
    %v2763 = vmul.f32 %v2759, 1.442695
    %v2764 = vpow.pop %v2763
    %v2765 = vmul.f32 %v2760, 1.442695
    %v2766 = vpow.pop %v2765
    %v2767 = vadd.f32 %v2762, 1.0
    %v2768 = vadd.f32 %v2764, 1.0
    %v2769 = vadd.f32 %v2766, 1.0
    %v2770 = vrcp.pop %v2767
    %v2771 = vmul.f32 1.0, %v2770
    %v2772 = vrcp.pop %v2768
    %v2773 = vmul.f32 1.0, %v2772
    %v2774 = vrcp.pop %v2769
    %v2775 = vmul.f32 1.0, %v2774
    %v2776 = vtanh.pop %v2757
    %v2777 = vmul.f32 %v2773, %v2663
    %v2778 = vmul.f32 %v2771, %v2776
    %v2779 = vadd.f32 %v2777, %v2778
    %v2780 = vtanh.pop %v2779
    %v2781 = vmul.f32 %v2775, %v2780
    %2782 = vst [vmem:[#allocation4 + $0x18] sm:$0xff] %v2781
    %v2783 = vld [vmem:[#allocation5 + $0x80] sm:$0xff]
    %v2784 = vld [vmem:[#allocation5 + $0x88] sm:$0xff]
    %v2785 = vld [vmem:[#allocation5 + $0x90] sm:$0xff]
    %v2786 = vld [vmem:[#allocation5 + $0x98] sm:$0xff]
    %v2787 = vpack.c.bf16 %v2781, %v2781
    %2788 = vmatprep.subr.bf16.mxu0 %v2261
    %2789 = vmatpush1.bf16.msra.mxu0 %v2260
    %2790 = vmatprep.subr.bf16.mxu0 %v2265
    %2791 = vmatpush1.bf16.msra.mxu0 %v2264
    %2792 = vmatprep.subr.bf16.mxu0 %v2269
    %2793 = vmatpush1.bf16.msra.mxu0 %v2268
    %2794 = vmatprep.subr.bf16.mxu0 %v2273
    %2795 = vmatpush1.bf16.msra.mxu0 %v2272
    %2796 = vmatprep.subr.bf16.mxu0 %v2277
    %2797 = vmatpush1.bf16.msra.mxu0 %v2276
    %2798 = vmatprep.subr.bf16.mxu0 %v2281
    %2799 = vmatpush1.bf16.msra.mxu0 %v2280
    %2800 = vmatprep.subr.bf16.mxu0 %v2285
    %2801 = vmatpush1.bf16.msra.mxu0 %v2284
    %2802 = vmatprep.subr.bf16.mxu0 %v2289
    %2803 = vmatpush1.bf16.msra.mxu0 %v2288
    %2804 = vmatprep.subr.bf16.mxu0 0
    %2805 = vmatpush1.bf16.msra.mxu0 0
    %2806 = vmatprep.subr.bf16.mxu0 0
    %2807 = vmatpush1.bf16.msra.mxu0 0
    %2808 = vmatprep.subr.bf16.mxu0 0
    %2809 = vmatpush1.bf16.msra.mxu0 0
    %2810 = vmatprep.subr.bf16.mxu0 0
    %2811 = vmatpush1.bf16.msra.mxu0 0
    %2812 = vmatprep.subr.bf16.mxu0 0
    %2813 = vmatpush1.bf16.msra.mxu0 0
    %2814 = vmatprep.subr.bf16.mxu0 0
    %2815 = vmatpush1.bf16.msra.mxu0 0
    %2816 = vmatprep.subr.bf16.mxu0 0
    %2817 = vmatpush1.bf16.msra.mxu0 0
    %2818 = vmatprep.subr.bf16.mxu0 0
    %2819 = vmatpush1.bf16.msra.mxu0 0
    %2820 = vmatprep.mubr.bf16.mxu0 0
    %2821 = vmatmul.mubr.bf16.gmra.mrb[0].mxu0 %v2787
    %v2822 = vpop.f32.mrb[0].mxu0
    %v2823 = vadd.f32 0.0, %v2822
    %v2824 = vpop.f32.mrb[0].mxu0
    %v2825 = vadd.f32 0.0, %v2824
    %v2826 = vpop.f32.mrb[0].mxu0
    %v2827 = vpop.f32.mrb[0].mxu0
    %2828 = vdwg.mxu0
    %2829 = vmatprep.subr.bf16.mxu0 %v2263
    %2830 = vmatpush1.bf16.msra.mxu0 %v2262
    %2831 = vmatprep.subr.bf16.mxu0 %v2267
    %2832 = vmatpush1.bf16.msra.mxu0 %v2266
    %2833 = vmatprep.subr.bf16.mxu0 %v2271
    %2834 = vmatpush1.bf16.msra.mxu0 %v2270
    %2835 = vmatprep.subr.bf16.mxu0 %v2275
    %2836 = vmatpush1.bf16.msra.mxu0 %v2274
    %2837 = vmatprep.subr.bf16.mxu0 %v2279
    %2838 = vmatpush1.bf16.msra.mxu0 %v2278
    %2839 = vmatprep.subr.bf16.mxu0 %v2283
    %2840 = vmatpush1.bf16.msra.mxu0 %v2282
    %2841 = vmatprep.subr.bf16.mxu0 %v2287
    %2842 = vmatpush1.bf16.msra.mxu0 %v2286
    %2843 = vmatprep.subr.bf16.mxu0 %v2291
    %2844 = vmatpush1.bf16.msra.mxu0 %v2290
    %2845 = vmatprep.subr.bf16.mxu0 0
    %2846 = vmatpush1.bf16.msra.mxu0 0
    %2847 = vmatprep.subr.bf16.mxu0 0
    %2848 = vmatpush1.bf16.msra.mxu0 0
    %2849 = vmatprep.subr.bf16.mxu0 0
    %2850 = vmatpush1.bf16.msra.mxu0 0
    %2851 = vmatprep.subr.bf16.mxu0 0
    %2852 = vmatpush1.bf16.msra.mxu0 0
    %2853 = vmatprep.subr.bf16.mxu0 0
    %2854 = vmatpush1.bf16.msra.mxu0 0
    %2855 = vmatprep.subr.bf16.mxu0 0
    %2856 = vmatpush1.bf16.msra.mxu0 0
    %2857 = vmatprep.subr.bf16.mxu0 0
    %2858 = vmatpush1.bf16.msra.mxu0 0
    %2859 = vmatprep.subr.bf16.mxu0 0
    %2860 = vmatpush1.bf16.msra.mxu0 0
    %2861 = vmatprep.mubr.bf16.mxu0 0
    %2862 = vmatmul.mubr.bf16.gmra.mrb[0].mxu0 %v2787
    %v2863 = vpop.f32.mrb[0].mxu0
    %v2864 = vadd.f32 0.0, %v2863
    %v2865 = vpop.f32.mrb[0].mxu0
    %v2866 = vadd.f32 0.0, %v2865
    %v2867 = vpop.f32.mrb[0].mxu0
    %v2868 = vpop.f32.mrb[0].mxu0
    %2869 = vdwg.mxu0
    %v2870 = vadd.f32 %v2783, %v2823
    %v2871 = vadd.f32 %v2784, %v2825
    %v2872 = vadd.f32 %v2785, %v2864
    %v2873 = vadd.f32 %v2786, %v2866
    %v2874 = vxor.u32 %v2870, 2147483648
    %v2875 = vxor.u32 %v2871, 2147483648
    %v2876 = vxor.u32 %v2872, 2147483648
    %v2877 = vmul.f32 %v2874, 1.442695
    %v2878 = vpow.pop %v2877
    %v2879 = vmul.f32 %v2875, 1.442695
    %v2880 = vpow.pop %v2879
    %v2881 = vmul.f32 %v2876, 1.442695
    %v2882 = vpow.pop %v2881
    %v2883 = vadd.f32 %v2878, 1.0
    %v2884 = vadd.f32 %v2880, 1.0
    %v2885 = vadd.f32 %v2882, 1.0
    %v2886 = vrcp.pop %v2883
    %v2887 = vmul.f32 1.0, %v2886
    %v2888 = vrcp.pop %v2884
    %v2889 = vmul.f32 1.0, %v2888
    %v2890 = vrcp.pop %v2885
    %v2891 = vmul.f32 1.0, %v2890
    %v2892 = vtanh.pop %v2873
    %v2893 = vmul.f32 %v2889, %v2779
    %v2894 = vmul.f32 %v2887, %v2892
    %v2895 = vadd.f32 %v2893, %v2894
    %v2896 = vtanh.pop %v2895
    %v2897 = vmul.f32 %v2891, %v2896
    %2898 = vst [vmem:[#allocation4 + $0x20] sm:$0xff] %v2897
    %v2899 = vld [vmem:[#allocation5 + $0xa0] sm:$0xff]
    %v2900 = vld [vmem:[#allocation5 + $0xa8] sm:$0xff]
    %v2901 = vld [vmem:[#allocation5 + $0xb0] sm:$0xff]
    %v2902 = vld [vmem:[#allocation5 + $0xb8] sm:$0xff]
    %v2903 = vpack.c.bf16 %v2897, %v2897
    %2904 = vmatprep.subr.bf16.mxu0 %v2261
    %2905 = vmatpush1.bf16.msra.mxu0 %v2260
    %2906 = vmatprep.subr.bf16.mxu0 %v2265
    %2907 = vmatpush1.bf16.msra.mxu0 %v2264
    %2908 = vmatprep.subr.bf16.mxu0 %v2269
    %2909 = vmatpush1.bf16.msra.mxu0 %v2268
    %2910 = vmatprep.subr.bf16.mxu0 %v2273
    %2911 = vmatpush1.bf16.msra.mxu0 %v2272
    %2912 = vmatprep.subr.bf16.mxu0 %v2277
    %2913 = vmatpush1.bf16.msra.mxu0 %v2276
    %2914 = vmatprep.subr.bf16.mxu0 %v2281
    %2915 = vmatpush1.bf16.msra.mxu0 %v2280
    %2916 = vmatprep.subr.bf16.mxu0 %v2285
    %2917 = vmatpush1.bf16.msra.mxu0 %v2284
    %2918 = vmatprep.subr.bf16.mxu0 %v2289
    %2919 = vmatpush1.bf16.msra.mxu0 %v2288
    %2920 = vmatprep.subr.bf16.mxu0 0
    %2921 = vmatpush1.bf16.msra.mxu0 0
    %2922 = vmatprep.subr.bf16.mxu0 0
    %2923 = vmatpush1.bf16.msra.mxu0 0
    %2924 = vmatprep.subr.bf16.mxu0 0
    %2925 = vmatpush1.bf16.msra.mxu0 0
    %2926 = vmatprep.subr.bf16.mxu0 0
    %2927 = vmatpush1.bf16.msra.mxu0 0
    %2928 = vmatprep.subr.bf16.mxu0 0
    %2929 = vmatpush1.bf16.msra.mxu0 0
    %2930 = vmatprep.subr.bf16.mxu0 0
    %2931 = vmatpush1.bf16.msra.mxu0 0
    %2932 = vmatprep.subr.bf16.mxu0 0
    %2933 = vmatpush1.bf16.msra.mxu0 0
    %2934 = vmatprep.subr.bf16.mxu0 0
    %2935 = vmatpush1.bf16.msra.mxu0 0
    %2936 = vmatprep.mubr.bf16.mxu0 0
    %2937 = vmatmul.mubr.bf16.gmra.mrb[0].mxu0 %v2903
    %v2938 = vpop.f32.mrb[0].mxu0
    %v2939 = vadd.f32 0.0, %v2938
    %v2940 = vpop.f32.mrb[0].mxu0
    %v2941 = vadd.f32 0.0, %v2940
    %v2942 = vpop.f32.mrb[0].mxu0
    %v2943 = vpop.f32.mrb[0].mxu0
    %2944 = vdwg.mxu0
    %2945 = vmatprep.subr.bf16.mxu0 %v2263
    %2946 = vmatpush1.bf16.msra.mxu0 %v2262
    %2947 = vmatprep.subr.bf16.mxu0 %v2267
    %2948 = vmatpush1.bf16.msra.mxu0 %v2266
    %2949 = vmatprep.subr.bf16.mxu0 %v2271
    %2950 = vmatpush1.bf16.msra.mxu0 %v2270
    %2951 = vmatprep.subr.bf16.mxu0 %v2275
    %2952 = vmatpush1.bf16.msra.mxu0 %v2274
    %2953 = vmatprep.subr.bf16.mxu0 %v2279
    %2954 = vmatpush1.bf16.msra.mxu0 %v2278
    %2955 = vmatprep.subr.bf16.mxu0 %v2283
    %2956 = vmatpush1.bf16.msra.mxu0 %v2282
    %2957 = vmatprep.subr.bf16.mxu0 %v2287
    %2958 = vmatpush1.bf16.msra.mxu0 %v2286
    %2959 = vmatprep.subr.bf16.mxu0 %v2291
    %2960 = vmatpush1.bf16.msra.mxu0 %v2290
    %2961 = vmatprep.subr.bf16.mxu0 0
    %2962 = vmatpush1.bf16.msra.mxu0 0
    %2963 = vmatprep.subr.bf16.mxu0 0
    %2964 = vmatpush1.bf16.msra.mxu0 0
    %2965 = vmatprep.subr.bf16.mxu0 0
    %2966 = vmatpush1.bf16.msra.mxu0 0
    %2967 = vmatprep.subr.bf16.mxu0 0
    %2968 = vmatpush1.bf16.msra.mxu0 0
    %2969 = vmatprep.subr.bf16.mxu0 0
    %2970 = vmatpush1.bf16.msra.mxu0 0
    %2971 = vmatprep.subr.bf16.mxu0 0
    %2972 = vmatpush1.bf16.msra.mxu0 0
    %2973 = vmatprep.subr.bf16.mxu0 0
    %2974 = vmatpush1.bf16.msra.mxu0 0
    %2975 = vmatprep.subr.bf16.mxu0 0
    %2976 = vmatpush1.bf16.msra.mxu0 0
    %2977 = vmatprep.mubr.bf16.mxu0 0
    %2978 = vmatmul.mubr.bf16.gmra.mrb[0].mxu0 %v2903
    %v2979 = vpop.f32.mrb[0].mxu0
    %v2980 = vadd.f32 0.0, %v2979
    %v2981 = vpop.f32.mrb[0].mxu0
    %v2982 = vadd.f32 0.0, %v2981
    %v2983 = vpop.f32.mrb[0].mxu0
    %v2984 = vpop.f32.mrb[0].mxu0
    %2985 = vdwg.mxu0
    %v2986 = vadd.f32 %v2899, %v2939
    %v2987 = vadd.f32 %v2900, %v2941
    %v2988 = vadd.f32 %v2901, %v2980
    %v2989 = vadd.f32 %v2902, %v2982
    %v2990 = vxor.u32 %v2986, 2147483648
    %v2991 = vxor.u32 %v2987, 2147483648
    %v2992 = vxor.u32 %v2988, 2147483648
    %v2993 = vmul.f32 %v2990, 1.442695
    %v2994 = vpow.pop %v2993
    %v2995 = vmul.f32 %v2991, 1.442695
    %v2996 = vpow.pop %v2995
    %v2997 = vmul.f32 %v2992, 1.442695
    %v2998 = vpow.pop %v2997
    %v2999 = vadd.f32 %v2994, 1.0
    %v3000 = vadd.f32 %v2996, 1.0
    %v3001 = vadd.f32 %v2998, 1.0
    %v3002 = vrcp.pop %v2999
    %v3003 = vmul.f32 1.0, %v3002
    %v3004 = vrcp.pop %v3000
    %v3005 = vmul.f32 1.0, %v3004
    %v3006 = vrcp.pop %v3001
    %v3007 = vmul.f32 1.0, %v3006
    %v3008 = vtanh.pop %v2989
    %v3009 = vmul.f32 %v3005, %v2895
    %v3010 = vmul.f32 %v3003, %v3008
    %v3011 = vadd.f32 %v3009, %v3010
    %v3012 = vtanh.pop %v3011
    %v3013 = vmul.f32 %v3007, %v3012
    %3014 = vst [vmem:[#allocation4 + $0x28] sm:$0xff] %v3013
    %v3015 = vld [vmem:[#allocation5 + $0xc0] sm:$0xff]
    %v3016 = vld [vmem:[#allocation5 + $0xc8] sm:$0xff]
    %v3017 = vld [vmem:[#allocation5 + $0xd0] sm:$0xff]
    %v3018 = vld [vmem:[#allocation5 + $0xd8] sm:$0xff]
    %v3019 = vpack.c.bf16 %v3013, %v3013
    %3020 = vmatprep.subr.bf16.mxu0 %v2261
    %3021 = vmatpush1.bf16.msra.mxu0 %v2260
    %3022 = vmatprep.subr.bf16.mxu0 %v2265
    %3023 = vmatpush1.bf16.msra.mxu0 %v2264
    %3024 = vmatprep.subr.bf16.mxu0 %v2269
    %3025 = vmatpush1.bf16.msra.mxu0 %v2268
    %3026 = vmatprep.subr.bf16.mxu0 %v2273
    %3027 = vmatpush1.bf16.msra.mxu0 %v2272
    %3028 = vmatprep.subr.bf16.mxu0 %v2277
    %3029 = vmatpush1.bf16.msra.mxu0 %v2276
    %3030 = vmatprep.subr.bf16.mxu0 %v2281
    %3031 = vmatpush1.bf16.msra.mxu0 %v2280
    %3032 = vmatprep.subr.bf16.mxu0 %v2285
    %3033 = vmatpush1.bf16.msra.mxu0 %v2284
    %3034 = vmatprep.subr.bf16.mxu0 %v2289
    %3035 = vmatpush1.bf16.msra.mxu0 %v2288
    %3036 = vmatprep.subr.bf16.mxu0 0
    %3037 = vmatpush1.bf16.msra.mxu0 0
    %3038 = vmatprep.subr.bf16.mxu0 0
    %3039 = vmatpush1.bf16.msra.mxu0 0
    %3040 = vmatprep.subr.bf16.mxu0 0
    %3041 = vmatpush1.bf16.msra.mxu0 0
    %3042 = vmatprep.subr.bf16.mxu0 0
    %3043 = vmatpush1.bf16.msra.mxu0 0
    %3044 = vmatprep.subr.bf16.mxu0 0
    %3045 = vmatpush1.bf16.msra.mxu0 0
    %3046 = vmatprep.subr.bf16.mxu0 0
    %3047 = vmatpush1.bf16.msra.mxu0 0
    %3048 = vmatprep.subr.bf16.mxu0 0
    %3049 = vmatpush1.bf16.msra.mxu0 0
    %3050 = vmatprep.subr.bf16.mxu0 0
    %3051 = vmatpush1.bf16.msra.mxu0 0
    %3052 = vmatprep.mubr.bf16.mxu0 0
    %3053 = vmatmul.mubr.bf16.gmra.mrb[0].mxu0 %v3019
    %v3054 = vpop.f32.mrb[0].mxu0
    %v3055 = vadd.f32 0.0, %v3054
    %v3056 = vpop.f32.mrb[0].mxu0
    %v3057 = vadd.f32 0.0, %v3056
    %v3058 = vpop.f32.mrb[0].mxu0
    %v3059 = vpop.f32.mrb[0].mxu0
    %3060 = vdwg.mxu0
    %3061 = vmatprep.subr.bf16.mxu0 %v2263
    %3062 = vmatpush1.bf16.msra.mxu0 %v2262
    %3063 = vmatprep.subr.bf16.mxu0 %v2267
    %3064 = vmatpush1.bf16.msra.mxu0 %v2266
    %3065 = vmatprep.subr.bf16.mxu0 %v2271
    %3066 = vmatpush1.bf16.msra.mxu0 %v2270
    %3067 = vmatprep.subr.bf16.mxu0 %v2275
    %3068 = vmatpush1.bf16.msra.mxu0 %v2274
    %3069 = vmatprep.subr.bf16.mxu0 %v2279
    %3070 = vmatpush1.bf16.msra.mxu0 %v2278
    %3071 = vmatprep.subr.bf16.mxu0 %v2283
    %3072 = vmatpush1.bf16.msra.mxu0 %v2282
    %3073 = vmatprep.subr.bf16.mxu0 %v2287
    %3074 = vmatpush1.bf16.msra.mxu0 %v2286
    %3075 = vmatprep.subr.bf16.mxu0 %v2291
    %3076 = vmatpush1.bf16.msra.mxu0 %v2290
    %3077 = vmatprep.subr.bf16.mxu0 0
    %3078 = vmatpush1.bf16.msra.mxu0 0
    %3079 = vmatprep.subr.bf16.mxu0 0
    %3080 = vmatpush1.bf16.msra.mxu0 0
    %3081 = vmatprep.subr.bf16.mxu0 0
    %3082 = vmatpush1.bf16.msra.mxu0 0
    %3083 = vmatprep.subr.bf16.mxu0 0
    %3084 = vmatpush1.bf16.msra.mxu0 0
    %3085 = vmatprep.subr.bf16.mxu0 0
    %3086 = vmatpush1.bf16.msra.mxu0 0
    %3087 = vmatprep.subr.bf16.mxu0 0
    %3088 = vmatpush1.bf16.msra.mxu0 0
    %3089 = vmatprep.subr.bf16.mxu0 0
    %3090 = vmatpush1.bf16.msra.mxu0 0
    %3091 = vmatprep.subr.bf16.mxu0 0
    %3092 = vmatpush1.bf16.msra.mxu0 0
    %3093 = vmatprep.mubr.bf16.mxu0 0
    %3094 = vmatmul.mubr.bf16.gmra.mrb[0].mxu0 %v3019
    %v3095 = vpop.f32.mrb[0].mxu0
    %v3096 = vadd.f32 0.0, %v3095
    %v3097 = vpop.f32.mrb[0].mxu0
    %v3098 = vadd.f32 0.0, %v3097
    %v3099 = vpop.f32.mrb[0].mxu0
    %v3100 = vpop.f32.mrb[0].mxu0
    %3101 = vdwg.mxu0
    %v3102 = vadd.f32 %v3015, %v3055
    %v3103 = vadd.f32 %v3016, %v3057
    %v3104 = vadd.f32 %v3017, %v3096
    %v3105 = vadd.f32 %v3018, %v3098
    %v3106 = vxor.u32 %v3102, 2147483648
    %v3107 = vxor.u32 %v3103, 2147483648
    %v3108 = vxor.u32 %v3104, 2147483648
    %v3109 = vmul.f32 %v3106, 1.442695
    %v3110 = vpow.pop %v3109
    %v3111 = vmul.f32 %v3107, 1.442695
    %v3112 = vpow.pop %v3111
    %v3113 = vmul.f32 %v3108, 1.442695
    %v3114 = vpow.pop %v3113
    %v3115 = vadd.f32 %v3110, 1.0
    %v3116 = vadd.f32 %v3112, 1.0
    %v3117 = vadd.f32 %v3114, 1.0
    %v3118 = vrcp.pop %v3115
    %v3119 = vmul.f32 1.0, %v3118
    %v3120 = vrcp.pop %v3116
    %v3121 = vmul.f32 1.0, %v3120
    %v3122 = vrcp.pop %v3117
    %v3123 = vmul.f32 1.0, %v3122
    %v3124 = vtanh.pop %v3105
    %v3125 = vmul.f32 %v3121, %v3011
    %v3126 = vmul.f32 %v3119, %v3124
    %v3127 = vadd.f32 %v3125, %v3126
    %v3128 = vtanh.pop %v3127
    %v3129 = vmul.f32 %v3123, %v3128
    %3130 = vst [vmem:[#allocation4 + $0x30] sm:$0xff] %v3129
    %v3131 = vld [vmem:[#allocation5 + $0xe0] sm:$0xff]
    %v3132 = vld [vmem:[#allocation5 + $0xe8] sm:$0xff]
    %v3133 = vld [vmem:[#allocation5 + $0xf0] sm:$0xff]
    %v3134 = vld [vmem:[#allocation5 + $0xf8] sm:$0xff]
    %v3135 = vpack.c.bf16 %v3129, %v3129
    %3136 = vmatprep.subr.bf16.mxu0 %v2261
    %3137 = vmatpush1.bf16.msra.mxu0 %v2260
    %3138 = vmatprep.subr.bf16.mxu0 %v2265
    %3139 = vmatpush1.bf16.msra.mxu0 %v2264
    %3140 = vmatprep.subr.bf16.mxu0 %v2269
    %3141 = vmatpush1.bf16.msra.mxu0 %v2268
    %3142 = vmatprep.subr.bf16.mxu0 %v2273
    %3143 = vmatpush1.bf16.msra.mxu0 %v2272
    %3144 = vmatprep.subr.bf16.mxu0 %v2277
    %3145 = vmatpush1.bf16.msra.mxu0 %v2276
    %3146 = vmatprep.subr.bf16.mxu0 %v2281
    %3147 = vmatpush1.bf16.msra.mxu0 %v2280
    %3148 = vmatprep.subr.bf16.mxu0 %v2285
    %3149 = vmatpush1.bf16.msra.mxu0 %v2284
    %3150 = vmatprep.subr.bf16.mxu0 %v2289
    %3151 = vmatpush1.bf16.msra.mxu0 %v2288
    %3152 = vmatprep.subr.bf16.mxu0 0
    %3153 = vmatpush1.bf16.msra.mxu0 0
    %3154 = vmatprep.subr.bf16.mxu0 0
    %3155 = vmatpush1.bf16.msra.mxu0 0
    %3156 = vmatprep.subr.bf16.mxu0 0
    %3157 = vmatpush1.bf16.msra.mxu0 0
    %3158 = vmatprep.subr.bf16.mxu0 0
    %3159 = vmatpush1.bf16.msra.mxu0 0
    %3160 = vmatprep.subr.bf16.mxu0 0
    %3161 = vmatpush1.bf16.msra.mxu0 0
    %3162 = vmatprep.subr.bf16.mxu0 0
    %3163 = vmatpush1.bf16.msra.mxu0 0
    %3164 = vmatprep.subr.bf16.mxu0 0
    %3165 = vmatpush1.bf16.msra.mxu0 0
    %3166 = vmatprep.subr.bf16.mxu0 0
    %3167 = vmatpush1.bf16.msra.mxu0 0
    %3168 = vmatprep.mubr.bf16.mxu0 0
    %3169 = vmatmul.mubr.bf16.gmra.mrb[0].mxu0 %v3135
    %v3170 = vpop.f32.mrb[0].mxu0
    %v3171 = vadd.f32 0.0, %v3170
    %v3172 = vpop.f32.mrb[0].mxu0
    %v3173 = vadd.f32 0.0, %v3172
    %v3174 = vpop.f32.mrb[0].mxu0
    %v3175 = vpop.f32.mrb[0].mxu0
    %3176 = vdwg.mxu0
    %3177 = vmatprep.subr.bf16.mxu0 %v2263
    %3178 = vmatpush1.bf16.msra.mxu0 %v2262
    %3179 = vmatprep.subr.bf16.mxu0 %v2267
    %3180 = vmatpush1.bf16.msra.mxu0 %v2266
    %3181 = vmatprep.subr.bf16.mxu0 %v2271
    %3182 = vmatpush1.bf16.msra.mxu0 %v2270
    %3183 = vmatprep.subr.bf16.mxu0 %v2275
    %3184 = vmatpush1.bf16.msra.mxu0 %v2274
    %3185 = vmatprep.subr.bf16.mxu0 %v2279
    %3186 = vmatpush1.bf16.msra.mxu0 %v2278
    %3187 = vmatprep.subr.bf16.mxu0 %v2283
    %3188 = vmatpush1.bf16.msra.mxu0 %v2282
    %3189 = vmatprep.subr.bf16.mxu0 %v2287
    %3190 = vmatpush1.bf16.msra.mxu0 %v2286
    %3191 = vmatprep.subr.bf16.mxu0 %v2291
    %3192 = vmatpush1.bf16.msra.mxu0 %v2290
    %3193 = vmatprep.subr.bf16.mxu0 0
    %3194 = vmatpush1.bf16.msra.mxu0 0
    %3195 = vmatprep.subr.bf16.mxu0 0
    %3196 = vmatpush1.bf16.msra.mxu0 0
    %3197 = vmatprep.subr.bf16.mxu0 0
    %3198 = vmatpush1.bf16.msra.mxu0 0
    %3199 = vmatprep.subr.bf16.mxu0 0
    %3200 = vmatpush1.bf16.msra.mxu0 0
    %3201 = vmatprep.subr.bf16.mxu0 0
    %3202 = vmatpush1.bf16.msra.mxu0 0
    %3203 = vmatprep.subr.bf16.mxu0 0
    %3204 = vmatpush1.bf16.msra.mxu0 0
    %3205 = vmatprep.subr.bf16.mxu0 0
    %3206 = vmatpush1.bf16.msra.mxu0 0
    %3207 = vmatprep.subr.bf16.mxu0 0
    %3208 = vmatpush1.bf16.msra.mxu0 0
    %3209 = vmatprep.mubr.bf16.mxu0 0
    %3210 = vmatmul.mubr.bf16.gmra.mrb[0].mxu0 %v3135
    %v3211 = vpop.f32.mrb[0].mxu0
    %v3212 = vadd.f32 0.0, %v3211
    %v3213 = vpop.f32.mrb[0].mxu0
    %v3214 = vadd.f32 0.0, %v3213
    %v3215 = vpop.f32.mrb[0].mxu0
    %v3216 = vpop.f32.mrb[0].mxu0
    %3217 = vdwg.mxu0
    %v3218 = vadd.f32 %v3131, %v3171
    %v3219 = vadd.f32 %v3132, %v3173
    %v3220 = vadd.f32 %v3133, %v3212
    %v3221 = vadd.f32 %v3134, %v3214
    %v3222 = vxor.u32 %v3218, 2147483648
    %v3223 = vxor.u32 %v3219, 2147483648
    %v3224 = vxor.u32 %v3220, 2147483648
    %v3225 = vmul.f32 %v3222, 1.442695
    %v3226 = vpow.pop %v3225
    %v3227 = vmul.f32 %v3223, 1.442695
    %v3228 = vpow.pop %v3227
    %v3229 = vmul.f32 %v3224, 1.442695
    %v3230 = vpow.pop %v3229
    %v3231 = vadd.f32 %v3226, 1.0
    %v3232 = vadd.f32 %v3228, 1.0
    %v3233 = vadd.f32 %v3230, 1.0
    %v3234 = vrcp.pop %v3231
    %v3235 = vmul.f32 1.0, %v3234
    %v3236 = vrcp.pop %v3232
    %v3237 = vmul.f32 1.0, %v3236
    %v3238 = vrcp.pop %v3233
    %v3239 = vmul.f32 1.0, %v3238
    %v3240 = vtanh.pop %v3221
    %v3241 = vmul.f32 %v3237, %v3127
    %v3242 = vmul.f32 %v3235, %v3240
    %v3243 = vadd.f32 %v3241, %v3242
    %v3244 = vtanh.pop %v3243
    %v3245 = vmul.f32 %v3239, %v3244
    %3246 = vst [vmem:[#allocation4 + $0x38] sm:$0xff] %v3245
    %v3247 = vld [vmem:[#allocation4] sm:$0xff]
    %v3248 = vld [vmem:[#allocation4 + $0x8] sm:$0xff]
    %v3249 = vld [vmem:[#allocation4 + $0x10] sm:$0xff]
    %v3250 = vld [vmem:[#allocation4 + $0x18] sm:$0xff]
    %v3251 = vld [vmem:[#allocation4 + $0x20] sm:$0xff]
    %v3252 = vld [vmem:[#allocation4 + $0x28] sm:$0xff]
    %v3253 = vld [vmem:[#allocation4 + $0x30] sm:$0xff]
    %v3254 = vld [vmem:[#allocation4 + $0x38] sm:$0xff]
    %v3255 = vpack.c.bf16 %v3248, %v3247
    %v3256 = vpack.c.bf16 %v3250, %v3249
    %v3257 = vpack.c.bf16 %v3252, %v3251
    %v3258 = vpack.c.bf16 %v3254, %v3253
    %v3259 = vld [vmem:[#allocation16] sm:$0xf]
    %v3260 = vld [vmem:[#allocation16 + $0x4] sm:$0xf]
    %v3261 = vld [vmem:[#allocation16 + $0x8] sm:$0xf]
    %v3262 = vld [vmem:[#allocation16 + $0xc] sm:$0xf]
    %v3263 = vld [vmem:[#allocation16 + $0x10] sm:$0xf]
    %v3264 = vld [vmem:[#allocation16 + $0x14] sm:$0xf]
    %v3265 = vld [vmem:[#allocation16 + $0x18] sm:$0xf]
    %v3266 = vld [vmem:[#allocation16 + $0x1c] sm:$0xf]
    %v3267 = vld [vmem:[#allocation16 + $0x20] sm:$0xf]
    %v3268 = vld [vmem:[#allocation16 + $0x24] sm:$0xf]
    %v3269 = vld [vmem:[#allocation16 + $0x28] sm:$0xf]
    %v3270 = vld [vmem:[#allocation16 + $0x2c] sm:$0xf]
    %v3271 = vld [vmem:[#allocation16 + $0x30] sm:$0xf]
    %v3272 = vld [vmem:[#allocation16 + $0x34] sm:$0xf]
    %v3273 = vld [vmem:[#allocation16 + $0x38] sm:$0xf]
    %v3274 = vld [vmem:[#allocation16 + $0x3c] sm:$0xf]
    %v3275 = vld [vmem:[%s9] sm:$0x1]
    %v3277 = vlaneseq
    %v3278 = vshrl.u32 %v3277, 7
    %v3279 = vsub.s32 0, %v3278
    %v3280 = vrot.slane %v3275, %v3279
    %v3298 = vunpack.c.l.b16 %v3259
    %v3299 = vunpack.c.l.b16 %v3260
    %v3300 = vunpack.c.l.b16 %v3261
    %v3301 = vunpack.c.l.b16 %v3262
    %v3302 = vunpack.c.l.b16 %v3263
    %v3303 = vunpack.c.l.b16 %v3264
    %v3304 = vunpack.c.l.b16 %v3265
    %v3305 = vunpack.c.l.b16 %v3266
    %v3306 = vunpack.c.l.b16 %v3267
    %v3307 = vunpack.c.l.b16 %v3268
    %v3308 = vunpack.c.l.b16 %v3269
    %v3309 = vunpack.c.l.b16 %v3270
    %v3310 = vunpack.c.l.b16 %v3271
    %v3311 = vunpack.c.l.b16 %v3272
    %v3312 = vunpack.c.l.b16 %v3273
    %v3313 = vunpack.c.l.b16 %v3274
    %v3314 = vpack.c.b16 %v3299, %v3298
    %v3315 = vpack.c.b16 %v3301, %v3300
    %v3316 = vpack.c.b16 %v3303, %v3302
    %v3317 = vpack.c.b16 %v3305, %v3304
    %v3318 = vpack.c.b16 %v3307, %v3306
    %v3319 = vpack.c.b16 %v3309, %v3308
    %v3320 = vpack.c.b16 %v3311, %v3310
    %v3321 = vpack.c.b16 %v3313, %v3312
    %3330 = vmatprep.subr.bf16.mxu0 0
    %3331 = vmatpush1.bf16.msra.mxu0 %v3314
    %3332 = vmatprep.subr.bf16.mxu0 0
    %3333 = vmatpush1.bf16.msra.mxu0 %v3315
    %3334 = vmatprep.subr.bf16.mxu0 0
    %3335 = vmatpush1.bf16.msra.mxu0 %v3316
    %3336 = vmatprep.subr.bf16.mxu0 0
    %3337 = vmatpush1.bf16.msra.mxu0 %v3317
    %3338 = vmatprep.subr.bf16.mxu0 0
    %3339 = vmatpush1.bf16.msra.mxu0 %v3318
    %3340 = vmatprep.subr.bf16.mxu0 0
    %3341 = vmatpush1.bf16.msra.mxu0 %v3319
    %3342 = vmatprep.subr.bf16.mxu0 0
    %3343 = vmatpush1.bf16.msra.mxu0 %v3320
    %3344 = vmatprep.subr.bf16.mxu0 0
    %3345 = vmatpush1.bf16.msra.mxu0 %v3321
    %3346 = vmatprep.subr.bf16.mxu0 0
    %3347 = vmatpush1.bf16.msra.mxu0 0
    %3348 = vmatprep.subr.bf16.mxu0 0
    %3349 = vmatpush1.bf16.msra.mxu0 0
    %3350 = vmatprep.subr.bf16.mxu0 0
    %3351 = vmatpush1.bf16.msra.mxu0 0
    %3352 = vmatprep.subr.bf16.mxu0 0
    %3353 = vmatpush1.bf16.msra.mxu0 0
    %3354 = vmatprep.subr.bf16.mxu0 0
    %3355 = vmatpush1.bf16.msra.mxu0 0
    %3356 = vmatprep.subr.bf16.mxu0 0
    %3357 = vmatpush1.bf16.msra.mxu0 0
    %3358 = vmatprep.subr.bf16.mxu0 0
    %3359 = vmatpush1.bf16.msra.mxu0 0
    %3360 = vmatprep.subr.bf16.mxu0 0
    %3361 = vmatpush1.bf16.msra.mxu0 0
    %3362 = vmatprep.mubr.bf16.mxu0 0
    %3363 = vmatmul.mubr.bf16.gmra.mrb[0].mxu0 %v3255
    %v3364 = vpop.f32.mrb[0].mxu0
    %v3365 = vadd.f32 %v3280, %v3364
    %v3366 = vpop.f32.mrb[0].mxu0
    %v3367 = vpop.f32.mrb[0].mxu0
    %v3368 = vadd.f32 %v3280, %v3367
    %v3369 = vpop.f32.mrb[0].mxu0
    %3370 = vmatprep.mubr.bf16.mxu0 0
    %3371 = vmatmul.mubr.bf16.gmra.mrb[0].mxu0 %v3256
    %v3372 = vpop.f32.mrb[0].mxu0
    %v3373 = vadd.f32 %v3280, %v3372
    %v3374 = vpop.f32.mrb[0].mxu0
    %v3375 = vpop.f32.mrb[0].mxu0
    %v3376 = vadd.f32 %v3280, %v3375
    %v3377 = vpop.f32.mrb[0].mxu0
    %3378 = vmatprep.mubr.bf16.mxu0 0
    %3379 = vmatmul.mubr.bf16.gmra.mrb[0].mxu0 %v3257
    %v3380 = vpop.f32.mrb[0].mxu0
    %v3381 = vadd.f32 %v3280, %v3380
    %v3382 = vpop.f32.mrb[0].mxu0
    %v3383 = vpop.f32.mrb[0].mxu0
    %v3384 = vadd.f32 %v3280, %v3383
    %v3385 = vpop.f32.mrb[0].mxu0
    %3386 = vmatprep.mubr.bf16.mxu0 0
    %3387 = vmatmul.mubr.bf16.gmra.mrb[0].mxu0 %v3258
    %v3388 = vpop.f32.mrb[0].mxu0
    %v3389 = vadd.f32 %v3280, %v3388
    %v3390 = vpop.f32.mrb[0].mxu0
    %v3391 = vpop.f32.mrb[0].mxu0
    %v3392 = vadd.f32 %v3280, %v3391
    %v3393 = vpop.f32.mrb[0].mxu0
    %3394 = vdwg.mxu0
    %3395 = vst [vmem:[%s10] sm:$0xff] %v3365
    %3396 = vst [vmem:[%s10 + $0x8] sm:$0xff] %v3368
    %3397 = vst [vmem:[%s10 + $0x10] sm:$0xff] %v3373
    %3398 = vst [vmem:[%s10 + $0x18] sm:$0xff] %v3376
    %3399 = vst [vmem:[%s10 + $0x20] sm:$0xff] %v3381
    %3400 = vst [vmem:[%s10 + $0x28] sm:$0xff] %v3384
    %3401 = vst [vmem:[%s10 + $0x30] sm:$0xff] %v3389
    %3402 = vst [vmem:[%s10 + $0x38] sm:$0xff] %v3392
    // Predicated region
    $region70: #{lstm_model_forward.1} parent=1 // pred_check
      _
    $region71: #{lstm_model_forward.1} parent=1 // pred_check_branch
      %3404 = sbr.rel (0) target = $region73
    $region72: #{lstm_model_forward.1} parent=1 // pred_region
      _
    $region73: #{lstm_model_forward.1} parent=1 // pred_fallthru
      _
    // Predicated region
    $region74: #{lstm_model_forward.1} parent=1 // pred_check
      _
    $region75: #{lstm_model_forward.1} parent=1 // pred_check_branch
      %3406 = sbr.rel (0) target = $region77
    $region76: #{lstm_model_forward.1} parent=1 // pred_region
      _
    $region77: #{lstm_model_forward.1} parent=1 // pred_fallthru
      _
    %3407 = vsyncpa [#allocation7], 1
    %3408 = vsyncpa [#allocation11], 1
    %3409 = vsyncpa [#allocation14], 1
    %3410 = vsyncpa [#allocation17], 1
    %3411 = vsyncpa [#allocation8], 1

</llo_original>
